<compile_context>
chip_gen: v7x
topology: tpu7x:2x2x1
jax: 0.10.0
libtpu: 0.0.40
codegen_flags: <defaults>
</compile_context>

<pallas_src>
import math

import jax
import jax.numpy as jnp
from jax.experimental import pallas as pl
from jax.experimental.pallas import tpu as pltpu

LN_EPS = 1e-5  # PyTorch layer_norm_eps default


def _layernorm(y, g, b):
    """LayerNorm over the last dim, f32 math, biased variance (PyTorch)."""
    mu = jnp.mean(y, axis=-1, keepdims=True)
    var = jnp.mean(jnp.square(y - mu), axis=-1, keepdims=True)
    return (y - mu) * jax.lax.rsqrt(var + LN_EPS) * g + b


def make_fused_encoder_kernel(S, E, H):
    """QKV -> MHA -> out-proj -> LN1 -> FFN -> LN2 -> final Linear, one batch / step."""
    hd = E // H
    scale = 1.0 / math.sqrt(hd)

    def kernel(x_ref, wqkv_ref, bqkv_ref, wo_ref, bo_ref,
               g1_ref, be1_ref, w1_ref, b1_ref, w2_ref, b2_ref,
               g2_ref, be2_ref, w3_ref, b3_ref, o_ref):
        x = x_ref[0]                                   # (S, E) f32
        xb = x.astype(jnp.bfloat16)

        # --- fused QKV projection: single (E, 3E) matmul ---------------------
        qkv = (jnp.dot(xb, wqkv_ref[...], preferred_element_type=jnp.float32)
               + bqkv_ref[...]).astype(jnp.bfloat16)   # (S, 3E)

        # --- multi-head self-attention (all in VMEM, static head unroll) -----
        outs = []
        for h in range(H):
            lo = h * hd
            q = qkv[:, lo:lo + hd]
            k = qkv[:, E + lo:E + lo + hd]
            v = qkv[:, 2 * E + lo:2 * E + lo + hd]
            s = jnp.einsum("qd,kd->qk", q, k,
                           preferred_element_type=jnp.float32) * scale
            s = s - jnp.max(s, axis=-1, keepdims=True)
            p = jnp.exp(s)
            p = p / jnp.sum(p, axis=-1, keepdims=True)          # exact softmax
            outs.append(jnp.dot(p.astype(jnp.bfloat16), v,
                                preferred_element_type=jnp.float32))
        attn = jnp.concatenate(outs, axis=-1).astype(jnp.bfloat16)   # (S, E)

        # --- out-proj + residual + LN1 ---------------------------------------
        y1 = (jnp.dot(attn, wo_ref[...], preferred_element_type=jnp.float32)
              + bo_ref[...] + x)
        h1 = _layernorm(y1, g1_ref[...], be1_ref[...])

        # --- FFN + residual + LN2 ---------------------------------------------
        h1b = h1.astype(jnp.bfloat16)
        hid = jnp.maximum(
            jnp.dot(h1b, w1_ref[...], preferred_element_type=jnp.float32)
            + b1_ref[...], 0.0).astype(jnp.bfloat16)            # (S, F) bf16 only
        y2 = (jnp.dot(hid, w2_ref[...], preferred_element_type=jnp.float32)
              + b2_ref[...] + h1)
        h2 = _layernorm(y2, g2_ref[...], be2_ref[...])

        # --- final Linear, lane-dense padded output ---------------------------
        o_ref[0] = (jnp.dot(h2.astype(jnp.bfloat16), w3_ref[...],
                            preferred_element_type=jnp.float32) + b3_ref[...])

    return kernel


def transformer_encoder_forward(x, params):
    S, N, E = x.shape
    H = params["nheads"]
    O = params["output_size"]
    bf16 = jnp.bfloat16

    # Pre-concatenate QKV weights/biases; pad final Linear to >=128 lanes.
    Op = max(128, ((O + 127) // 128) * 128)
    wqkv = jnp.concatenate([params["w_q"], params["w_k"], params["w_v"]], axis=1)
    bqkv = jnp.concatenate([params["b_q"], params["b_k"], params["b_v"]], axis=1)
    w3p = jnp.zeros((E, Op), bf16).at[:, :O].set(params["w3"])
    b3p = jnp.zeros((1, Op), jnp.float32).at[:, :O].set(params["b3"])

    # Tiny layout change (a few KiB) so each grid step reads one contiguous batch.
    # TODO(synk): absorb this transpose into the BlockSpec index_map once
    # (S, 1, E)-shaped blocks over (S, N, E) are safe w.r.t. the (8,128) rule.
    x_nse = jnp.transpose(x, (1, 0, 2))                 # (N, S, E) f32

    def const(a):                    # weights VMEM-resident across the whole grid
        zeros = (0,) * a.ndim
        return pl.BlockSpec(a.shape, lambda n, _z=zeros: _z)

    block_x = pl.BlockSpec((1, S, E), lambda n: (n, 0, 0))
    block_o = pl.BlockSpec((1, S, Op), lambda n: (n, 0, 0))

    args = (x_nse, wqkv, bqkv, params["w_o"], params["b_o"],
            params["g1"], params["beta1"], params["w1"], params["b1"],
            params["w2"], params["b2"], params["g2"], params["beta2"],
            w3p, b3p)
    in_specs = [block_x] + [const(a) for a in args[1:]]

    out_pad = pl.pallas_call(
        make_fused_encoder_kernel(S, E, H),
        grid=(N,),                                       # >= 2 parallel steps
        in_specs=in_specs,
        out_specs=block_o,
        out_shape=jax.ShapeDtypeStruct((N, S, Op), jnp.float32),
        compiler_params=pltpu.CompilerParams(
            dimension_semantics=("parallel",)),          # 2nd TC on v7x
    )(*args)

    out = out_pad[:, :, :O]                              # strip lane padding (tiny)
    return jnp.transpose(out, (1, 0, 2))                 # back to (S, N, O)


# ---------------------------------------------------------------------------
# deterministic example run
# ---------------------------------------------------------------------------
if __name__ == "__main__":
    S, N = 8, 2                 # seq len, batch
    E, H = 32, 4                # d_model, nheads (hd = 8)
    F = 2048                    # dim_feedforward (PyTorch default)
    O = 16                      # output_size of the final Linear

    key = jax.random.PRNGKey(0)
    ks = jax.random.split(key, 16)

    def wgt(k, shape, scale=0.02, dtype=jnp.bfloat16):
        return (jax.random.normal(k, shape, jnp.float32) * scale).astype(dtype)

    # Weights stored pre-transposed as (in, out); matmul weights in bf16,
    # biases / LayerNorm params in f32.
    params = dict(
        nheads=H, output_size=O,
        # MultiheadAttention in_proj split into q/k/v, and out_proj
        w_q=wgt(ks[0], (E, E)), w_k=wgt(ks[1], (E, E)), w_v=wgt(ks[2], (E, E)),
        b_q=wgt(ks[3], (1, E), 0.01, jnp.float32),
        b_k=wgt(ks[4], (1, E), 0.01, jnp.float32),
        b_v=wgt(ks[5], (1, E), 0.01, jnp.float32),
        w_o=wgt(ks[6], (E, E)), b_o=wgt(ks[7], (1, E), 0.01, jnp.float32),
        g1=jnp.ones((1, E), jnp.float32), beta1=jnp.zeros((1, E), jnp.float32),
        # FFN
        w1=wgt(ks[8], (E, F)), b1=wgt(ks[9], (1, F), 0.01, jnp.float32),
        w2=wgt(ks[10], (F, E)), b2=wgt(ks[11], (1, E), 0.01, jnp.float32),
        g2=jnp.ones((1, E), jnp.float32), beta2=jnp.zeros((1, E), jnp.float32),
        # final Linear
        w3=wgt(ks[12], (E, O)), b3=wgt(ks[13], (1, O), 0.01, jnp.float32),
    )

    x = jax.random.normal(ks[14], (S, N, E), jnp.float32)  # (seq, batch, d_model)

    out = transformer_encoder_forward(x, params)
    out = jax.block_until_ready(out)
    assert out.shape == (S, N, O) and out.dtype == jnp.float32
    assert bool(jnp.all(jnp.isfinite(out)))
    print("KERNEL_OK")
</pallas_src>

<mosaic_0001>
module attributes {stable_mosaic.version = 11 : i64} {
  func.func @kernel(%arg0: i32, %arg1: memref<1x8x32xf32, #tpu.memory_space<vmem>>, %arg2: memref<32x96xbf16, #tpu.memory_space<vmem>>, %arg3: memref<1x96xf32, #tpu.memory_space<vmem>>, %arg4: memref<32x32xbf16, #tpu.memory_space<vmem>>, %arg5: memref<1x32xf32, #tpu.memory_space<vmem>>, %arg6: memref<1x32xf32, #tpu.memory_space<vmem>>, %arg7: memref<1x32xf32, #tpu.memory_space<vmem>>, %arg8: memref<32x2048xbf16, #tpu.memory_space<vmem>>, %arg9: memref<1x2048xf32, #tpu.memory_space<vmem>>, %arg10: memref<2048x32xbf16, #tpu.memory_space<vmem>>, %arg11: memref<1x32xf32, #tpu.memory_space<vmem>>, %arg12: memref<1x32xf32, #tpu.memory_space<vmem>>, %arg13: memref<1x32xf32, #tpu.memory_space<vmem>>, %arg14: memref<32x128xbf16, #tpu.memory_space<vmem>>, %arg15: memref<1x128xf32, #tpu.memory_space<vmem>>, %arg16: memref<1x8x128xf32, #tpu.memory_space<vmem>>) attributes {dimension_semantics = [#tpu.dimension_semantics<parallel>], iteration_bounds = array<i64: 2>, scalar_prefetch = 0 : i64, scratch_operands = 0 : i64, tpu.core_type = #tpu.core_type<tc>, window_params = [{transform_indices = @transform_0, window_bounds = array<i64: 1, 8, 32>}, {pipeline_mode = #tpu.pipeline_mode<synchronous>, transform_indices = @transform_1, window_bounds = array<i64: 32, 96>}, {pipeline_mode = #tpu.pipeline_mode<synchronous>, transform_indices = @transform_2, window_bounds = array<i64: 1, 96>}, {pipeline_mode = #tpu.pipeline_mode<synchronous>, transform_indices = @transform_3, window_bounds = array<i64: 32, 32>}, {pipeline_mode = #tpu.pipeline_mode<synchronous>, transform_indices = @transform_4, window_bounds = array<i64: 1, 32>}, {pipeline_mode = #tpu.pipeline_mode<synchronous>, transform_indices = @transform_5, window_bounds = array<i64: 1, 32>}, {pipeline_mode = #tpu.pipeline_mode<synchronous>, transform_indices = @transform_6, window_bounds = array<i64: 1, 32>}, {pipeline_mode = #tpu.pipeline_mode<synchronous>, transform_indices = @transform_7, window_bounds = array<i64: 32, 2048>}, {pipeline_mode = #tpu.pipeline_mode<synchronous>, transform_indices = @transform_8, window_bounds = array<i64: 1, 2048>}, {pipeline_mode = #tpu.pipeline_mode<synchronous>, transform_indices = @transform_9, window_bounds = array<i64: 2048, 32>}, {pipeline_mode = #tpu.pipeline_mode<synchronous>, transform_indices = @transform_10, window_bounds = array<i64: 1, 32>}, {pipeline_mode = #tpu.pipeline_mode<synchronous>, transform_indices = @transform_11, window_bounds = array<i64: 1, 32>}, {pipeline_mode = #tpu.pipeline_mode<synchronous>, transform_indices = @transform_12, window_bounds = array<i64: 1, 32>}, {pipeline_mode = #tpu.pipeline_mode<synchronous>, transform_indices = @transform_13, window_bounds = array<i64: 32, 128>}, {pipeline_mode = #tpu.pipeline_mode<synchronous>, transform_indices = @transform_14, window_bounds = array<i64: 1, 128>}, {transform_indices = @transform_15, window_bounds = array<i64: 1, 8, 128>}]} {
    %c0 = arith.constant 0 : index
    %c0_0 = arith.constant 0 : index
    %c0_1 = arith.constant 0 : index
    %0 = vector.load %arg1[%c0, %c0_0, %c0_1] : memref<1x8x32xf32, #tpu.memory_space<vmem>>, vector<1x8x32xf32>
    %1 = vector.shape_cast %0 : vector<1x8x32xf32> to vector<8x32xf32>
    %2 = arith.truncf %1 : vector<8x32xf32> to vector<8x32xbf16>
    %c0_2 = arith.constant 0 : index
    %c0_3 = arith.constant 0 : index
    %3 = vector.load %arg2[%c0_2, %c0_3] : memref<32x96xbf16, #tpu.memory_space<vmem>>, vector<32x96xbf16>
    %cst = arith.constant dense<0.000000e+00> : vector<8x96xf32>
    %4 = tpu.matmul %2, %3, %cst {dimension_numbers = #tpu.dot_dimension_numbers<[1], [0], [0], [1], [0, 0, 1, 1], [], []>} : vector<8x32xbf16>, vector<32x96xbf16>, vector<8x96xf32> -> vector<8x96xf32>
    %c0_4 = arith.constant 0 : index
    %c0_5 = arith.constant 0 : index
    %5 = vector.load %arg3[%c0_4, %c0_5] : memref<1x96xf32, #tpu.memory_space<vmem>>, vector<1x96xf32>
    %6 = vector.broadcast %5 : vector<1x96xf32> to vector<8x96xf32>
    %7 = arith.addf %4, %6 : vector<8x96xf32>
    %8 = arith.truncf %7 : vector<8x96xf32> to vector<8x96xbf16>
    %9 = vector.extract_strided_slice %8 {offsets = [0, 0], sizes = [8, 8], strides = [1, 1]} : vector<8x96xbf16> to vector<8x8xbf16>
    %10 = vector.extract_strided_slice %8 {offsets = [0, 32], sizes = [8, 8], strides = [1, 1]} : vector<8x96xbf16> to vector<8x8xbf16>
    %11 = vector.extract_strided_slice %8 {offsets = [0, 64], sizes = [8, 8], strides = [1, 1]} : vector<8x96xbf16> to vector<8x8xbf16>
    "tpu.trace_start"() <{level = 10 : i32, message = "qd,kd->qk"}> : () -> ()
    %cst_6 = arith.constant dense<0.000000e+00> : vector<8x8xf32>
    %12 = tpu.matmul %9, %10, %cst_6 {dimension_numbers = #tpu.dot_dimension_numbers<[1], [1], [0], [0], [0, 0, 1, 0], [], []>} : vector<8x8xbf16>, vector<8x8xbf16>, vector<8x8xf32> -> vector<8x8xf32>
    "tpu.trace_stop"() : () -> ()
    %cst_7 = arith.constant 0.353553385 : f32
    %13 = vector.broadcast %cst_7 : f32 to vector<8x8xf32>
    %14 = arith.mulf %12, %13 : vector<8x8xf32>
    %cst_8 = arith.constant dense<0xFF800000> : vector<8xf32>
    %15 = vector.multi_reduction <maximumf>, %14, %cst_8 [1] : vector<8x8xf32> to vector<8xf32>
    %16 = vector.shape_cast %15 : vector<8xf32> to vector<8x1xf32>
    %17 = vector.broadcast %16 : vector<8x1xf32> to vector<8x8xf32>
    %18 = arith.subf %14, %17 : vector<8x8xf32>
    %19 = math.exp %18 : vector<8x8xf32>
    %cst_9 = arith.constant dense<0.000000e+00> : vector<8xf32>
    %20 = vector.multi_reduction <add>, %19, %cst_9 [1] : vector<8x8xf32> to vector<8xf32>
    %21 = vector.shape_cast %20 : vector<8xf32> to vector<8x1xf32>
    %22 = vector.broadcast %21 : vector<8x1xf32> to vector<8x8xf32>
    %23 = arith.divf %19, %22 : vector<8x8xf32>
    %24 = arith.truncf %23 : vector<8x8xf32> to vector<8x8xbf16>
    %cst_10 = arith.constant dense<0.000000e+00> : vector<8x8xf32>
    %25 = tpu.matmul %24, %11, %cst_10 {dimension_numbers = #tpu.dot_dimension_numbers<[1], [0], [0], [1], [0, 0, 1, 1], [], []>} : vector<8x8xbf16>, vector<8x8xbf16>, vector<8x8xf32> -> vector<8x8xf32>
    %26 = vector.extract_strided_slice %8 {offsets = [0, 8], sizes = [8, 8], strides = [1, 1]} : vector<8x96xbf16> to vector<8x8xbf16>
    %27 = vector.extract_strided_slice %8 {offsets = [0, 40], sizes = [8, 8], strides = [1, 1]} : vector<8x96xbf16> to vector<8x8xbf16>
    %28 = vector.extract_strided_slice %8 {offsets = [0, 72], sizes = [8, 8], strides = [1, 1]} : vector<8x96xbf16> to vector<8x8xbf16>
    "tpu.trace_start"() <{level = 10 : i32, message = "qd,kd->qk"}> : () -> ()
    %cst_11 = arith.constant dense<0.000000e+00> : vector<8x8xf32>
    %29 = tpu.matmul %26, %27, %cst_11 {dimension_numbers = #tpu.dot_dimension_numbers<[1], [1], [0], [0], [0, 0, 1, 0], [], []>} : vector<8x8xbf16>, vector<8x8xbf16>, vector<8x8xf32> -> vector<8x8xf32>
    "tpu.trace_stop"() : () -> ()
    %cst_12 = arith.constant 0.353553385 : f32
    %30 = vector.broadcast %cst_12 : f32 to vector<8x8xf32>
    %31 = arith.mulf %29, %30 : vector<8x8xf32>
    %cst_13 = arith.constant dense<0xFF800000> : vector<8xf32>
    %32 = vector.multi_reduction <maximumf>, %31, %cst_13 [1] : vector<8x8xf32> to vector<8xf32>
    %33 = vector.shape_cast %32 : vector<8xf32> to vector<8x1xf32>
    %34 = vector.broadcast %33 : vector<8x1xf32> to vector<8x8xf32>
    %35 = arith.subf %31, %34 : vector<8x8xf32>
    %36 = math.exp %35 : vector<8x8xf32>
    %cst_14 = arith.constant dense<0.000000e+00> : vector<8xf32>
    %37 = vector.multi_reduction <add>, %36, %cst_14 [1] : vector<8x8xf32> to vector<8xf32>
    %38 = vector.shape_cast %37 : vector<8xf32> to vector<8x1xf32>
    %39 = vector.broadcast %38 : vector<8x1xf32> to vector<8x8xf32>
    %40 = arith.divf %36, %39 : vector<8x8xf32>
    %41 = arith.truncf %40 : vector<8x8xf32> to vector<8x8xbf16>
    %cst_15 = arith.constant dense<0.000000e+00> : vector<8x8xf32>
    %42 = tpu.matmul %41, %28, %cst_15 {dimension_numbers = #tpu.dot_dimension_numbers<[1], [0], [0], [1], [0, 0, 1, 1], [], []>} : vector<8x8xbf16>, vector<8x8xbf16>, vector<8x8xf32> -> vector<8x8xf32>
    %43 = vector.extract_strided_slice %8 {offsets = [0, 16], sizes = [8, 8], strides = [1, 1]} : vector<8x96xbf16> to vector<8x8xbf16>
    %44 = vector.extract_strided_slice %8 {offsets = [0, 48], sizes = [8, 8], strides = [1, 1]} : vector<8x96xbf16> to vector<8x8xbf16>
    %45 = vector.extract_strided_slice %8 {offsets = [0, 80], sizes = [8, 8], strides = [1, 1]} : vector<8x96xbf16> to vector<8x8xbf16>
    "tpu.trace_start"() <{level = 10 : i32, message = "qd,kd->qk"}> : () -> ()
    %cst_16 = arith.constant dense<0.000000e+00> : vector<8x8xf32>
    %46 = tpu.matmul %43, %44, %cst_16 {dimension_numbers = #tpu.dot_dimension_numbers<[1], [1], [0], [0], [0, 0, 1, 0], [], []>} : vector<8x8xbf16>, vector<8x8xbf16>, vector<8x8xf32> -> vector<8x8xf32>
    "tpu.trace_stop"() : () -> ()
    %cst_17 = arith.constant 0.353553385 : f32
    %47 = vector.broadcast %cst_17 : f32 to vector<8x8xf32>
    %48 = arith.mulf %46, %47 : vector<8x8xf32>
    %cst_18 = arith.constant dense<0xFF800000> : vector<8xf32>
    %49 = vector.multi_reduction <maximumf>, %48, %cst_18 [1] : vector<8x8xf32> to vector<8xf32>
    %50 = vector.shape_cast %49 : vector<8xf32> to vector<8x1xf32>
    %51 = vector.broadcast %50 : vector<8x1xf32> to vector<8x8xf32>
    %52 = arith.subf %48, %51 : vector<8x8xf32>
    %53 = math.exp %52 : vector<8x8xf32>
    %cst_19 = arith.constant dense<0.000000e+00> : vector<8xf32>
    %54 = vector.multi_reduction <add>, %53, %cst_19 [1] : vector<8x8xf32> to vector<8xf32>
    %55 = vector.shape_cast %54 : vector<8xf32> to vector<8x1xf32>
    %56 = vector.broadcast %55 : vector<8x1xf32> to vector<8x8xf32>
    %57 = arith.divf %53, %56 : vector<8x8xf32>
    %58 = arith.truncf %57 : vector<8x8xf32> to vector<8x8xbf16>
    %cst_20 = arith.constant dense<0.000000e+00> : vector<8x8xf32>
    %59 = tpu.matmul %58, %45, %cst_20 {dimension_numbers = #tpu.dot_dimension_numbers<[1], [0], [0], [1], [0, 0, 1, 1], [], []>} : vector<8x8xbf16>, vector<8x8xbf16>, vector<8x8xf32> -> vector<8x8xf32>
    %60 = vector.extract_strided_slice %8 {offsets = [0, 24], sizes = [8, 8], strides = [1, 1]} : vector<8x96xbf16> to vector<8x8xbf16>
    %61 = vector.extract_strided_slice %8 {offsets = [0, 56], sizes = [8, 8], strides = [1, 1]} : vector<8x96xbf16> to vector<8x8xbf16>
    %62 = vector.extract_strided_slice %8 {offsets = [0, 88], sizes = [8, 8], strides = [1, 1]} : vector<8x96xbf16> to vector<8x8xbf16>
    "tpu.trace_start"() <{level = 10 : i32, message = "qd,kd->qk"}> : () -> ()
    %cst_21 = arith.constant dense<0.000000e+00> : vector<8x8xf32>
    %63 = tpu.matmul %60, %61, %cst_21 {dimension_numbers = #tpu.dot_dimension_numbers<[1], [1], [0], [0], [0, 0, 1, 0], [], []>} : vector<8x8xbf16>, vector<8x8xbf16>, vector<8x8xf32> -> vector<8x8xf32>
    "tpu.trace_stop"() : () -> ()
    %cst_22 = arith.constant 0.353553385 : f32
    %64 = vector.broadcast %cst_22 : f32 to vector<8x8xf32>
    %65 = arith.mulf %63, %64 : vector<8x8xf32>
    %cst_23 = arith.constant dense<0xFF800000> : vector<8xf32>
    %66 = vector.multi_reduction <maximumf>, %65, %cst_23 [1] : vector<8x8xf32> to vector<8xf32>
    %67 = vector.shape_cast %66 : vector<8xf32> to vector<8x1xf32>
    %68 = vector.broadcast %67 : vector<8x1xf32> to vector<8x8xf32>
    %69 = arith.subf %65, %68 : vector<8x8xf32>
    %70 = math.exp %69 : vector<8x8xf32>
    %cst_24 = arith.constant dense<0.000000e+00> : vector<8xf32>
    %71 = vector.multi_reduction <add>, %70, %cst_24 [1] : vector<8x8xf32> to vector<8xf32>
    %72 = vector.shape_cast %71 : vector<8xf32> to vector<8x1xf32>
    %73 = vector.broadcast %72 : vector<8x1xf32> to vector<8x8xf32>
    %74 = arith.divf %70, %73 : vector<8x8xf32>
    %75 = arith.truncf %74 : vector<8x8xf32> to vector<8x8xbf16>
    %cst_25 = arith.constant dense<0.000000e+00> : vector<8x8xf32>
    %76 = tpu.matmul %75, %62, %cst_25 {dimension_numbers = #tpu.dot_dimension_numbers<[1], [0], [0], [1], [0, 0, 1, 1], [], []>} : vector<8x8xbf16>, vector<8x8xbf16>, vector<8x8xf32> -> vector<8x8xf32>
    %77 = tpu.concatenate %25, %42, %59, %76 in 1 : vector<8x8xf32>, vector<8x8xf32>, vector<8x8xf32>, vector<8x8xf32> -> vector<8x32xf32>
    %78 = arith.truncf %77 : vector<8x32xf32> to vector<8x32xbf16>
    %c0_26 = arith.constant 0 : index
    %c0_27 = arith.constant 0 : index
    %79 = vector.load %arg4[%c0_26, %c0_27] : memref<32x32xbf16, #tpu.memory_space<vmem>>, vector<32x32xbf16>
    %cst_28 = arith.constant dense<0.000000e+00> : vector<8x32xf32>
    %80 = tpu.matmul %78, %79, %cst_28 {dimension_numbers = #tpu.dot_dimension_numbers<[1], [0], [0], [1], [0, 0, 1, 1], [], []>} : vector<8x32xbf16>, vector<32x32xbf16>, vector<8x32xf32> -> vector<8x32xf32>
    %c0_29 = arith.constant 0 : index
    %c0_30 = arith.constant 0 : index
    %81 = vector.load %arg5[%c0_29, %c0_30] : memref<1x32xf32, #tpu.memory_space<vmem>>, vector<1x32xf32>
    %82 = vector.broadcast %81 : vector<1x32xf32> to vector<8x32xf32>
    %83 = arith.addf %80, %82 : vector<8x32xf32>
    %84 = arith.addf %83, %1 : vector<8x32xf32>
    %c0_31 = arith.constant 0 : index
    %c0_32 = arith.constant 0 : index
    %85 = vector.load %arg6[%c0_31, %c0_32] : memref<1x32xf32, #tpu.memory_space<vmem>>, vector<1x32xf32>
    %c0_33 = arith.constant 0 : index
    %c0_34 = arith.constant 0 : index
    %86 = vector.load %arg7[%c0_33, %c0_34] : memref<1x32xf32, #tpu.memory_space<vmem>>, vector<1x32xf32>
    %cst_35 = arith.constant dense<0.000000e+00> : vector<8xf32>
    %87 = vector.multi_reduction <add>, %84, %cst_35 [1] : vector<8x32xf32> to vector<8xf32>
    %88 = vector.shape_cast %87 : vector<8xf32> to vector<8x1xf32>
    %cst_36 = arith.constant 3.200000e+01 : f32
    %89 = vector.broadcast %cst_36 : f32 to vector<8x1xf32>
    %90 = arith.divf %88, %89 : vector<8x1xf32>
    %91 = vector.broadcast %90 : vector<8x1xf32> to vector<8x32xf32>
    %92 = arith.subf %84, %91 : vector<8x32xf32>
    %93 = arith.mulf %92, %92 : vector<8x32xf32>
    %cst_37 = arith.constant dense<0.000000e+00> : vector<8xf32>
    %94 = vector.multi_reduction <add>, %93, %cst_37 [1] : vector<8x32xf32> to vector<8xf32>
    %95 = vector.shape_cast %94 : vector<8xf32> to vector<8x1xf32>
    %cst_38 = arith.constant 3.200000e+01 : f32
    %96 = vector.broadcast %cst_38 : f32 to vector<8x1xf32>
    %97 = arith.divf %95, %96 : vector<8x1xf32>
    %98 = vector.broadcast %90 : vector<8x1xf32> to vector<8x32xf32>
    %99 = arith.subf %84, %98 : vector<8x32xf32>
    %cst_39 = arith.constant 9.99999974E-6 : f32
    %100 = vector.broadcast %cst_39 : f32 to vector<8x1xf32>
    %101 = arith.addf %97, %100 : vector<8x1xf32>
    %102 = math.rsqrt %101 : vector<8x1xf32>
    %103 = vector.broadcast %102 : vector<8x1xf32> to vector<8x32xf32>
    %104 = arith.mulf %99, %103 : vector<8x32xf32>
    %105 = vector.broadcast %85 : vector<1x32xf32> to vector<8x32xf32>
    %106 = arith.mulf %104, %105 : vector<8x32xf32>
    %107 = vector.broadcast %86 : vector<1x32xf32> to vector<8x32xf32>
    %108 = arith.addf %106, %107 : vector<8x32xf32>
    %109 = arith.truncf %108 : vector<8x32xf32> to vector<8x32xbf16>
    %c0_40 = arith.constant 0 : index
    %c0_41 = arith.constant 0 : index
    %110 = vector.load %arg8[%c0_40, %c0_41] : memref<32x2048xbf16, #tpu.memory_space<vmem>>, vector<32x2048xbf16>
    %cst_42 = arith.constant dense<0.000000e+00> : vector<8x2048xf32>
    %111 = tpu.matmul %109, %110, %cst_42 {dimension_numbers = #tpu.dot_dimension_numbers<[1], [0], [0], [1], [0, 0, 1, 1], [], []>} : vector<8x32xbf16>, vector<32x2048xbf16>, vector<8x2048xf32> -> vector<8x2048xf32>
    %c0_43 = arith.constant 0 : index
    %c0_44 = arith.constant 0 : index
    %112 = vector.load %arg9[%c0_43, %c0_44] : memref<1x2048xf32, #tpu.memory_space<vmem>>, vector<1x2048xf32>
    %113 = vector.broadcast %112 : vector<1x2048xf32> to vector<8x2048xf32>
    %114 = arith.addf %111, %113 : vector<8x2048xf32>
    %cst_45 = arith.constant 0.000000e+00 : f32
    %115 = vector.broadcast %cst_45 : f32 to vector<8x2048xf32>
    %116 = arith.maximumf %114, %115 : vector<8x2048xf32>
    %117 = arith.truncf %116 : vector<8x2048xf32> to vector<8x2048xbf16>
    %c0_46 = arith.constant 0 : index
    %c0_47 = arith.constant 0 : index
    %118 = vector.load %arg10[%c0_46, %c0_47] : memref<2048x32xbf16, #tpu.memory_space<vmem>>, vector<2048x32xbf16>
    %cst_48 = arith.constant dense<0.000000e+00> : vector<8x32xf32>
    %119 = tpu.matmul %117, %118, %cst_48 {dimension_numbers = #tpu.dot_dimension_numbers<[1], [0], [0], [1], [0, 0, 1, 1], [], []>} : vector<8x2048xbf16>, vector<2048x32xbf16>, vector<8x32xf32> -> vector<8x32xf32>
    %c0_49 = arith.constant 0 : index
    %c0_50 = arith.constant 0 : index
    %120 = vector.load %arg11[%c0_49, %c0_50] : memref<1x32xf32, #tpu.memory_space<vmem>>, vector<1x32xf32>
    %121 = vector.broadcast %120 : vector<1x32xf32> to vector<8x32xf32>
    %122 = arith.addf %119, %121 : vector<8x32xf32>
    %123 = arith.addf %122, %108 : vector<8x32xf32>
    %c0_51 = arith.constant 0 : index
    %c0_52 = arith.constant 0 : index
    %124 = vector.load %arg12[%c0_51, %c0_52] : memref<1x32xf32, #tpu.memory_space<vmem>>, vector<1x32xf32>
    %c0_53 = arith.constant 0 : index
    %c0_54 = arith.constant 0 : index
    %125 = vector.load %arg13[%c0_53, %c0_54] : memref<1x32xf32, #tpu.memory_space<vmem>>, vector<1x32xf32>
    %cst_55 = arith.constant dense<0.000000e+00> : vector<8xf32>
    %126 = vector.multi_reduction <add>, %123, %cst_55 [1] : vector<8x32xf32> to vector<8xf32>
    %127 = vector.shape_cast %126 : vector<8xf32> to vector<8x1xf32>
    %cst_56 = arith.constant 3.200000e+01 : f32
    %128 = vector.broadcast %cst_56 : f32 to vector<8x1xf32>
    %129 = arith.divf %127, %128 : vector<8x1xf32>
    %130 = vector.broadcast %129 : vector<8x1xf32> to vector<8x32xf32>
    %131 = arith.subf %123, %130 : vector<8x32xf32>
    %132 = arith.mulf %131, %131 : vector<8x32xf32>
    %cst_57 = arith.constant dense<0.000000e+00> : vector<8xf32>
    %133 = vector.multi_reduction <add>, %132, %cst_57 [1] : vector<8x32xf32> to vector<8xf32>
    %134 = vector.shape_cast %133 : vector<8xf32> to vector<8x1xf32>
    %cst_58 = arith.constant 3.200000e+01 : f32
    %135 = vector.broadcast %cst_58 : f32 to vector<8x1xf32>
    %136 = arith.divf %134, %135 : vector<8x1xf32>
    %137 = vector.broadcast %129 : vector<8x1xf32> to vector<8x32xf32>
    %138 = arith.subf %123, %137 : vector<8x32xf32>
    %cst_59 = arith.constant 9.99999974E-6 : f32
    %139 = vector.broadcast %cst_59 : f32 to vector<8x1xf32>
    %140 = arith.addf %136, %139 : vector<8x1xf32>
    %141 = math.rsqrt %140 : vector<8x1xf32>
    %142 = vector.broadcast %141 : vector<8x1xf32> to vector<8x32xf32>
    %143 = arith.mulf %138, %142 : vector<8x32xf32>
    %144 = vector.broadcast %124 : vector<1x32xf32> to vector<8x32xf32>
    %145 = arith.mulf %143, %144 : vector<8x32xf32>
    %146 = vector.broadcast %125 : vector<1x32xf32> to vector<8x32xf32>
    %147 = arith.addf %145, %146 : vector<8x32xf32>
    %148 = arith.truncf %147 : vector<8x32xf32> to vector<8x32xbf16>
    %c0_60 = arith.constant 0 : index
    %c0_61 = arith.constant 0 : index
    %149 = vector.load %arg14[%c0_60, %c0_61] : memref<32x128xbf16, #tpu.memory_space<vmem>>, vector<32x128xbf16>
    %cst_62 = arith.constant dense<0.000000e+00> : vector<8x128xf32>
    %150 = tpu.matmul %148, %149, %cst_62 {dimension_numbers = #tpu.dot_dimension_numbers<[1], [0], [0], [1], [0, 0, 1, 1], [], []>} : vector<8x32xbf16>, vector<32x128xbf16>, vector<8x128xf32> -> vector<8x128xf32>
    %c0_63 = arith.constant 0 : index
    %c0_64 = arith.constant 0 : index
    %151 = vector.load %arg15[%c0_63, %c0_64] : memref<1x128xf32, #tpu.memory_space<vmem>>, vector<1x128xf32>
    %152 = vector.broadcast %151 : vector<1x128xf32> to vector<8x128xf32>
    %153 = arith.addf %150, %152 : vector<8x128xf32>
    %c0_65 = arith.constant 0 : index
    %c0_66 = arith.constant 0 : index
    %c0_67 = arith.constant 0 : index
    %154 = vector.load %arg16[%c0_65, %c0_66, %c0_67] : memref<1x8x128xf32, #tpu.memory_space<vmem>>, vector<1x8x128xf32>
    %155 = vector.shape_cast %154 : vector<1x8x128xf32> to vector<8x128xf32>
    %156 = vector.shape_cast %153 : vector<8x128xf32> to vector<1x8x128xf32>
    tpu.vector_store %arg16[%c0_65, %c0_66, %c0_67], %156 {strides = array<i32>} : memref<1x8x128xf32, #tpu.memory_space<vmem>>, vector<1x8x128xf32>,
    return
  }
  func.func @transform_0(%arg0: i32) -> (i32, i32, i32) {
    %c0_i32 = arith.constant 0 : i32
    %c0_i32_0 = arith.constant 0 : i32
    %c0_i32_1 = arith.constant 0 : i32
    return %arg0, %c0_i32, %c0_i32_0 : i32, i32, i32
  }
  func.func @transform_1(%arg0: i32) -> (i32, i32) {
    %c0_i32 = arith.constant 0 : i32
    %c0_i32_0 = arith.constant 0 : i32
    %c0_i32_1 = arith.constant 0 : i32
    return %c0_i32, %c0_i32_0 : i32, i32
  }
  func.func @transform_2(%arg0: i32) -> (i32, i32) {
    %c0_i32 = arith.constant 0 : i32
    %c0_i32_0 = arith.constant 0 : i32
    %c0_i32_1 = arith.constant 0 : i32
    return %c0_i32, %c0_i32_0 : i32, i32
  }
  func.func @transform_3(%arg0: i32) -> (i32, i32) {
    %c0_i32 = arith.constant 0 : i32
    %c0_i32_0 = arith.constant 0 : i32
    %c0_i32_1 = arith.constant 0 : i32
    return %c0_i32, %c0_i32_0 : i32, i32
  }
  func.func @transform_4(%arg0: i32) -> (i32, i32) {
    %c0_i32 = arith.constant 0 : i32
    %c0_i32_0 = arith.constant 0 : i32
    %c0_i32_1 = arith.constant 0 : i32
    return %c0_i32, %c0_i32_0 : i32, i32
  }
  func.func @transform_5(%arg0: i32) -> (i32, i32) {
    %c0_i32 = arith.constant 0 : i32
    %c0_i32_0 = arith.constant 0 : i32
    %c0_i32_1 = arith.constant 0 : i32
    return %c0_i32, %c0_i32_0 : i32, i32
  }
  func.func @transform_6(%arg0: i32) -> (i32, i32) {
    %c0_i32 = arith.constant 0 : i32
    %c0_i32_0 = arith.constant 0 : i32
    %c0_i32_1 = arith.constant 0 : i32
    return %c0_i32, %c0_i32_0 : i32, i32
  }
  func.func @transform_7(%arg0: i32) -> (i32, i32) {
    %c0_i32 = arith.constant 0 : i32
    %c0_i32_0 = arith.constant 0 : i32
    %c0_i32_1 = arith.constant 0 : i32
    return %c0_i32, %c0_i32_0 : i32, i32
  }
  func.func @transform_8(%arg0: i32) -> (i32, i32) {
    %c0_i32 = arith.constant 0 : i32
    %c0_i32_0 = arith.constant 0 : i32
    %c0_i32_1 = arith.constant 0 : i32
    return %c0_i32, %c0_i32_0 : i32, i32
  }
  func.func @transform_9(%arg0: i32) -> (i32, i32) {
    %c0_i32 = arith.constant 0 : i32
    %c0_i32_0 = arith.constant 0 : i32
    %c0_i32_1 = arith.constant 0 : i32
    return %c0_i32, %c0_i32_0 : i32, i32
  }
  func.func @transform_10(%arg0: i32) -> (i32, i32) {
    %c0_i32 = arith.constant 0 : i32
    %c0_i32_0 = arith.constant 0 : i32
    %c0_i32_1 = arith.constant 0 : i32
    return %c0_i32, %c0_i32_0 : i32, i32
  }
  func.func @transform_11(%arg0: i32) -> (i32, i32) {
    %c0_i32 = arith.constant 0 : i32
    %c0_i32_0 = arith.constant 0 : i32
    %c0_i32_1 = arith.constant 0 : i32
    return %c0_i32, %c0_i32_0 : i32, i32
  }
  func.func @transform_12(%arg0: i32) -> (i32, i32) {
    %c0_i32 = arith.constant 0 : i32
    %c0_i32_0 = arith.constant 0 : i32
    %c0_i32_1 = arith.constant 0 : i32
    return %c0_i32, %c0_i32_0 : i32, i32
  }
  func.func @transform_13(%arg0: i32) -> (i32, i32) {
    %c0_i32 = arith.constant 0 : i32
    %c0_i32_0 = arith.constant 0 : i32
    %c0_i32_1 = arith.constant 0 : i32
    return %c0_i32, %c0_i32_0 : i32, i32
  }
  func.func @transform_14(%arg0: i32) -> (i32, i32) {
    %c0_i32 = arith.constant 0 : i32
    %c0_i32_0 = arith.constant 0 : i32
    %c0_i32_1 = arith.constant 0 : i32
    return %c0_i32, %c0_i32_0 : i32, i32
  }
  func.func @transform_15(%arg0: i32) -> (i32, i32, i32) {
    %c0_i32 = arith.constant 0 : i32
    %c0_i32_0 = arith.constant 0 : i32
    %c0_i32_1 = arith.constant 0 : i32
    return %arg0, %c0_i32, %c0_i32_0 : i32, i32, i32
  }
}

</mosaic_0001>

<llo_original>
// kernel: tpu_custom_call.1
$region0: #{tpu_custom_call.1}
  #allocation0 [shape = 'u32[]', space=smem, size = 0x4, offset = 0x4, fixed_abs, tag = 'smem constant byte address 0x4 - core index']
  #allocation1 [shape = 'u32[144,128]{1,0:T(1,128)}', space=vmem, size = 0x12000, scoped, tag = 'internal scratch']
  %s0 = inlined_call_operand.vmem [shape: f32[2,8,32], index: 0, kind: input, shape index: {}]
  %s1 = inlined_call_operand.vmem [shape: bf16[32,96], index: 1, kind: input, shape index: {}]
  %s2 = inlined_call_operand.vmem [shape: f32[1,96], index: 2, kind: input, shape index: {}]
  %s3 = inlined_call_operand.vmem [shape: bf16[32,32], index: 3, kind: input, shape index: {}]
  %s4 = inlined_call_operand.vmem [shape: f32[1,32], index: 4, kind: input, shape index: {}]
  %s5 = inlined_call_operand.vmem [shape: f32[1,32], index: 5, kind: input, shape index: {}]
  %s6 = inlined_call_operand.vmem [shape: f32[1,32], index: 6, kind: input, shape index: {}]
  %s7 = inlined_call_operand.vmem [shape: bf16[32,2048], index: 7, kind: input, shape index: {}]
  %s8 = inlined_call_operand.vmem [shape: f32[1,2048], index: 8, kind: input, shape index: {}]
  %s9 = inlined_call_operand.vmem [shape: bf16[2048,32], index: 9, kind: input, shape index: {}]
  %s10 = inlined_call_operand.vmem [shape: f32[1,32], index: 10, kind: input, shape index: {}]
  %s11 = inlined_call_operand.vmem [shape: f32[1,32], index: 11, kind: input, shape index: {}]
  %s12 = inlined_call_operand.vmem [shape: f32[1,32], index: 12, kind: input, shape index: {}]
  %s13 = inlined_call_operand.vmem [shape: bf16[32,128], index: 13, kind: input, shape index: {}]
  %s14 = inlined_call_operand.vmem [shape: f32[1,128], index: 14, kind: input, shape index: {}]
  %s15 = inlined_call_operand.hbm [shape: f32[2,8,128], index: 15, kind: output, shape index: {}]
  %s16 = sld [smem:[#allocation0]]
  $region93: #{tpu_custom_call.1} parent=0
    _
  %s18 = ssub.s32 1, %s16
  %s19 = scalar_select 0, %s18, %s16
  $region1: #{tpu_custom_call.1} parent=0
    #allocation2 [shape = 'u8[8192]{0}', space=vmem, size = 0x2000, scoped, tag = 'output window, operand 0']
    #allocation3 [shape = 's32[2]{0}', space=sflag, size = 0x8, scoped, tag = 'scoped memory for tpu_custom_call.1']
    %20 = vsyncpa [#allocation3], 0
    %s21 = scalar_lea.sflag [#allocation3], 1
    %22 = vsyncpa %s21, 0
    loop: start=0, step=1, limit=4
    $region2: #{tpu_custom_call.1} parent=1 // loop_pre_header
      _
    $region3: #{tpu_custom_call.1} parent=1 // loop_header
      %s24 = sphi 0, %s28
      %p25 = scmp.ge.s32.totalorder %s24, 4
      %s34 = sphi 0, %s36
      %s37 = sphi 0, %s34
      %s38 = sphi 0, %s37
      %s54 = sphi 0, %s38
      %s58 = sphi 0, %s58
      %s60 = sphi 0, %s58
      %s61 = sphi 0, %s60
      %s75 = sphi 0, %s61
      %s79 = sphi 0, %s79
      %s81 = sphi 0, %s79
      %s82 = sphi 0, %s81
      %s96 = sphi 0, %s82
      %s100 = sphi 0, %s100
      %s102 = sphi 0, %s100
      %s103 = sphi 0, %s102
      %s117 = sphi 0, %s103
      %s121 = sphi 0, %s121
      %s123 = sphi 0, %s121
      %s124 = sphi 0, %s123
      %s138 = sphi 0, %s124
      %s142 = sphi 0, %s142
      %s144 = sphi 0, %s142
      %s145 = sphi 0, %s144
      %s159 = sphi 0, %s145
      %s163 = sphi 0, %s163
      %s165 = sphi 0, %s163
      %s166 = sphi 0, %s165
      %s180 = sphi 0, %s166
      %s184 = sphi 0, %s184
      %s186 = sphi 0, %s184
      %s187 = sphi 0, %s186
      %s201 = sphi 0, %s187
      %s205 = sphi 0, %s205
      %s207 = sphi 0, %s205
      %s208 = sphi 0, %s207
      %s222 = sphi 0, %s208
      %s226 = sphi 0, %s226
      %s228 = sphi 0, %s226
      %s229 = sphi 0, %s228
      %s243 = sphi 0, %s229
      %s247 = sphi 0, %s247
      %s249 = sphi 0, %s247
      %s250 = sphi 0, %s249
      %s264 = sphi 0, %s250
      %s268 = sphi 0, %s268
      %s270 = sphi 0, %s268
      %s271 = sphi 0, %s270
      %s285 = sphi 0, %s271
      %s289 = sphi 0, %s289
      %s291 = sphi 0, %s289
      %s292 = sphi 0, %s291
      %s306 = sphi 0, %s292
      %s310 = sphi 0, %s310
      %s312 = sphi 0, %s310
      %s313 = sphi 0, %s312
      %s327 = sphi 0, %s313
      %s331 = sphi 0, %s331
      %s333 = sphi 0, %s331
      %s334 = sphi 0, %s333
      %s348 = sphi 0, %s334
      %s354 = sphi 0, %s356
      %s357 = sphi 0, %s354
      %s358 = sphi 0, %s357
      %s374 = sphi 0, %s358
    $region4: #{tpu_custom_call.1} parent=1 // loop_header_branch
      %27 = sbr.rel (%p25) target = $region8
    $region5: #{tpu_custom_call.1} parent=1 // loop_body
      %s29 = ssub.s32 %s24, 1
      %s30 = ssub.s32 %s24, 2
      %s31 = sadd.s32 %s24, 1
      %s32 = ssub.s32 %s24, %s31
      %p33 = scmp.eq.s32.totalorder %s32, 0
      %s35 = sadd.s32 %s34, 1
      %s36 = scalar_select %p33, %s34, %s35
      %p39 = pneg %p33
      %p40 = scmp.eq.s32.totalorder %s24, 1
      %p41 = por %p39, %p40
      %p42 = scmp.ne.s32.totalorder %s34, %s37
      %p43 = scmp.eq.s32.totalorder %s24, 0
      %p44 = por %p42, %p43
      %p45 = scmp.ne.s32.totalorder %s34, %s37
      %p46 = scmp.eq.s32.totalorder %s29, 1
      %p47 = por %p45, %p46
      %p48 = scmp.ne.s32.totalorder %s37, %s38
      %p49 = scmp.eq.s32.totalorder %s29, 0
      %p50 = por %p48, %p49
      %p51 = scmp.ne.s32.totalorder %s37, %s38
      %p52 = scmp.eq.s32.totalorder %s30, 1
      %p53 = por %p51, %p52
      %p55 = scmp.ne.s32.totalorder %s38, %s54
      %p56 = scmp.eq.s32.totalorder %s30, 0
      %p57 = por %p55, %p56
      %s59 = sadd.s32 %s58, 1
      %p62 = scmp.eq.s32.totalorder %s24, 1
      %p63 = scmp.ne.s32.totalorder %s58, %s60
      %p64 = scmp.eq.s32.totalorder %s24, 0
      %p65 = por %p63, %p64
      %p66 = scmp.ne.s32.totalorder %s58, %s60
      %p67 = scmp.eq.s32.totalorder %s29, 1
      %p68 = por %p66, %p67
      %p69 = scmp.ne.s32.totalorder %s60, %s61
      %p70 = scmp.eq.s32.totalorder %s29, 0
      %p71 = por %p69, %p70
      %p72 = scmp.ne.s32.totalorder %s60, %s61
      %p73 = scmp.eq.s32.totalorder %s30, 1
      %p74 = por %p72, %p73
      %p76 = scmp.ne.s32.totalorder %s61, %s75
      %p77 = scmp.eq.s32.totalorder %s30, 0
      %p78 = por %p76, %p77
      %s80 = sadd.s32 %s79, 1
      %p83 = scmp.eq.s32.totalorder %s24, 1
      %p84 = scmp.ne.s32.totalorder %s79, %s81
      %p85 = scmp.eq.s32.totalorder %s24, 0
      %p86 = por %p84, %p85
      %p87 = scmp.ne.s32.totalorder %s79, %s81
      %p88 = scmp.eq.s32.totalorder %s29, 1
      %p89 = por %p87, %p88
      %p90 = scmp.ne.s32.totalorder %s81, %s82
      %p91 = scmp.eq.s32.totalorder %s29, 0
      %p92 = por %p90, %p91
      %p93 = scmp.ne.s32.totalorder %s81, %s82
      %p94 = scmp.eq.s32.totalorder %s30, 1
      %p95 = por %p93, %p94
      %p97 = scmp.ne.s32.totalorder %s82, %s96
      %p98 = scmp.eq.s32.totalorder %s30, 0
      %p99 = por %p97, %p98
      %s101 = sadd.s32 %s100, 1
      %p104 = scmp.eq.s32.totalorder %s24, 1
      %p105 = scmp.ne.s32.totalorder %s100, %s102
      %p106 = scmp.eq.s32.totalorder %s24, 0
      %p107 = por %p105, %p106
      %p108 = scmp.ne.s32.totalorder %s100, %s102
      %p109 = scmp.eq.s32.totalorder %s29, 1
      %p110 = por %p108, %p109
      %p111 = scmp.ne.s32.totalorder %s102, %s103
      %p112 = scmp.eq.s32.totalorder %s29, 0
      %p113 = por %p111, %p112
      %p114 = scmp.ne.s32.totalorder %s102, %s103
      %p115 = scmp.eq.s32.totalorder %s30, 1
      %p116 = por %p114, %p115
      %p118 = scmp.ne.s32.totalorder %s103, %s117
      %p119 = scmp.eq.s32.totalorder %s30, 0
      %p120 = por %p118, %p119
      %s122 = sadd.s32 %s121, 1
      %p125 = scmp.eq.s32.totalorder %s24, 1
      %p126 = scmp.ne.s32.totalorder %s121, %s123
      %p127 = scmp.eq.s32.totalorder %s24, 0
      %p128 = por %p126, %p127
      %p129 = scmp.ne.s32.totalorder %s121, %s123
      %p130 = scmp.eq.s32.totalorder %s29, 1
      %p131 = por %p129, %p130
      %p132 = scmp.ne.s32.totalorder %s123, %s124
      %p133 = scmp.eq.s32.totalorder %s29, 0
      %p134 = por %p132, %p133
      %p135 = scmp.ne.s32.totalorder %s123, %s124
      %p136 = scmp.eq.s32.totalorder %s30, 1
      %p137 = por %p135, %p136
      %p139 = scmp.ne.s32.totalorder %s124, %s138
      %p140 = scmp.eq.s32.totalorder %s30, 0
      %p141 = por %p139, %p140
      %s143 = sadd.s32 %s142, 1
      %p146 = scmp.eq.s32.totalorder %s24, 1
      %p147 = scmp.ne.s32.totalorder %s142, %s144
      %p148 = scmp.eq.s32.totalorder %s24, 0
      %p149 = por %p147, %p148
      %p150 = scmp.ne.s32.totalorder %s142, %s144
      %p151 = scmp.eq.s32.totalorder %s29, 1
      %p152 = por %p150, %p151
      %p153 = scmp.ne.s32.totalorder %s144, %s145
      %p154 = scmp.eq.s32.totalorder %s29, 0
      %p155 = por %p153, %p154
      %p156 = scmp.ne.s32.totalorder %s144, %s145
      %p157 = scmp.eq.s32.totalorder %s30, 1
      %p158 = por %p156, %p157
      %p160 = scmp.ne.s32.totalorder %s145, %s159
      %p161 = scmp.eq.s32.totalorder %s30, 0
      %p162 = por %p160, %p161
      %s164 = sadd.s32 %s163, 1
      %p167 = scmp.eq.s32.totalorder %s24, 1
      %p168 = scmp.ne.s32.totalorder %s163, %s165
      %p169 = scmp.eq.s32.totalorder %s24, 0
      %p170 = por %p168, %p169
      %p171 = scmp.ne.s32.totalorder %s163, %s165
      %p172 = scmp.eq.s32.totalorder %s29, 1
      %p173 = por %p171, %p172
      %p174 = scmp.ne.s32.totalorder %s165, %s166
      %p175 = scmp.eq.s32.totalorder %s29, 0
      %p176 = por %p174, %p175
      %p177 = scmp.ne.s32.totalorder %s165, %s166
      %p178 = scmp.eq.s32.totalorder %s30, 1
      %p179 = por %p177, %p178
      %p181 = scmp.ne.s32.totalorder %s166, %s180
      %p182 = scmp.eq.s32.totalorder %s30, 0
      %p183 = por %p181, %p182
      %s185 = sadd.s32 %s184, 1
      %p188 = scmp.eq.s32.totalorder %s24, 1
      %p189 = scmp.ne.s32.totalorder %s184, %s186
      %p190 = scmp.eq.s32.totalorder %s24, 0
      %p191 = por %p189, %p190
      %p192 = scmp.ne.s32.totalorder %s184, %s186
      %p193 = scmp.eq.s32.totalorder %s29, 1
      %p194 = por %p192, %p193
      %p195 = scmp.ne.s32.totalorder %s186, %s187
      %p196 = scmp.eq.s32.totalorder %s29, 0
      %p197 = por %p195, %p196
      %p198 = scmp.ne.s32.totalorder %s186, %s187
      %p199 = scmp.eq.s32.totalorder %s30, 1
      %p200 = por %p198, %p199
      %p202 = scmp.ne.s32.totalorder %s187, %s201
      %p203 = scmp.eq.s32.totalorder %s30, 0
      %p204 = por %p202, %p203
      %s206 = sadd.s32 %s205, 1
      %p209 = scmp.eq.s32.totalorder %s24, 1
      %p210 = scmp.ne.s32.totalorder %s205, %s207
      %p211 = scmp.eq.s32.totalorder %s24, 0
      %p212 = por %p210, %p211
      %p213 = scmp.ne.s32.totalorder %s205, %s207
      %p214 = scmp.eq.s32.totalorder %s29, 1
      %p215 = por %p213, %p214
      %p216 = scmp.ne.s32.totalorder %s207, %s208
      %p217 = scmp.eq.s32.totalorder %s29, 0
      %p218 = por %p216, %p217
      %p219 = scmp.ne.s32.totalorder %s207, %s208
      %p220 = scmp.eq.s32.totalorder %s30, 1
      %p221 = por %p219, %p220
      %p223 = scmp.ne.s32.totalorder %s208, %s222
      %p224 = scmp.eq.s32.totalorder %s30, 0
      %p225 = por %p223, %p224
      %s227 = sadd.s32 %s226, 1
      %p230 = scmp.eq.s32.totalorder %s24, 1
      %p231 = scmp.ne.s32.totalorder %s226, %s228
      %p232 = scmp.eq.s32.totalorder %s24, 0
      %p233 = por %p231, %p232
      %p234 = scmp.ne.s32.totalorder %s226, %s228
      %p235 = scmp.eq.s32.totalorder %s29, 1
      %p236 = por %p234, %p235
      %p237 = scmp.ne.s32.totalorder %s228, %s229
      %p238 = scmp.eq.s32.totalorder %s29, 0
      %p239 = por %p237, %p238
      %p240 = scmp.ne.s32.totalorder %s228, %s229
      %p241 = scmp.eq.s32.totalorder %s30, 1
      %p242 = por %p240, %p241
      %p244 = scmp.ne.s32.totalorder %s229, %s243
      %p245 = scmp.eq.s32.totalorder %s30, 0
      %p246 = por %p244, %p245
      %s248 = sadd.s32 %s247, 1
      %p251 = scmp.eq.s32.totalorder %s24, 1
      %p252 = scmp.ne.s32.totalorder %s247, %s249
      %p253 = scmp.eq.s32.totalorder %s24, 0
      %p254 = por %p252, %p253
      %p255 = scmp.ne.s32.totalorder %s247, %s249
      %p256 = scmp.eq.s32.totalorder %s29, 1
      %p257 = por %p255, %p256
      %p258 = scmp.ne.s32.totalorder %s249, %s250
      %p259 = scmp.eq.s32.totalorder %s29, 0
      %p260 = por %p258, %p259
      %p261 = scmp.ne.s32.totalorder %s249, %s250
      %p262 = scmp.eq.s32.totalorder %s30, 1
      %p263 = por %p261, %p262
      %p265 = scmp.ne.s32.totalorder %s250, %s264
      %p266 = scmp.eq.s32.totalorder %s30, 0
      %p267 = por %p265, %p266
      %s269 = sadd.s32 %s268, 1
      %p272 = scmp.eq.s32.totalorder %s24, 1
      %p273 = scmp.ne.s32.totalorder %s268, %s270
      %p274 = scmp.eq.s32.totalorder %s24, 0
      %p275 = por %p273, %p274
      %p276 = scmp.ne.s32.totalorder %s268, %s270
      %p277 = scmp.eq.s32.totalorder %s29, 1
      %p278 = por %p276, %p277
      %p279 = scmp.ne.s32.totalorder %s270, %s271
      %p280 = scmp.eq.s32.totalorder %s29, 0
      %p281 = por %p279, %p280
      %p282 = scmp.ne.s32.totalorder %s270, %s271
      %p283 = scmp.eq.s32.totalorder %s30, 1
      %p284 = por %p282, %p283
      %p286 = scmp.ne.s32.totalorder %s271, %s285
      %p287 = scmp.eq.s32.totalorder %s30, 0
      %p288 = por %p286, %p287
      %s290 = sadd.s32 %s289, 1
      %p293 = scmp.eq.s32.totalorder %s24, 1
      %p294 = scmp.ne.s32.totalorder %s289, %s291
      %p295 = scmp.eq.s32.totalorder %s24, 0
      %p296 = por %p294, %p295
      %p297 = scmp.ne.s32.totalorder %s289, %s291
      %p298 = scmp.eq.s32.totalorder %s29, 1
      %p299 = por %p297, %p298
      %p300 = scmp.ne.s32.totalorder %s291, %s292
      %p301 = scmp.eq.s32.totalorder %s29, 0
      %p302 = por %p300, %p301
      %p303 = scmp.ne.s32.totalorder %s291, %s292
      %p304 = scmp.eq.s32.totalorder %s30, 1
      %p305 = por %p303, %p304
      %p307 = scmp.ne.s32.totalorder %s292, %s306
      %p308 = scmp.eq.s32.totalorder %s30, 0
      %p309 = por %p307, %p308
      %s311 = sadd.s32 %s310, 1
      %p314 = scmp.eq.s32.totalorder %s24, 1
      %p315 = scmp.ne.s32.totalorder %s310, %s312
      %p316 = scmp.eq.s32.totalorder %s24, 0
      %p317 = por %p315, %p316
      %p318 = scmp.ne.s32.totalorder %s310, %s312
      %p319 = scmp.eq.s32.totalorder %s29, 1
      %p320 = por %p318, %p319
      %p321 = scmp.ne.s32.totalorder %s312, %s313
      %p322 = scmp.eq.s32.totalorder %s29, 0
      %p323 = por %p321, %p322
      %p324 = scmp.ne.s32.totalorder %s312, %s313
      %p325 = scmp.eq.s32.totalorder %s30, 1
      %p326 = por %p324, %p325
      %p328 = scmp.ne.s32.totalorder %s313, %s327
      %p329 = scmp.eq.s32.totalorder %s30, 0
      %p330 = por %p328, %p329
      %s332 = sadd.s32 %s331, 1
      %p335 = scmp.eq.s32.totalorder %s24, 1
      %p336 = scmp.ne.s32.totalorder %s331, %s333
      %p337 = scmp.eq.s32.totalorder %s24, 0
      %p338 = por %p336, %p337
      %p339 = scmp.ne.s32.totalorder %s331, %s333
      %p340 = scmp.eq.s32.totalorder %s29, 1
      %p341 = por %p339, %p340
      %p342 = scmp.ne.s32.totalorder %s333, %s334
      %p343 = scmp.eq.s32.totalorder %s29, 0
      %p344 = por %p342, %p343
      %p345 = scmp.ne.s32.totalorder %s333, %s334
      %p346 = scmp.eq.s32.totalorder %s30, 1
      %p347 = por %p345, %p346
      %p349 = scmp.ne.s32.totalorder %s334, %s348
      %p350 = scmp.eq.s32.totalorder %s30, 0
      %p351 = por %p349, %p350
      %s352 = ssub.s32 %s24, %s31
      %p353 = scmp.eq.s32.totalorder %s352, 0
      %s355 = sadd.s32 %s354, 1
      %s356 = scalar_select %p353, %s354, %s355
      %p359 = pneg %p353
      %p360 = scmp.eq.s32.totalorder %s24, 1
      %p361 = por %p359, %p360
      %p362 = scmp.ne.s32.totalorder %s354, %s357
      %p363 = scmp.eq.s32.totalorder %s24, 0
      %p364 = por %p362, %p363
      %p365 = scmp.ne.s32.totalorder %s354, %s357
      %p366 = scmp.eq.s32.totalorder %s29, 1
      %p367 = por %p365, %p366
      %p368 = scmp.ne.s32.totalorder %s357, %s358
      %p369 = scmp.eq.s32.totalorder %s29, 0
      %p370 = por %p368, %p369
      %p371 = scmp.ne.s32.totalorder %s357, %s358
      %p372 = scmp.eq.s32.totalorder %s30, 1
      %p373 = por %p371, %p372
      %p375 = scmp.ne.s32.totalorder %s358, %s374
      %p376 = scmp.eq.s32.totalorder %s30, 0
      %p377 = por %p375, %p376
      %p378 = scmp.le.s32.totalorder 1, %s24
      %p379 = scmp.lt.s32.totalorder %s24, 3
      %p380 = pnand %p378, %p379
      %p381 = pneg %p380
      // Predicated region
      $region9: #{tpu_custom_call.1} parent=5 // pred_check
        _
      $region10: #{tpu_custom_call.1} parent=5 // pred_check_branch
        %383 = sbr.rel (%p380) target = $region12
      $region11: #{tpu_custom_call.1} parent=5 // pred_region
        %s384 = ssub.s32 %s24, 1
        // Predicated region
        $region13: #{tpu_custom_call.1} parent=11 // pred_check
          %p385 = pneg %p71
        $region14: #{tpu_custom_call.1} parent=11 // pred_check_branch
          %387 = sbr.rel (%p385) target = $region16
        $region15: #{tpu_custom_call.1} parent=11 // pred_region
          _
        $region16: #{tpu_custom_call.1} parent=11 // pred_fallthru
          _
        // Predicated region
        $region17: #{tpu_custom_call.1} parent=11 // pred_check
          %p388 = pneg %p92
        $region18: #{tpu_custom_call.1} parent=11 // pred_check_branch
          %390 = sbr.rel (%p388) target = $region20
        $region19: #{tpu_custom_call.1} parent=11 // pred_region
          _
        $region20: #{tpu_custom_call.1} parent=11 // pred_fallthru
          _
        // Predicated region
        $region21: #{tpu_custom_call.1} parent=11 // pred_check
          %p391 = pneg %p113
        $region22: #{tpu_custom_call.1} parent=11 // pred_check_branch
          %393 = sbr.rel (%p391) target = $region24
        $region23: #{tpu_custom_call.1} parent=11 // pred_region
          _
        $region24: #{tpu_custom_call.1} parent=11 // pred_fallthru
          _
        // Predicated region
        $region25: #{tpu_custom_call.1} parent=11 // pred_check
          %p394 = pneg %p134
        $region26: #{tpu_custom_call.1} parent=11 // pred_check_branch
          %396 = sbr.rel (%p394) target = $region28
        $region27: #{tpu_custom_call.1} parent=11 // pred_region
          _
        $region28: #{tpu_custom_call.1} parent=11 // pred_fallthru
          _
        // Predicated region
        $region29: #{tpu_custom_call.1} parent=11 // pred_check
          %p397 = pneg %p155
        $region30: #{tpu_custom_call.1} parent=11 // pred_check_branch
          %399 = sbr.rel (%p397) target = $region32
        $region31: #{tpu_custom_call.1} parent=11 // pred_region
          _
        $region32: #{tpu_custom_call.1} parent=11 // pred_fallthru
          _
        // Predicated region
        $region33: #{tpu_custom_call.1} parent=11 // pred_check
          %p400 = pneg %p176
        $region34: #{tpu_custom_call.1} parent=11 // pred_check_branch
          %402 = sbr.rel (%p400) target = $region36
        $region35: #{tpu_custom_call.1} parent=11 // pred_region
          _
        $region36: #{tpu_custom_call.1} parent=11 // pred_fallthru
          _
        // Predicated region
        $region37: #{tpu_custom_call.1} parent=11 // pred_check
          %p403 = pneg %p197
        $region38: #{tpu_custom_call.1} parent=11 // pred_check_branch
          %405 = sbr.rel (%p403) target = $region40
        $region39: #{tpu_custom_call.1} parent=11 // pred_region
          _
        $region40: #{tpu_custom_call.1} parent=11 // pred_fallthru
          _
        // Predicated region
        $region41: #{tpu_custom_call.1} parent=11 // pred_check
          %p406 = pneg %p218
        $region42: #{tpu_custom_call.1} parent=11 // pred_check_branch
          %408 = sbr.rel (%p406) target = $region44
        $region43: #{tpu_custom_call.1} parent=11 // pred_region
          _
        $region44: #{tpu_custom_call.1} parent=11 // pred_fallthru
          _
        // Predicated region
        $region45: #{tpu_custom_call.1} parent=11 // pred_check
          %p409 = pneg %p239
        $region46: #{tpu_custom_call.1} parent=11 // pred_check_branch
          %411 = sbr.rel (%p409) target = $region48
        $region47: #{tpu_custom_call.1} parent=11 // pred_region
          _
        $region48: #{tpu_custom_call.1} parent=11 // pred_fallthru
          _
        // Predicated region
        $region49: #{tpu_custom_call.1} parent=11 // pred_check
          %p412 = pneg %p260
        $region50: #{tpu_custom_call.1} parent=11 // pred_check_branch
          %414 = sbr.rel (%p412) target = $region52
        $region51: #{tpu_custom_call.1} parent=11 // pred_region
          _
        $region52: #{tpu_custom_call.1} parent=11 // pred_fallthru
          _
        // Predicated region
        $region53: #{tpu_custom_call.1} parent=11 // pred_check
          %p415 = pneg %p281
        $region54: #{tpu_custom_call.1} parent=11 // pred_check_branch
          %417 = sbr.rel (%p415) target = $region56
        $region55: #{tpu_custom_call.1} parent=11 // pred_region
          _
        $region56: #{tpu_custom_call.1} parent=11 // pred_fallthru
          _
        // Predicated region
        $region57: #{tpu_custom_call.1} parent=11 // pred_check
          %p418 = pneg %p302
        $region58: #{tpu_custom_call.1} parent=11 // pred_check_branch
          %420 = sbr.rel (%p418) target = $region60
        $region59: #{tpu_custom_call.1} parent=11 // pred_region
          _
        $region60: #{tpu_custom_call.1} parent=11 // pred_fallthru
          _
        // Predicated region
        $region61: #{tpu_custom_call.1} parent=11 // pred_check
          %p421 = pneg %p323
        $region62: #{tpu_custom_call.1} parent=11 // pred_check_branch
          %423 = sbr.rel (%p421) target = $region64
        $region63: #{tpu_custom_call.1} parent=11 // pred_region
          _
        $region64: #{tpu_custom_call.1} parent=11 // pred_fallthru
          _
        // Predicated region
        $region65: #{tpu_custom_call.1} parent=11 // pred_check
          %p424 = pneg %p344
        $region66: #{tpu_custom_call.1} parent=11 // pred_check_branch
          %426 = sbr.rel (%p424) target = $region68
        $region67: #{tpu_custom_call.1} parent=11 // pred_region
          _
        $region68: #{tpu_custom_call.1} parent=11 // pred_fallthru
          _
      $region12: #{tpu_custom_call.1} parent=5 // pred_fallthru
        _
      %p427 = scmp.lt.s32.totalorder %s24, 2
      // Predicated region
      $region69: #{tpu_custom_call.1} parent=5 // pred_check
        %p428 = pneg %p427
      $region70: #{tpu_custom_call.1} parent=5 // pred_check_branch
        %430 = sbr.rel (%p428) target = $region72
      $region71: #{tpu_custom_call.1} parent=5 // pred_region
        // Predicated region
        $region73: #{tpu_custom_call.1} parent=71 // pred_check
          %p431 = pneg %p44
        $region74: #{tpu_custom_call.1} parent=71 // pred_check_branch
          %433 = sbr.rel (%p431) target = $region76
        $region75: #{tpu_custom_call.1} parent=71 // pred_region
          %p434 = scmp.lt.s32.totalorder %s24, 1
          %s435 = scalar_select %p434, %s24, 1
          %s436 = smul.addr %s435, 8
          %s437 = scalar_lea.vmem %s0, %s436
        $region76: #{tpu_custom_call.1} parent=71 // pred_fallthru
          _
      $region72: #{tpu_custom_call.1} parent=5 // pred_fallthru
        _
      %p438 = scmp.le.s32.totalorder 1, %s24
      %p439 = scmp.lt.s32.totalorder %s24, 3
      %p440 = pnand %p438, %p439
      %p441 = pneg %p440
      // Predicated region
      $region77: #{tpu_custom_call.1} parent=5 // pred_check
        _
      $region78: #{tpu_custom_call.1} parent=5 // pred_check_branch
        %443 = sbr.rel (%p440) target = $region80
      $region79: #{tpu_custom_call.1} parent=5 // pred_region
        %s444 = ssub.s32 %s24, 1
        %p445 = scmp.lt.s32.totalorder %s29, 1
        %s446 = scalar_select %p445, %s29, 1
        %s447 = smul.addr %s446, 8
        %s448 = scalar_lea.vmem %s0, %s447
        %p449 = pneg %p50
        %p450 = pneg %p47
        %p451 = pneg %p71
        %p452 = pneg %p68
        %p453 = pneg %p92
        %p454 = pneg %p89
        %p455 = pneg %p113
        %p456 = pneg %p110
        %p457 = pneg %p134
        %p458 = pneg %p131
        %p459 = pneg %p155
        %p460 = pneg %p152
        %p461 = pneg %p176
        %p462 = pneg %p173
        %p463 = pneg %p197
        %p464 = pneg %p194
        %p465 = pneg %p218
        %p466 = pneg %p215
        %p467 = pneg %p239
        %p468 = pneg %p236
        %p469 = pneg %p260
        %p470 = pneg %p257
        %p471 = pneg %p281
        %p472 = pneg %p278
        %p473 = pneg %p302
        %p474 = pneg %p299
        %p475 = pneg %p323
        %p476 = pneg %p320
        %p477 = pneg %p344
        %p478 = pneg %p341
        %p479 = pneg %p370
        %p480 = pneg %p367
        %s481 = sand.u32 %s357, 1
        %s482 = scalar_lea.sflag [#allocation3], %s481
        %s483 = sand.u32 %s357, 1
        %s484 = smul.addr %s483, 8
        %s485 = scalar_lea.vmem [#allocation2], %s484
        %p486 = scmp.lt.s32.totalorder %s29, 1
        %s487 = scalar_select %p486, %s29, 1
        %s488 = smul.addr %s487, 8
        %s489 = scalar_lea.vmem %s0, %s488
        %v491 = vld [vmem:[%s489] sm:$0xff]
        %v492 = vpack.c.bf16 %v491, %v491
        %v493 = vld [vmem:[%s1] sm:$0xf]
        %v494 = vld [vmem:[%s1 + $0x4] sm:$0xf]
        %v495 = vld [vmem:[%s1 + $0x8] sm:$0xf]
        %v496 = vld [vmem:[%s1 + $0xc] sm:$0xf]
        %v497 = vld [vmem:[%s2] sm:$0x1]
        %v499 = vlaneseq
        %v500 = vshrl.u32 %v499, 7
        %v501 = vsub.s32 0, %v500
        %v502 = vrot.slane %v497, %v501
        %v508 = vunpack.c.l.b16 %v493
        %v509 = vunpack.c.l.b16 %v494
        %v510 = vunpack.c.l.b16 %v495
        %v511 = vunpack.c.l.b16 %v496
        %v512 = vpack.c.b16 %v509, %v508
        %v513 = vpack.c.b16 %v511, %v510
        %vm516 = vcmask 261120
        %v518 = vsel %vm516, %v492, 0
        %520 = vmatprep.subr.bf16.mxu0 0
        %521 = vmatpush1.bf16.msra.mxu0 %v512
        %522 = vmatprep.subr.bf16.mxu0 0
        %523 = vmatpush1.bf16.msra.mxu0 %v513
        %524 = vmatprep.subr.bf16.mxu0 0
        %525 = vmatpush1.bf16.msra.mxu0 0
        %526 = vmatprep.subr.bf16.mxu0 0
        %527 = vmatpush1.bf16.msra.mxu0 0
        %528 = vmatprep.subr.bf16.mxu0 0
        %529 = vmatpush1.bf16.msra.mxu0 0
        %530 = vmatprep.subr.bf16.mxu0 0
        %531 = vmatpush1.bf16.msra.mxu0 0
        %532 = vmatprep.subr.bf16.mxu0 0
        %533 = vmatpush1.bf16.msra.mxu0 0
        %534 = vmatprep.subr.bf16.mxu0 0
        %535 = vmatpush1.bf16.msra.mxu0 0
        %536 = vmatprep.subr.bf16.mxu0 0
        %537 = vmatpush1.bf16.msra.mxu0 0
        %538 = vmatprep.subr.bf16.mxu0 0
        %539 = vmatpush1.bf16.msra.mxu0 0
        %540 = vmatprep.subr.bf16.mxu0 0
        %541 = vmatpush1.bf16.msra.mxu0 0
        %542 = vmatprep.subr.bf16.mxu0 0
        %543 = vmatpush1.bf16.msra.mxu0 0
        %544 = vmatprep.subr.bf16.mxu0 0
        %545 = vmatpush1.bf16.msra.mxu0 0
        %546 = vmatprep.subr.bf16.mxu0 0
        %547 = vmatpush1.bf16.msra.mxu0 0
        %548 = vmatprep.subr.bf16.mxu0 0
        %549 = vmatpush1.bf16.msra.mxu0 0
        %550 = vmatprep.subr.bf16.mxu0 0
        %551 = vmatpush1.bf16.msra.mxu0 0
        %552 = vmatprep.mubr.bf16.mxu0 0
        %553 = vmatmul.mubr.bf16.gmra.mrb[0].mxu0 %v518
        %v554 = vpop.f32.mrb[0].mxu0
        %v555 = vadd.f32 %v502, %v554
        %v556 = vpop.f32.mrb[0].mxu0
        %v557 = vpop.f32.mrb[0].mxu0
        %v558 = vpop.f32.mrb[0].mxu0
        %559 = vdwg.mxu0
        %v560 = vpack.c.bf16 %v555, %v555
        %562 = vrot.lane.b32.xlu0 %v560, 96
        %v563 = vpop.permute.xlu0 %562
        %vm564 = vcmask 64512
        %v566 = vsel %vm564, %v560, 0
        %v569 = vsel %vm564, %v563, 0
        %571 = vmatprep.subr.bf16.mxu0 0
        %572 = vmatpush1.bf16.xpose.msra.mxu0 %v569
        %573 = vmatprep.subr.bf16.mxu0 0
        %574 = vmatpush1.bf16.xpose.msra.mxu0 0
        %575 = vmatprep.subr.bf16.mxu0 0
        %576 = vmatpush1.bf16.xpose.msra.mxu0 0
        %577 = vmatprep.subr.bf16.mxu0 0
        %578 = vmatpush1.bf16.xpose.msra.mxu0 0
        %579 = vmatprep.subr.bf16.mxu0 0
        %580 = vmatpush1.bf16.xpose.msra.mxu0 0
        %581 = vmatprep.subr.bf16.mxu0 0
        %582 = vmatpush1.bf16.xpose.msra.mxu0 0
        %583 = vmatprep.subr.bf16.mxu0 0
        %584 = vmatpush1.bf16.xpose.msra.mxu0 0
        %585 = vmatprep.subr.bf16.mxu0 0
        %586 = vmatpush1.bf16.xpose.msra.mxu0 0
        %587 = vmatprep.subr.bf16.mxu0 0
        %588 = vmatpush1.bf16.xpose.msra.mxu0 0
        %589 = vmatprep.subr.bf16.mxu0 0
        %590 = vmatpush1.bf16.xpose.msra.mxu0 0
        %591 = vmatprep.subr.bf16.mxu0 0
        %592 = vmatpush1.bf16.xpose.msra.mxu0 0
        %593 = vmatprep.subr.bf16.mxu0 0
        %594 = vmatpush1.bf16.xpose.msra.mxu0 0
        %595 = vmatprep.subr.bf16.mxu0 0
        %596 = vmatpush1.bf16.xpose.msra.mxu0 0
        %597 = vmatprep.subr.bf16.mxu0 0
        %598 = vmatpush1.bf16.xpose.msra.mxu0 0
        %599 = vmatprep.subr.bf16.mxu0 0
        %600 = vmatpush1.bf16.xpose.msra.mxu0 0
        %601 = vmatprep.subr.bf16.mxu0 0
        %602 = vmatpush1.bf16.xpose.msra.mxu0 0
        %603 = vmatprep.mubr.bf16.mxu0 0
        %604 = vmatmul.mubr.bf16.gmra.mrb[0].mxu0 %v566
        %v605 = vpop.f32.mrb[0].mxu0
        %v606 = vadd.f32 0.0, %v605
        %v607 = vpop.f32.mrb[0].mxu0
        %v608 = vpop.f32.mrb[0].mxu0
        %v609 = vpop.f32.mrb[0].mxu0
        %610 = vdwg.mxu0
        %v611 = vmul.f32 %v606, 0.35355338
        %v612 = vsel %vm564, %v611, -inf
        %613 = vmax.xlane.f32.xlu0 %v612
        %v614 = vpop.xlane.xlu0 %613
        %v615 = vsub.f32 %v611, %v614
        %v616 = vmul.f32 %v615, 1.442695
        %v617 = vpow.pop %v616
        %v618 = vsel %vm564, %v617, 0.0
        %619 = vadd.xlane.f32.xlu0 %v618
        %v620 = vpop.xlane.xlu0 %619
        %v621 = vrcp.pop %v620
        %v622 = vmul.f32 %v617, %v621
        %v623 = vpack.c.bf16 %v622, %v622
        %624 = vrot.lane.b32.xlu0 %v560, 64
        %v625 = vpop.permute.xlu0 %624
        %v627 = vsel %vm564, %v623, 0
        %vm629 = vcmask 1043456
        %v631 = vsel %vm629, %v625, 0
        %633 = vmatprep.subr.bf16.mxu0 0
        %634 = vmatpush1.bf16.msra.mxu0 %v631
        %635 = vmatprep.subr.bf16.mxu0 0
        %636 = vmatpush1.bf16.msra.mxu0 0
        %637 = vmatprep.subr.bf16.mxu0 0
        %638 = vmatpush1.bf16.msra.mxu0 0
        %639 = vmatprep.subr.bf16.mxu0 0
        %640 = vmatpush1.bf16.msra.mxu0 0
        %641 = vmatprep.subr.bf16.mxu0 0
        %642 = vmatpush1.bf16.msra.mxu0 0
        %643 = vmatprep.subr.bf16.mxu0 0
        %644 = vmatpush1.bf16.msra.mxu0 0
        %645 = vmatprep.subr.bf16.mxu0 0
        %646 = vmatpush1.bf16.msra.mxu0 0
        %647 = vmatprep.subr.bf16.mxu0 0
        %648 = vmatpush1.bf16.msra.mxu0 0
        %649 = vmatprep.subr.bf16.mxu0 0
        %650 = vmatpush1.bf16.msra.mxu0 0
        %651 = vmatprep.subr.bf16.mxu0 0
        %652 = vmatpush1.bf16.msra.mxu0 0
        %653 = vmatprep.subr.bf16.mxu0 0
        %654 = vmatpush1.bf16.msra.mxu0 0
        %655 = vmatprep.subr.bf16.mxu0 0
        %656 = vmatpush1.bf16.msra.mxu0 0
        %657 = vmatprep.subr.bf16.mxu0 0
        %658 = vmatpush1.bf16.msra.mxu0 0
        %659 = vmatprep.subr.bf16.mxu0 0
        %660 = vmatpush1.bf16.msra.mxu0 0
        %661 = vmatprep.subr.bf16.mxu0 0
        %662 = vmatpush1.bf16.msra.mxu0 0
        %663 = vmatprep.subr.bf16.mxu0 0
        %664 = vmatpush1.bf16.msra.mxu0 0
        %665 = vmatprep.mubr.bf16.mxu0 0
        %666 = vmatmul.mubr.bf16.gmra.mrb[0].mxu0 %v627
        %v667 = vpop.f32.mrb[0].mxu0
        %v668 = vadd.f32 0.0, %v667
        %v669 = vpop.f32.mrb[0].mxu0
        %v670 = vpop.f32.mrb[0].mxu0
        %v671 = vpop.f32.mrb[0].mxu0
        %672 = vdwg.mxu0
        %673 = vrot.lane.b32.xlu0 %v560, 120
        %v674 = vpop.permute.xlu0 %673
        %675 = vrot.lane.b32.xlu0 %v560, 88
        %v676 = vpop.permute.xlu0 %675
        %v678 = vsel %vm564, %v674, 0
        %v681 = vsel %vm564, %v676, 0
        %683 = vmatprep.subr.bf16.mxu0 0
        %684 = vmatpush1.bf16.xpose.msra.mxu0 %v681
        %685 = vmatprep.subr.bf16.mxu0 0
        %686 = vmatpush1.bf16.xpose.msra.mxu0 0
        %687 = vmatprep.subr.bf16.mxu0 0
        %688 = vmatpush1.bf16.xpose.msra.mxu0 0
        %689 = vmatprep.subr.bf16.mxu0 0
        %690 = vmatpush1.bf16.xpose.msra.mxu0 0
        %691 = vmatprep.subr.bf16.mxu0 0
        %692 = vmatpush1.bf16.xpose.msra.mxu0 0
        %693 = vmatprep.subr.bf16.mxu0 0
        %694 = vmatpush1.bf16.xpose.msra.mxu0 0
        %695 = vmatprep.subr.bf16.mxu0 0
        %696 = vmatpush1.bf16.xpose.msra.mxu0 0
        %697 = vmatprep.subr.bf16.mxu0 0
        %698 = vmatpush1.bf16.xpose.msra.mxu0 0
        %699 = vmatprep.subr.bf16.mxu0 0
        %700 = vmatpush1.bf16.xpose.msra.mxu0 0
        %701 = vmatprep.subr.bf16.mxu0 0
        %702 = vmatpush1.bf16.xpose.msra.mxu0 0
        %703 = vmatprep.subr.bf16.mxu0 0
        %704 = vmatpush1.bf16.xpose.msra.mxu0 0
        %705 = vmatprep.subr.bf16.mxu0 0
        %706 = vmatpush1.bf16.xpose.msra.mxu0 0
        %707 = vmatprep.subr.bf16.mxu0 0
        %708 = vmatpush1.bf16.xpose.msra.mxu0 0
        %709 = vmatprep.subr.bf16.mxu0 0
        %710 = vmatpush1.bf16.xpose.msra.mxu0 0
        %711 = vmatprep.subr.bf16.mxu0 0
        %712 = vmatpush1.bf16.xpose.msra.mxu0 0
        %713 = vmatprep.subr.bf16.mxu0 0
        %714 = vmatpush1.bf16.xpose.msra.mxu0 0
        %715 = vmatprep.mubr.bf16.mxu0 0
        %716 = vmatmul.mubr.bf16.gmra.mrb[0].mxu0 %v678
        %v717 = vpop.f32.mrb[0].mxu0
        %v718 = vadd.f32 0.0, %v717
        %v719 = vpop.f32.mrb[0].mxu0
        %v720 = vpop.f32.mrb[0].mxu0
        %v721 = vpop.f32.mrb[0].mxu0
        %722 = vdwg.mxu0
        %v723 = vmul.f32 %v718, 0.35355338
        %v724 = vsel %vm564, %v723, -inf
        %725 = vmax.xlane.f32.xlu0 %v724
        %v726 = vpop.xlane.xlu0 %725
        %v727 = vsub.f32 %v723, %v726
        %v728 = vmul.f32 %v727, 1.442695
        %v729 = vpow.pop %v728
        %v730 = vsel %vm564, %v729, 0.0
        %731 = vadd.xlane.f32.xlu0 %v730
        %v732 = vpop.xlane.xlu0 %731
        %v733 = vrcp.pop %v732
        %v734 = vmul.f32 %v729, %v733
        %v735 = vpack.c.bf16 %v734, %v734
        %736 = vrot.lane.b32.xlu0 %v560, 56
        %v737 = vpop.permute.xlu0 %736
        %v739 = vsel %vm564, %v735, 0
        %v742 = vsel %vm629, %v737, 0
        %744 = vmatprep.subr.bf16.mxu0 0
        %745 = vmatpush1.bf16.msra.mxu0 %v742
        %746 = vmatprep.subr.bf16.mxu0 0
        %747 = vmatpush1.bf16.msra.mxu0 0
        %748 = vmatprep.subr.bf16.mxu0 0
        %749 = vmatpush1.bf16.msra.mxu0 0
        %750 = vmatprep.subr.bf16.mxu0 0
        %751 = vmatpush1.bf16.msra.mxu0 0
        %752 = vmatprep.subr.bf16.mxu0 0
        %753 = vmatpush1.bf16.msra.mxu0 0
        %754 = vmatprep.subr.bf16.mxu0 0
        %755 = vmatpush1.bf16.msra.mxu0 0
        %756 = vmatprep.subr.bf16.mxu0 0
        %757 = vmatpush1.bf16.msra.mxu0 0
        %758 = vmatprep.subr.bf16.mxu0 0
        %759 = vmatpush1.bf16.msra.mxu0 0
        %760 = vmatprep.subr.bf16.mxu0 0
        %761 = vmatpush1.bf16.msra.mxu0 0
        %762 = vmatprep.subr.bf16.mxu0 0
        %763 = vmatpush1.bf16.msra.mxu0 0
        %764 = vmatprep.subr.bf16.mxu0 0
        %765 = vmatpush1.bf16.msra.mxu0 0
        %766 = vmatprep.subr.bf16.mxu0 0
        %767 = vmatpush1.bf16.msra.mxu0 0
        %768 = vmatprep.subr.bf16.mxu0 0
        %769 = vmatpush1.bf16.msra.mxu0 0
        %770 = vmatprep.subr.bf16.mxu0 0
        %771 = vmatpush1.bf16.msra.mxu0 0
        %772 = vmatprep.subr.bf16.mxu0 0
        %773 = vmatpush1.bf16.msra.mxu0 0
        %774 = vmatprep.subr.bf16.mxu0 0
        %775 = vmatpush1.bf16.msra.mxu0 0
        %776 = vmatprep.mubr.bf16.mxu0 0
        %777 = vmatmul.mubr.bf16.gmra.mrb[0].mxu0 %v739
        %v778 = vpop.f32.mrb[0].mxu0
        %v779 = vadd.f32 0.0, %v778
        %v780 = vpop.f32.mrb[0].mxu0
        %v781 = vpop.f32.mrb[0].mxu0
        %v782 = vpop.f32.mrb[0].mxu0
        %783 = vdwg.mxu0
        %784 = vrot.lane.b32.xlu0 %v560, 112
        %v785 = vpop.permute.xlu0 %784
        %786 = vrot.lane.b32.xlu0 %v560, 80
        %v787 = vpop.permute.xlu0 %786
        %v789 = vsel %vm564, %v785, 0
        %v792 = vsel %vm564, %v787, 0
        %794 = vmatprep.subr.bf16.mxu0 0
        %795 = vmatpush1.bf16.xpose.msra.mxu0 %v792
        %796 = vmatprep.subr.bf16.mxu0 0
        %797 = vmatpush1.bf16.xpose.msra.mxu0 0
        %798 = vmatprep.subr.bf16.mxu0 0
        %799 = vmatpush1.bf16.xpose.msra.mxu0 0
        %800 = vmatprep.subr.bf16.mxu0 0
        %801 = vmatpush1.bf16.xpose.msra.mxu0 0
        %802 = vmatprep.subr.bf16.mxu0 0
        %803 = vmatpush1.bf16.xpose.msra.mxu0 0
        %804 = vmatprep.subr.bf16.mxu0 0
        %805 = vmatpush1.bf16.xpose.msra.mxu0 0
        %806 = vmatprep.subr.bf16.mxu0 0
        %807 = vmatpush1.bf16.xpose.msra.mxu0 0
        %808 = vmatprep.subr.bf16.mxu0 0
        %809 = vmatpush1.bf16.xpose.msra.mxu0 0
        %810 = vmatprep.subr.bf16.mxu0 0
        %811 = vmatpush1.bf16.xpose.msra.mxu0 0
        %812 = vmatprep.subr.bf16.mxu0 0
        %813 = vmatpush1.bf16.xpose.msra.mxu0 0
        %814 = vmatprep.subr.bf16.mxu0 0
        %815 = vmatpush1.bf16.xpose.msra.mxu0 0
        %816 = vmatprep.subr.bf16.mxu0 0
        %817 = vmatpush1.bf16.xpose.msra.mxu0 0
        %818 = vmatprep.subr.bf16.mxu0 0
        %819 = vmatpush1.bf16.xpose.msra.mxu0 0
        %820 = vmatprep.subr.bf16.mxu0 0
        %821 = vmatpush1.bf16.xpose.msra.mxu0 0
        %822 = vmatprep.subr.bf16.mxu0 0
        %823 = vmatpush1.bf16.xpose.msra.mxu0 0
        %824 = vmatprep.subr.bf16.mxu0 0
        %825 = vmatpush1.bf16.xpose.msra.mxu0 0
        %826 = vmatprep.mubr.bf16.mxu0 0
        %827 = vmatmul.mubr.bf16.gmra.mrb[0].mxu0 %v789
        %v828 = vpop.f32.mrb[0].mxu0
        %v829 = vadd.f32 0.0, %v828
        %v830 = vpop.f32.mrb[0].mxu0
        %v831 = vpop.f32.mrb[0].mxu0
        %v832 = vpop.f32.mrb[0].mxu0
        %833 = vdwg.mxu0
        %v834 = vmul.f32 %v829, 0.35355338
        %v835 = vsel %vm564, %v834, -inf
        %836 = vmax.xlane.f32.xlu0 %v835
        %v837 = vpop.xlane.xlu0 %836
        %v838 = vsub.f32 %v834, %v837
        %v839 = vmul.f32 %v838, 1.442695
        %v840 = vpow.pop %v839
        %v841 = vsel %vm564, %v840, 0.0
        %842 = vadd.xlane.f32.xlu0 %v841
        %v843 = vpop.xlane.xlu0 %842
        %v844 = vrcp.pop %v843
        %v845 = vmul.f32 %v840, %v844
        %v846 = vpack.c.bf16 %v845, %v845
        %847 = vrot.lane.b32.xlu0 %v560, 48
        %v848 = vpop.permute.xlu0 %847
        %v850 = vsel %vm564, %v846, 0
        %v853 = vsel %vm629, %v848, 0
        %855 = vmatprep.subr.bf16.mxu0 0
        %856 = vmatpush1.bf16.msra.mxu0 %v853
        %857 = vmatprep.subr.bf16.mxu0 0
        %858 = vmatpush1.bf16.msra.mxu0 0
        %859 = vmatprep.subr.bf16.mxu0 0
        %860 = vmatpush1.bf16.msra.mxu0 0
        %861 = vmatprep.subr.bf16.mxu0 0
        %862 = vmatpush1.bf16.msra.mxu0 0
        %863 = vmatprep.subr.bf16.mxu0 0
        %864 = vmatpush1.bf16.msra.mxu0 0
        %865 = vmatprep.subr.bf16.mxu0 0
        %866 = vmatpush1.bf16.msra.mxu0 0
        %867 = vmatprep.subr.bf16.mxu0 0
        %868 = vmatpush1.bf16.msra.mxu0 0
        %869 = vmatprep.subr.bf16.mxu0 0
        %870 = vmatpush1.bf16.msra.mxu0 0
        %871 = vmatprep.subr.bf16.mxu0 0
        %872 = vmatpush1.bf16.msra.mxu0 0
        %873 = vmatprep.subr.bf16.mxu0 0
        %874 = vmatpush1.bf16.msra.mxu0 0
        %875 = vmatprep.subr.bf16.mxu0 0
        %876 = vmatpush1.bf16.msra.mxu0 0
        %877 = vmatprep.subr.bf16.mxu0 0
        %878 = vmatpush1.bf16.msra.mxu0 0
        %879 = vmatprep.subr.bf16.mxu0 0
        %880 = vmatpush1.bf16.msra.mxu0 0
        %881 = vmatprep.subr.bf16.mxu0 0
        %882 = vmatpush1.bf16.msra.mxu0 0
        %883 = vmatprep.subr.bf16.mxu0 0
        %884 = vmatpush1.bf16.msra.mxu0 0
        %885 = vmatprep.subr.bf16.mxu0 0
        %886 = vmatpush1.bf16.msra.mxu0 0
        %887 = vmatprep.mubr.bf16.mxu0 0
        %888 = vmatmul.mubr.bf16.gmra.mrb[0].mxu0 %v850
        %v889 = vpop.f32.mrb[0].mxu0
        %v890 = vadd.f32 0.0, %v889
        %v891 = vpop.f32.mrb[0].mxu0
        %v892 = vpop.f32.mrb[0].mxu0
        %v893 = vpop.f32.mrb[0].mxu0
        %894 = vdwg.mxu0
        %895 = vrot.lane.b32.xlu0 %v560, 104
        %v896 = vpop.permute.xlu0 %895
        %897 = vrot.lane.b32.xlu0 %v560, 72
        %v898 = vpop.permute.xlu0 %897
        %v900 = vsel %vm564, %v896, 0
        %v903 = vsel %vm564, %v898, 0
        %905 = vmatprep.subr.bf16.mxu0 0
        %906 = vmatpush1.bf16.xpose.msra.mxu0 %v903
        %907 = vmatprep.subr.bf16.mxu0 0
        %908 = vmatpush1.bf16.xpose.msra.mxu0 0
        %909 = vmatprep.subr.bf16.mxu0 0
        %910 = vmatpush1.bf16.xpose.msra.mxu0 0
        %911 = vmatprep.subr.bf16.mxu0 0
        %912 = vmatpush1.bf16.xpose.msra.mxu0 0
        %913 = vmatprep.subr.bf16.mxu0 0
        %914 = vmatpush1.bf16.xpose.msra.mxu0 0
        %915 = vmatprep.subr.bf16.mxu0 0
        %916 = vmatpush1.bf16.xpose.msra.mxu0 0
        %917 = vmatprep.subr.bf16.mxu0 0
        %918 = vmatpush1.bf16.xpose.msra.mxu0 0
        %919 = vmatprep.subr.bf16.mxu0 0
        %920 = vmatpush1.bf16.xpose.msra.mxu0 0
        %921 = vmatprep.subr.bf16.mxu0 0
        %922 = vmatpush1.bf16.xpose.msra.mxu0 0
        %923 = vmatprep.subr.bf16.mxu0 0
        %924 = vmatpush1.bf16.xpose.msra.mxu0 0
        %925 = vmatprep.subr.bf16.mxu0 0
        %926 = vmatpush1.bf16.xpose.msra.mxu0 0
        %927 = vmatprep.subr.bf16.mxu0 0
        %928 = vmatpush1.bf16.xpose.msra.mxu0 0
        %929 = vmatprep.subr.bf16.mxu0 0
        %930 = vmatpush1.bf16.xpose.msra.mxu0 0
        %931 = vmatprep.subr.bf16.mxu0 0
        %932 = vmatpush1.bf16.xpose.msra.mxu0 0
        %933 = vmatprep.subr.bf16.mxu0 0
        %934 = vmatpush1.bf16.xpose.msra.mxu0 0
        %935 = vmatprep.subr.bf16.mxu0 0
        %936 = vmatpush1.bf16.xpose.msra.mxu0 0
        %937 = vmatprep.mubr.bf16.mxu0 0
        %938 = vmatmul.mubr.bf16.gmra.mrb[0].mxu0 %v900
        %v939 = vpop.f32.mrb[0].mxu0
        %v940 = vadd.f32 0.0, %v939
        %v941 = vpop.f32.mrb[0].mxu0
        %v942 = vpop.f32.mrb[0].mxu0
        %v943 = vpop.f32.mrb[0].mxu0
        %944 = vdwg.mxu0
        %v945 = vmul.f32 %v940, 0.35355338
        %v946 = vsel %vm564, %v945, -inf
        %947 = vmax.xlane.f32.xlu0 %v946
        %v948 = vpop.xlane.xlu0 %947
        %v949 = vsub.f32 %v945, %v948
        %v950 = vmul.f32 %v949, 1.442695
        %v951 = vpow.pop %v950
        %v952 = vsel %vm564, %v951, 0.0
        %953 = vadd.xlane.f32.xlu0 %v952
        %v954 = vpop.xlane.xlu0 %953
        %v955 = vrcp.pop %v954
        %v956 = vmul.f32 %v951, %v955
        %v957 = vpack.c.bf16 %v956, %v956
        %958 = vrot.lane.b32.xlu0 %v560, 40
        %v959 = vpop.permute.xlu0 %958
        %v961 = vsel %vm564, %v957, 0
        %v964 = vsel %vm629, %v959, 0
        %966 = vmatprep.subr.bf16.mxu0 0
        %967 = vmatpush1.bf16.msra.mxu0 %v964
        %968 = vmatprep.subr.bf16.mxu0 0
        %969 = vmatpush1.bf16.msra.mxu0 0
        %970 = vmatprep.subr.bf16.mxu0 0
        %971 = vmatpush1.bf16.msra.mxu0 0
        %972 = vmatprep.subr.bf16.mxu0 0
        %973 = vmatpush1.bf16.msra.mxu0 0
        %974 = vmatprep.subr.bf16.mxu0 0
        %975 = vmatpush1.bf16.msra.mxu0 0
        %976 = vmatprep.subr.bf16.mxu0 0
        %977 = vmatpush1.bf16.msra.mxu0 0
        %978 = vmatprep.subr.bf16.mxu0 0
        %979 = vmatpush1.bf16.msra.mxu0 0
        %980 = vmatprep.subr.bf16.mxu0 0
        %981 = vmatpush1.bf16.msra.mxu0 0
        %982 = vmatprep.subr.bf16.mxu0 0
        %983 = vmatpush1.bf16.msra.mxu0 0
        %984 = vmatprep.subr.bf16.mxu0 0
        %985 = vmatpush1.bf16.msra.mxu0 0
        %986 = vmatprep.subr.bf16.mxu0 0
        %987 = vmatpush1.bf16.msra.mxu0 0
        %988 = vmatprep.subr.bf16.mxu0 0
        %989 = vmatpush1.bf16.msra.mxu0 0
        %990 = vmatprep.subr.bf16.mxu0 0
        %991 = vmatpush1.bf16.msra.mxu0 0
        %992 = vmatprep.subr.bf16.mxu0 0
        %993 = vmatpush1.bf16.msra.mxu0 0
        %994 = vmatprep.subr.bf16.mxu0 0
        %995 = vmatpush1.bf16.msra.mxu0 0
        %996 = vmatprep.subr.bf16.mxu0 0
        %997 = vmatpush1.bf16.msra.mxu0 0
        %998 = vmatprep.mubr.bf16.mxu0 0
        %999 = vmatmul.mubr.bf16.gmra.mrb[0].mxu0 %v961
        %v1000 = vpop.f32.mrb[0].mxu0
        %v1001 = vadd.f32 0.0, %v1000
        %v1002 = vpop.f32.mrb[0].mxu0
        %v1003 = vpop.f32.mrb[0].mxu0
        %v1004 = vpop.f32.mrb[0].mxu0
        %1005 = vdwg.mxu0
        %1007 = vrot.lane.b32.xlu0 %v779, 8
        %v1008 = vpop.permute.xlu0 %1007
        %1011 = vrot.lane.b32.xlu0 %v890, 16
        %v1012 = vpop.permute.xlu0 %1011
        %1015 = vrot.lane.b32.xlu0 %v1001, 24
        %v1016 = vpop.permute.xlu0 %1015
        %v1018 = vsel %vm564, %v668, %v1008
        %vm1019 = vcmask 130048
        %v1020 = vsel %vm1019, %v1018, %v1012
        %vm1021 = vcmask 195584
        %v1022 = vsel %vm1021, %v1020, %v1016
        %v1023 = vpack.c.bf16 %v1022, %v1022
        %v1024 = vld [vmem:[%s3] sm:$0xf]
        %v1025 = vld [vmem:[%s3 + $0x4] sm:$0xf]
        %v1026 = vld [vmem:[%s3 + $0x8] sm:$0xf]
        %v1027 = vld [vmem:[%s3 + $0xc] sm:$0xf]
        %v1028 = vld [vmem:[%s4] sm:$0x1]
        %v1030 = vlaneseq
        %v1031 = vshrl.u32 %v1030, 7
        %v1032 = vsub.s32 0, %v1031
        %v1033 = vrot.slane %v1028, %v1032
        %v1039 = vunpack.c.l.b16 %v1024
        %v1040 = vunpack.c.l.b16 %v1025
        %v1041 = vunpack.c.l.b16 %v1026
        %v1042 = vunpack.c.l.b16 %v1027
        %v1043 = vpack.c.b16 %v1040, %v1039
        %v1044 = vpack.c.b16 %v1042, %v1041
        %v1048 = vsel %vm516, %v1023, 0
        %1050 = vmatprep.subr.bf16.mxu0 0
        %1051 = vmatpush1.bf16.msra.mxu0 %v1043
        %1052 = vmatprep.subr.bf16.mxu0 0
        %1053 = vmatpush1.bf16.msra.mxu0 %v1044
        %1054 = vmatprep.subr.bf16.mxu0 0
        %1055 = vmatpush1.bf16.msra.mxu0 0
        %1056 = vmatprep.subr.bf16.mxu0 0
        %1057 = vmatpush1.bf16.msra.mxu0 0
        %1058 = vmatprep.subr.bf16.mxu0 0
        %1059 = vmatpush1.bf16.msra.mxu0 0
        %1060 = vmatprep.subr.bf16.mxu0 0
        %1061 = vmatpush1.bf16.msra.mxu0 0
        %1062 = vmatprep.subr.bf16.mxu0 0
        %1063 = vmatpush1.bf16.msra.mxu0 0
        %1064 = vmatprep.subr.bf16.mxu0 0
        %1065 = vmatpush1.bf16.msra.mxu0 0
        %1066 = vmatprep.subr.bf16.mxu0 0
        %1067 = vmatpush1.bf16.msra.mxu0 0
        %1068 = vmatprep.subr.bf16.mxu0 0
        %1069 = vmatpush1.bf16.msra.mxu0 0
        %1070 = vmatprep.subr.bf16.mxu0 0
        %1071 = vmatpush1.bf16.msra.mxu0 0
        %1072 = vmatprep.subr.bf16.mxu0 0
        %1073 = vmatpush1.bf16.msra.mxu0 0
        %1074 = vmatprep.subr.bf16.mxu0 0
        %1075 = vmatpush1.bf16.msra.mxu0 0
        %1076 = vmatprep.subr.bf16.mxu0 0
        %1077 = vmatpush1.bf16.msra.mxu0 0
        %1078 = vmatprep.subr.bf16.mxu0 0
        %1079 = vmatpush1.bf16.msra.mxu0 0
        %1080 = vmatprep.subr.bf16.mxu0 0
        %1081 = vmatpush1.bf16.msra.mxu0 0
        %1082 = vmatprep.mubr.bf16.mxu0 0
        %1083 = vmatmul.mubr.bf16.gmra.mrb[0].mxu0 %v1048
        %v1084 = vpop.f32.mrb[0].mxu0
        %v1085 = vadd.f32 %v1033, %v1084
        %v1086 = vpop.f32.mrb[0].mxu0
        %v1087 = vpop.f32.mrb[0].mxu0
        %v1088 = vpop.f32.mrb[0].mxu0
        %1089 = vdwg.mxu0
        %v1090 = vadd.f32 %v1085, %v491
        %v1091 = vld [vmem:[%s5] sm:$0x1]
        %v1092 = vld [vmem:[%s6] sm:$0x1]
        %v1093 = vsel %vm516, %v1090, 0.0
        %1094 = vadd.xlane.f32.xlu0 %v1093
        %v1095 = vpop.xlane.xlu0 %1094
        %v1096 = vrcp.pop 32.0
        %v1097 = vmul.f32 %v1095, %v1096
        %v1098 = vsub.f32 %v1090, %v1097
        %v1099 = vmul.f32 %v1098, %v1098
        %v1100 = vsel %vm516, %v1099, 0.0
        %1101 = vadd.xlane.f32.xlu0 %v1100
        %v1102 = vpop.xlane.xlu0 %1101
        %v1103 = vmul.f32 %v1102, %v1096
        %v1104 = vadd.f32 %v1103, 1e-05
        %v1105 = vrsqrt.pop %v1104
        %v1106 = vmul.f32 %v1098, %v1105
        %v1108 = vlaneseq
        %v1109 = vshrl.u32 %v1108, 7
        %v1110 = vsub.s32 0, %v1109
        %v1111 = vrot.slane %v1091, %v1110
        %v1113 = vmul.f32 %v1106, %v1111
        %v1115 = vlaneseq
        %v1116 = vshrl.u32 %v1115, 7
        %v1117 = vsub.s32 0, %v1116
        %v1118 = vrot.slane %v1092, %v1117
        %v1120 = vadd.f32 %v1113, %v1118
        %v1121 = vpack.c.bf16 %v1120, %v1120
        %v1122 = vld [vmem:[%s7] sm:$0xff]
        %v1123 = vld [vmem:[%s7 + $0x8] sm:$0xff]
        %v1124 = vld [vmem:[%s7 + $0x10] sm:$0xff]
        %v1125 = vld [vmem:[%s7 + $0x18] sm:$0xff]
        %v1126 = vld [vmem:[%s7 + $0x20] sm:$0xff]
        %v1127 = vld [vmem:[%s7 + $0x28] sm:$0xff]
        %v1128 = vld [vmem:[%s7 + $0x30] sm:$0xff]
        %v1129 = vld [vmem:[%s7 + $0x38] sm:$0xff]
        %v1130 = vld [vmem:[%s7 + $0x40] sm:$0xff]
        %v1131 = vld [vmem:[%s7 + $0x48] sm:$0xff]
        %v1132 = vld [vmem:[%s7 + $0x50] sm:$0xff]
        %v1133 = vld [vmem:[%s7 + $0x58] sm:$0xff]
        %v1134 = vld [vmem:[%s7 + $0x60] sm:$0xff]
        %v1135 = vld [vmem:[%s7 + $0x68] sm:$0xff]
        %v1136 = vld [vmem:[%s7 + $0x70] sm:$0xff]
        %v1137 = vld [vmem:[%s7 + $0x78] sm:$0xff]
        %v1138 = vld [vmem:[%s7 + $0x80] sm:$0xff]
        %v1139 = vld [vmem:[%s7 + $0x88] sm:$0xff]
        %v1140 = vld [vmem:[%s7 + $0x90] sm:$0xff]
        %v1141 = vld [vmem:[%s7 + $0x98] sm:$0xff]
        %v1142 = vld [vmem:[%s7 + $0xa0] sm:$0xff]
        %v1143 = vld [vmem:[%s7 + $0xa8] sm:$0xff]
        %v1144 = vld [vmem:[%s7 + $0xb0] sm:$0xff]
        %v1145 = vld [vmem:[%s7 + $0xb8] sm:$0xff]
        %v1146 = vld [vmem:[%s7 + $0xc0] sm:$0xff]
        %v1147 = vld [vmem:[%s7 + $0xc8] sm:$0xff]
        %v1148 = vld [vmem:[%s7 + $0xd0] sm:$0xff]
        %v1149 = vld [vmem:[%s7 + $0xd8] sm:$0xff]
        %v1150 = vld [vmem:[%s7 + $0xe0] sm:$0xff]
        %v1151 = vld [vmem:[%s7 + $0xe8] sm:$0xff]
        %v1152 = vld [vmem:[%s7 + $0xf0] sm:$0xff]
        %v1153 = vld [vmem:[%s7 + $0xf8] sm:$0xff]
        %v1154 = vld [vmem:[%s8] sm:$0xff]
        %v1155 = vld [vmem:[%s8 + $0x8] sm:$0xff]
        %v1158 = vlaneseq
        %v1159 = vshrl.u32 %v1158, 7
        %v1160 = vsub.s32 0, %v1159
        %v1161 = vrot.slane %v1154, %v1160
        %v1162 = vlaneseq
        %v1163 = vshrl.u32 %v1162, 7
        %v1164 = vsub.s32 1, %v1163
        %v1165 = vrot.slane %v1154, %v1164
        %v1166 = vlaneseq
        %v1167 = vshrl.u32 %v1166, 7
        %v1168 = vsub.s32 2, %v1167
        %v1169 = vrot.slane %v1154, %v1168
        %v1170 = vlaneseq
        %v1171 = vshrl.u32 %v1170, 7
        %v1172 = vsub.s32 3, %v1171
        %v1173 = vrot.slane %v1154, %v1172
        %v1174 = vlaneseq
        %v1175 = vshrl.u32 %v1174, 7
        %v1176 = vsub.s32 4, %v1175
        %v1177 = vrot.slane %v1154, %v1176
        %v1178 = vlaneseq
        %v1179 = vshrl.u32 %v1178, 7
        %v1180 = vsub.s32 5, %v1179
        %v1181 = vrot.slane %v1154, %v1180
        %v1182 = vlaneseq
        %v1183 = vshrl.u32 %v1182, 7
        %v1184 = vsub.s32 6, %v1183
        %v1185 = vrot.slane %v1154, %v1184
        %v1186 = vlaneseq
        %v1187 = vshrl.u32 %v1186, 7
        %v1188 = vsub.s32 7, %v1187
        %v1189 = vrot.slane %v1154, %v1188
        %v1190 = vlaneseq
        %v1191 = vshrl.u32 %v1190, 7
        %v1192 = vsub.s32 0, %v1191
        %v1193 = vrot.slane %v1155, %v1192
        %v1194 = vlaneseq
        %v1195 = vshrl.u32 %v1194, 7
        %v1196 = vsub.s32 1, %v1195
        %v1197 = vrot.slane %v1155, %v1196
        %v1198 = vlaneseq
        %v1199 = vshrl.u32 %v1198, 7
        %v1200 = vsub.s32 2, %v1199
        %v1201 = vrot.slane %v1155, %v1200
        %v1202 = vlaneseq
        %v1203 = vshrl.u32 %v1202, 7
        %v1204 = vsub.s32 3, %v1203
        %v1205 = vrot.slane %v1155, %v1204
        %v1206 = vlaneseq
        %v1207 = vshrl.u32 %v1206, 7
        %v1208 = vsub.s32 4, %v1207
        %v1209 = vrot.slane %v1155, %v1208
        %v1210 = vlaneseq
        %v1211 = vshrl.u32 %v1210, 7
        %v1212 = vsub.s32 5, %v1211
        %v1213 = vrot.slane %v1155, %v1212
        %v1214 = vlaneseq
        %v1215 = vshrl.u32 %v1214, 7
        %v1216 = vsub.s32 6, %v1215
        %v1217 = vrot.slane %v1155, %v1216
        %v1218 = vlaneseq
        %v1219 = vshrl.u32 %v1218, 7
        %v1220 = vsub.s32 7, %v1219
        %v1221 = vrot.slane %v1155, %v1220
        %v1270 = vunpack.c.l.b16 %v1122
        %v1271 = vunpack.c.h.b16 %v1122
        %v1272 = vunpack.c.l.b16 %v1123
        %v1273 = vunpack.c.h.b16 %v1123
        %v1274 = vunpack.c.l.b16 %v1124
        %v1275 = vunpack.c.h.b16 %v1124
        %v1276 = vunpack.c.l.b16 %v1125
        %v1277 = vunpack.c.h.b16 %v1125
        %v1278 = vunpack.c.l.b16 %v1126
        %v1279 = vunpack.c.h.b16 %v1126
        %v1280 = vunpack.c.l.b16 %v1127
        %v1281 = vunpack.c.h.b16 %v1127
        %v1282 = vunpack.c.l.b16 %v1128
        %v1283 = vunpack.c.h.b16 %v1128
        %v1284 = vunpack.c.l.b16 %v1129
        %v1285 = vunpack.c.h.b16 %v1129
        %v1286 = vunpack.c.l.b16 %v1130
        %v1287 = vunpack.c.h.b16 %v1130
        %v1288 = vunpack.c.l.b16 %v1131
        %v1289 = vunpack.c.h.b16 %v1131
        %v1290 = vunpack.c.l.b16 %v1132
        %v1291 = vunpack.c.h.b16 %v1132
        %v1292 = vunpack.c.l.b16 %v1133
        %v1293 = vunpack.c.h.b16 %v1133
        %v1294 = vunpack.c.l.b16 %v1134
        %v1295 = vunpack.c.h.b16 %v1134
        %v1296 = vunpack.c.l.b16 %v1135
        %v1297 = vunpack.c.h.b16 %v1135
        %v1298 = vunpack.c.l.b16 %v1136
        %v1299 = vunpack.c.h.b16 %v1136
        %v1300 = vunpack.c.l.b16 %v1137
        %v1301 = vunpack.c.h.b16 %v1137
        %v1302 = vunpack.c.l.b16 %v1138
        %v1303 = vunpack.c.h.b16 %v1138
        %v1304 = vunpack.c.l.b16 %v1139
        %v1305 = vunpack.c.h.b16 %v1139
        %v1306 = vunpack.c.l.b16 %v1140
        %v1307 = vunpack.c.h.b16 %v1140
        %v1308 = vunpack.c.l.b16 %v1141
        %v1309 = vunpack.c.h.b16 %v1141
        %v1310 = vunpack.c.l.b16 %v1142
        %v1311 = vunpack.c.h.b16 %v1142
        %v1312 = vunpack.c.l.b16 %v1143
        %v1313 = vunpack.c.h.b16 %v1143
        %v1314 = vunpack.c.l.b16 %v1144
        %v1315 = vunpack.c.h.b16 %v1144
        %v1316 = vunpack.c.l.b16 %v1145
        %v1317 = vunpack.c.h.b16 %v1145
        %v1318 = vunpack.c.l.b16 %v1146
        %v1319 = vunpack.c.h.b16 %v1146
        %v1320 = vunpack.c.l.b16 %v1147
        %v1321 = vunpack.c.h.b16 %v1147
        %v1322 = vunpack.c.l.b16 %v1148
        %v1323 = vunpack.c.h.b16 %v1148
        %v1324 = vunpack.c.l.b16 %v1149
        %v1325 = vunpack.c.h.b16 %v1149
        %v1326 = vunpack.c.l.b16 %v1150
        %v1327 = vunpack.c.h.b16 %v1150
        %v1328 = vunpack.c.l.b16 %v1151
        %v1329 = vunpack.c.h.b16 %v1151
        %v1330 = vunpack.c.l.b16 %v1152
        %v1331 = vunpack.c.h.b16 %v1152
        %v1332 = vunpack.c.l.b16 %v1153
        %v1333 = vunpack.c.h.b16 %v1153
        %v1334 = vpack.c.b16 %v1286, %v1270
        %v1335 = vpack.c.b16 %v1287, %v1271
        %v1336 = vpack.c.b16 %v1288, %v1272
        %v1337 = vpack.c.b16 %v1289, %v1273
        %v1338 = vpack.c.b16 %v1290, %v1274
        %v1339 = vpack.c.b16 %v1291, %v1275
        %v1340 = vpack.c.b16 %v1292, %v1276
        %v1341 = vpack.c.b16 %v1293, %v1277
        %v1342 = vpack.c.b16 %v1294, %v1278
        %v1343 = vpack.c.b16 %v1295, %v1279
        %v1344 = vpack.c.b16 %v1296, %v1280
        %v1345 = vpack.c.b16 %v1297, %v1281
        %v1346 = vpack.c.b16 %v1298, %v1282
        %v1347 = vpack.c.b16 %v1299, %v1283
        %v1348 = vpack.c.b16 %v1300, %v1284
        %v1349 = vpack.c.b16 %v1301, %v1285
        %v1350 = vpack.c.b16 %v1318, %v1302
        %v1351 = vpack.c.b16 %v1319, %v1303
        %v1352 = vpack.c.b16 %v1320, %v1304
        %v1353 = vpack.c.b16 %v1321, %v1305
        %v1354 = vpack.c.b16 %v1322, %v1306
        %v1355 = vpack.c.b16 %v1323, %v1307
        %v1356 = vpack.c.b16 %v1324, %v1308
        %v1357 = vpack.c.b16 %v1325, %v1309
        %v1358 = vpack.c.b16 %v1326, %v1310
        %v1359 = vpack.c.b16 %v1327, %v1311
        %v1360 = vpack.c.b16 %v1328, %v1312
        %v1361 = vpack.c.b16 %v1329, %v1313
        %v1362 = vpack.c.b16 %v1330, %v1314
        %v1363 = vpack.c.b16 %v1331, %v1315
        %v1364 = vpack.c.b16 %v1332, %v1316
        %v1365 = vpack.c.b16 %v1333, %v1317
        %v1399 = vsel %vm516, %v1121, 0
        %1401 = vmatprep.subr.bf16.mxu0 %v1335
        %1402 = vmatpush1.bf16.msra.mxu0 %v1334
        %1403 = vmatprep.subr.bf16.mxu0 %v1351
        %1404 = vmatpush1.bf16.msra.mxu0 %v1350
        %1405 = vmatprep.subr.bf16.mxu0 0
        %1406 = vmatpush1.bf16.msra.mxu0 0
        %1407 = vmatprep.subr.bf16.mxu0 0
        %1408 = vmatpush1.bf16.msra.mxu0 0
        %1409 = vmatprep.subr.bf16.mxu0 0
        %1410 = vmatpush1.bf16.msra.mxu0 0
        %1411 = vmatprep.subr.bf16.mxu0 0
        %1412 = vmatpush1.bf16.msra.mxu0 0
        %1413 = vmatprep.subr.bf16.mxu0 0
        %1414 = vmatpush1.bf16.msra.mxu0 0
        %1415 = vmatprep.subr.bf16.mxu0 0
        %1416 = vmatpush1.bf16.msra.mxu0 0
        %1417 = vmatprep.subr.bf16.mxu0 0
        %1418 = vmatpush1.bf16.msra.mxu0 0
        %1419 = vmatprep.subr.bf16.mxu0 0
        %1420 = vmatpush1.bf16.msra.mxu0 0
        %1421 = vmatprep.subr.bf16.mxu0 0
        %1422 = vmatpush1.bf16.msra.mxu0 0
        %1423 = vmatprep.subr.bf16.mxu0 0
        %1424 = vmatpush1.bf16.msra.mxu0 0
        %1425 = vmatprep.subr.bf16.mxu0 0
        %1426 = vmatpush1.bf16.msra.mxu0 0
        %1427 = vmatprep.subr.bf16.mxu0 0
        %1428 = vmatpush1.bf16.msra.mxu0 0
        %1429 = vmatprep.subr.bf16.mxu0 0
        %1430 = vmatpush1.bf16.msra.mxu0 0
        %1431 = vmatprep.subr.bf16.mxu0 0
        %1432 = vmatpush1.bf16.msra.mxu0 0
        %1433 = vmatprep.mubr.bf16.mxu0 0
        %1434 = vmatmul.mubr.bf16.gmra.mrb[0].mxu0 %v1399
        %v1435 = vpop.f32.mrb[0].mxu0
        %v1436 = vadd.f32 %v1161, %v1435
        %v1437 = vpop.f32.mrb[0].mxu0
        %v1438 = vadd.f32 %v1165, %v1437
        %v1439 = vpop.f32.mrb[0].mxu0
        %v1440 = vpop.f32.mrb[0].mxu0
        %1441 = vdwg.mxu0
        %1442 = vmatprep.subr.bf16.mxu0 %v1337
        %1443 = vmatpush1.bf16.msra.mxu0 %v1336
        %1444 = vmatprep.subr.bf16.mxu0 %v1353
        %1445 = vmatpush1.bf16.msra.mxu0 %v1352
        %1446 = vmatprep.subr.bf16.mxu0 0
        %1447 = vmatpush1.bf16.msra.mxu0 0
        %1448 = vmatprep.subr.bf16.mxu0 0
        %1449 = vmatpush1.bf16.msra.mxu0 0
        %1450 = vmatprep.subr.bf16.mxu0 0
        %1451 = vmatpush1.bf16.msra.mxu0 0
        %1452 = vmatprep.subr.bf16.mxu0 0
        %1453 = vmatpush1.bf16.msra.mxu0 0
        %1454 = vmatprep.subr.bf16.mxu0 0
        %1455 = vmatpush1.bf16.msra.mxu0 0
        %1456 = vmatprep.subr.bf16.mxu0 0
        %1457 = vmatpush1.bf16.msra.mxu0 0
        %1458 = vmatprep.subr.bf16.mxu0 0
        %1459 = vmatpush1.bf16.msra.mxu0 0
        %1460 = vmatprep.subr.bf16.mxu0 0
        %1461 = vmatpush1.bf16.msra.mxu0 0
        %1462 = vmatprep.subr.bf16.mxu0 0
        %1463 = vmatpush1.bf16.msra.mxu0 0
        %1464 = vmatprep.subr.bf16.mxu0 0
        %1465 = vmatpush1.bf16.msra.mxu0 0
        %1466 = vmatprep.subr.bf16.mxu0 0
        %1467 = vmatpush1.bf16.msra.mxu0 0
        %1468 = vmatprep.subr.bf16.mxu0 0
        %1469 = vmatpush1.bf16.msra.mxu0 0
        %1470 = vmatprep.subr.bf16.mxu0 0
        %1471 = vmatpush1.bf16.msra.mxu0 0
        %1472 = vmatprep.subr.bf16.mxu0 0
        %1473 = vmatpush1.bf16.msra.mxu0 0
        %1474 = vmatprep.mubr.bf16.mxu0 0
        %1475 = vmatmul.mubr.bf16.gmra.mrb[0].mxu0 %v1399
        %v1476 = vpop.f32.mrb[0].mxu0
        %v1477 = vadd.f32 %v1169, %v1476
        %v1478 = vpop.f32.mrb[0].mxu0
        %v1479 = vadd.f32 %v1173, %v1478
        %v1480 = vpop.f32.mrb[0].mxu0
        %v1481 = vpop.f32.mrb[0].mxu0
        %1482 = vdwg.mxu0
        %1483 = vmatprep.subr.bf16.mxu0 %v1339
        %1484 = vmatpush1.bf16.msra.mxu0 %v1338
        %1485 = vmatprep.subr.bf16.mxu0 %v1355
        %1486 = vmatpush1.bf16.msra.mxu0 %v1354
        %1487 = vmatprep.subr.bf16.mxu0 0
        %1488 = vmatpush1.bf16.msra.mxu0 0
        %1489 = vmatprep.subr.bf16.mxu0 0
        %1490 = vmatpush1.bf16.msra.mxu0 0
        %1491 = vmatprep.subr.bf16.mxu0 0
        %1492 = vmatpush1.bf16.msra.mxu0 0
        %1493 = vmatprep.subr.bf16.mxu0 0
        %1494 = vmatpush1.bf16.msra.mxu0 0
        %1495 = vmatprep.subr.bf16.mxu0 0
        %1496 = vmatpush1.bf16.msra.mxu0 0
        %1497 = vmatprep.subr.bf16.mxu0 0
        %1498 = vmatpush1.bf16.msra.mxu0 0
        %1499 = vmatprep.subr.bf16.mxu0 0
        %1500 = vmatpush1.bf16.msra.mxu0 0
        %1501 = vmatprep.subr.bf16.mxu0 0
        %1502 = vmatpush1.bf16.msra.mxu0 0
        %1503 = vmatprep.subr.bf16.mxu0 0
        %1504 = vmatpush1.bf16.msra.mxu0 0
        %1505 = vmatprep.subr.bf16.mxu0 0
        %1506 = vmatpush1.bf16.msra.mxu0 0
        %1507 = vmatprep.subr.bf16.mxu0 0
        %1508 = vmatpush1.bf16.msra.mxu0 0
        %1509 = vmatprep.subr.bf16.mxu0 0
        %1510 = vmatpush1.bf16.msra.mxu0 0
        %1511 = vmatprep.subr.bf16.mxu0 0
        %1512 = vmatpush1.bf16.msra.mxu0 0
        %1513 = vmatprep.subr.bf16.mxu0 0
        %1514 = vmatpush1.bf16.msra.mxu0 0
        %1515 = vmatprep.mubr.bf16.mxu0 0
        %1516 = vmatmul.mubr.bf16.gmra.mrb[0].mxu0 %v1399
        %v1517 = vpop.f32.mrb[0].mxu0
        %v1518 = vadd.f32 %v1177, %v1517
        %v1519 = vpop.f32.mrb[0].mxu0
        %v1520 = vadd.f32 %v1181, %v1519
        %v1521 = vpop.f32.mrb[0].mxu0
        %v1522 = vpop.f32.mrb[0].mxu0
        %1523 = vdwg.mxu0
        %1524 = vmatprep.subr.bf16.mxu0 %v1341
        %1525 = vmatpush1.bf16.msra.mxu0 %v1340
        %1526 = vmatprep.subr.bf16.mxu0 %v1357
        %1527 = vmatpush1.bf16.msra.mxu0 %v1356
        %1528 = vmatprep.subr.bf16.mxu0 0
        %1529 = vmatpush1.bf16.msra.mxu0 0
        %1530 = vmatprep.subr.bf16.mxu0 0
        %1531 = vmatpush1.bf16.msra.mxu0 0
        %1532 = vmatprep.subr.bf16.mxu0 0
        %1533 = vmatpush1.bf16.msra.mxu0 0
        %1534 = vmatprep.subr.bf16.mxu0 0
        %1535 = vmatpush1.bf16.msra.mxu0 0
        %1536 = vmatprep.subr.bf16.mxu0 0
        %1537 = vmatpush1.bf16.msra.mxu0 0
        %1538 = vmatprep.subr.bf16.mxu0 0
        %1539 = vmatpush1.bf16.msra.mxu0 0
        %1540 = vmatprep.subr.bf16.mxu0 0
        %1541 = vmatpush1.bf16.msra.mxu0 0
        %1542 = vmatprep.subr.bf16.mxu0 0
        %1543 = vmatpush1.bf16.msra.mxu0 0
        %1544 = vmatprep.subr.bf16.mxu0 0
        %1545 = vmatpush1.bf16.msra.mxu0 0
        %1546 = vmatprep.subr.bf16.mxu0 0
        %1547 = vmatpush1.bf16.msra.mxu0 0
        %1548 = vmatprep.subr.bf16.mxu0 0
        %1549 = vmatpush1.bf16.msra.mxu0 0
        %1550 = vmatprep.subr.bf16.mxu0 0
        %1551 = vmatpush1.bf16.msra.mxu0 0
        %1552 = vmatprep.subr.bf16.mxu0 0
        %1553 = vmatpush1.bf16.msra.mxu0 0
        %1554 = vmatprep.subr.bf16.mxu0 0
        %1555 = vmatpush1.bf16.msra.mxu0 0
        %1556 = vmatprep.mubr.bf16.mxu0 0
        %1557 = vmatmul.mubr.bf16.gmra.mrb[0].mxu0 %v1399
        %v1558 = vpop.f32.mrb[0].mxu0
        %v1559 = vadd.f32 %v1185, %v1558
        %v1560 = vpop.f32.mrb[0].mxu0
        %v1561 = vadd.f32 %v1189, %v1560
        %v1562 = vpop.f32.mrb[0].mxu0
        %v1563 = vpop.f32.mrb[0].mxu0
        %1564 = vdwg.mxu0
        %1565 = vmatprep.subr.bf16.mxu0 %v1343
        %1566 = vmatpush1.bf16.msra.mxu0 %v1342
        %1567 = vmatprep.subr.bf16.mxu0 %v1359
        %1568 = vmatpush1.bf16.msra.mxu0 %v1358
        %1569 = vmatprep.subr.bf16.mxu0 0
        %1570 = vmatpush1.bf16.msra.mxu0 0
        %1571 = vmatprep.subr.bf16.mxu0 0
        %1572 = vmatpush1.bf16.msra.mxu0 0
        %1573 = vmatprep.subr.bf16.mxu0 0
        %1574 = vmatpush1.bf16.msra.mxu0 0
        %1575 = vmatprep.subr.bf16.mxu0 0
        %1576 = vmatpush1.bf16.msra.mxu0 0
        %1577 = vmatprep.subr.bf16.mxu0 0
        %1578 = vmatpush1.bf16.msra.mxu0 0
        %1579 = vmatprep.subr.bf16.mxu0 0
        %1580 = vmatpush1.bf16.msra.mxu0 0
        %1581 = vmatprep.subr.bf16.mxu0 0
        %1582 = vmatpush1.bf16.msra.mxu0 0
        %1583 = vmatprep.subr.bf16.mxu0 0
        %1584 = vmatpush1.bf16.msra.mxu0 0
        %1585 = vmatprep.subr.bf16.mxu0 0
        %1586 = vmatpush1.bf16.msra.mxu0 0
        %1587 = vmatprep.subr.bf16.mxu0 0
        %1588 = vmatpush1.bf16.msra.mxu0 0
        %1589 = vmatprep.subr.bf16.mxu0 0
        %1590 = vmatpush1.bf16.msra.mxu0 0
        %1591 = vmatprep.subr.bf16.mxu0 0
        %1592 = vmatpush1.bf16.msra.mxu0 0
        %1593 = vmatprep.subr.bf16.mxu0 0
        %1594 = vmatpush1.bf16.msra.mxu0 0
        %1595 = vmatprep.subr.bf16.mxu0 0
        %1596 = vmatpush1.bf16.msra.mxu0 0
        %1597 = vmatprep.mubr.bf16.mxu0 0
        %1598 = vmatmul.mubr.bf16.gmra.mrb[0].mxu0 %v1399
        %v1599 = vpop.f32.mrb[0].mxu0
        %v1600 = vadd.f32 %v1193, %v1599
        %v1601 = vpop.f32.mrb[0].mxu0
        %v1602 = vadd.f32 %v1197, %v1601
        %v1603 = vpop.f32.mrb[0].mxu0
        %v1604 = vpop.f32.mrb[0].mxu0
        %1605 = vdwg.mxu0
        %1606 = vmatprep.subr.bf16.mxu0 %v1345
        %1607 = vmatpush1.bf16.msra.mxu0 %v1344
        %1608 = vmatprep.subr.bf16.mxu0 %v1361
        %1609 = vmatpush1.bf16.msra.mxu0 %v1360
        %1610 = vmatprep.subr.bf16.mxu0 0
        %1611 = vmatpush1.bf16.msra.mxu0 0
        %1612 = vmatprep.subr.bf16.mxu0 0
        %1613 = vmatpush1.bf16.msra.mxu0 0
        %1614 = vmatprep.subr.bf16.mxu0 0
        %1615 = vmatpush1.bf16.msra.mxu0 0
        %1616 = vmatprep.subr.bf16.mxu0 0
        %1617 = vmatpush1.bf16.msra.mxu0 0
        %1618 = vmatprep.subr.bf16.mxu0 0
        %1619 = vmatpush1.bf16.msra.mxu0 0
        %1620 = vmatprep.subr.bf16.mxu0 0
        %1621 = vmatpush1.bf16.msra.mxu0 0
        %1622 = vmatprep.subr.bf16.mxu0 0
        %1623 = vmatpush1.bf16.msra.mxu0 0
        %1624 = vmatprep.subr.bf16.mxu0 0
        %1625 = vmatpush1.bf16.msra.mxu0 0
        %1626 = vmatprep.subr.bf16.mxu0 0
        %1627 = vmatpush1.bf16.msra.mxu0 0
        %1628 = vmatprep.subr.bf16.mxu0 0
        %1629 = vmatpush1.bf16.msra.mxu0 0
        %1630 = vmatprep.subr.bf16.mxu0 0
        %1631 = vmatpush1.bf16.msra.mxu0 0
        %1632 = vmatprep.subr.bf16.mxu0 0
        %1633 = vmatpush1.bf16.msra.mxu0 0
        %1634 = vmatprep.subr.bf16.mxu0 0
        %1635 = vmatpush1.bf16.msra.mxu0 0
        %1636 = vmatprep.subr.bf16.mxu0 0
        %1637 = vmatpush1.bf16.msra.mxu0 0
        %1638 = vmatprep.mubr.bf16.mxu0 0
        %1639 = vmatmul.mubr.bf16.gmra.mrb[0].mxu0 %v1399
        %v1640 = vpop.f32.mrb[0].mxu0
        %v1641 = vadd.f32 %v1201, %v1640
        %v1642 = vpop.f32.mrb[0].mxu0
        %v1643 = vadd.f32 %v1205, %v1642
        %v1644 = vpop.f32.mrb[0].mxu0
        %v1645 = vpop.f32.mrb[0].mxu0
        %1646 = vdwg.mxu0
        %1647 = vmatprep.subr.bf16.mxu0 %v1347
        %1648 = vmatpush1.bf16.msra.mxu0 %v1346
        %1649 = vmatprep.subr.bf16.mxu0 %v1363
        %1650 = vmatpush1.bf16.msra.mxu0 %v1362
        %1651 = vmatprep.subr.bf16.mxu0 0
        %1652 = vmatpush1.bf16.msra.mxu0 0
        %1653 = vmatprep.subr.bf16.mxu0 0
        %1654 = vmatpush1.bf16.msra.mxu0 0
        %1655 = vmatprep.subr.bf16.mxu0 0
        %1656 = vmatpush1.bf16.msra.mxu0 0
        %1657 = vmatprep.subr.bf16.mxu0 0
        %1658 = vmatpush1.bf16.msra.mxu0 0
        %1659 = vmatprep.subr.bf16.mxu0 0
        %1660 = vmatpush1.bf16.msra.mxu0 0
        %1661 = vmatprep.subr.bf16.mxu0 0
        %1662 = vmatpush1.bf16.msra.mxu0 0
        %1663 = vmatprep.subr.bf16.mxu0 0
        %1664 = vmatpush1.bf16.msra.mxu0 0
        %1665 = vmatprep.subr.bf16.mxu0 0
        %1666 = vmatpush1.bf16.msra.mxu0 0
        %1667 = vmatprep.subr.bf16.mxu0 0
        %1668 = vmatpush1.bf16.msra.mxu0 0
        %1669 = vmatprep.subr.bf16.mxu0 0
        %1670 = vmatpush1.bf16.msra.mxu0 0
        %1671 = vmatprep.subr.bf16.mxu0 0
        %1672 = vmatpush1.bf16.msra.mxu0 0
        %1673 = vmatprep.subr.bf16.mxu0 0
        %1674 = vmatpush1.bf16.msra.mxu0 0
        %1675 = vmatprep.subr.bf16.mxu0 0
        %1676 = vmatpush1.bf16.msra.mxu0 0
        %1677 = vmatprep.subr.bf16.mxu0 0
        %1678 = vmatpush1.bf16.msra.mxu0 0
        %1679 = vmatprep.mubr.bf16.mxu0 0
        %1680 = vmatmul.mubr.bf16.gmra.mrb[0].mxu0 %v1399
        %v1681 = vpop.f32.mrb[0].mxu0
        %v1682 = vadd.f32 %v1209, %v1681
        %v1683 = vpop.f32.mrb[0].mxu0
        %v1684 = vadd.f32 %v1213, %v1683
        %v1685 = vpop.f32.mrb[0].mxu0
        %v1686 = vpop.f32.mrb[0].mxu0
        %1687 = vdwg.mxu0
        %1688 = vmatprep.subr.bf16.mxu0 %v1349
        %1689 = vmatpush1.bf16.msra.mxu0 %v1348
        %1690 = vmatprep.subr.bf16.mxu0 %v1365
        %1691 = vmatpush1.bf16.msra.mxu0 %v1364
        %1692 = vmatprep.subr.bf16.mxu0 0
        %1693 = vmatpush1.bf16.msra.mxu0 0
        %1694 = vmatprep.subr.bf16.mxu0 0
        %1695 = vmatpush1.bf16.msra.mxu0 0
        %1696 = vmatprep.subr.bf16.mxu0 0
        %1697 = vmatpush1.bf16.msra.mxu0 0
        %1698 = vmatprep.subr.bf16.mxu0 0
        %1699 = vmatpush1.bf16.msra.mxu0 0
        %1700 = vmatprep.subr.bf16.mxu0 0
        %1701 = vmatpush1.bf16.msra.mxu0 0
        %1702 = vmatprep.subr.bf16.mxu0 0
        %1703 = vmatpush1.bf16.msra.mxu0 0
        %1704 = vmatprep.subr.bf16.mxu0 0
        %1705 = vmatpush1.bf16.msra.mxu0 0
        %1706 = vmatprep.subr.bf16.mxu0 0
        %1707 = vmatpush1.bf16.msra.mxu0 0
        %1708 = vmatprep.subr.bf16.mxu0 0
        %1709 = vmatpush1.bf16.msra.mxu0 0
        %1710 = vmatprep.subr.bf16.mxu0 0
        %1711 = vmatpush1.bf16.msra.mxu0 0
        %1712 = vmatprep.subr.bf16.mxu0 0
        %1713 = vmatpush1.bf16.msra.mxu0 0
        %1714 = vmatprep.subr.bf16.mxu0 0
        %1715 = vmatpush1.bf16.msra.mxu0 0
        %1716 = vmatprep.subr.bf16.mxu0 0
        %1717 = vmatpush1.bf16.msra.mxu0 0
        %1718 = vmatprep.subr.bf16.mxu0 0
        %1719 = vmatpush1.bf16.msra.mxu0 0
        %1720 = vmatprep.mubr.bf16.mxu0 0
        %1721 = vmatmul.mubr.bf16.gmra.mrb[0].mxu0 %v1399
        %v1722 = vpop.f32.mrb[0].mxu0
        %v1723 = vadd.f32 %v1217, %v1722
        %v1724 = vpop.f32.mrb[0].mxu0
        %v1725 = vadd.f32 %v1221, %v1724
        %v1726 = vpop.f32.mrb[0].mxu0
        %v1727 = vpop.f32.mrb[0].mxu0
        %1728 = vdwg.mxu0
        %v1729 = vmax.f32 %v1436, 0.0
        %v1730 = vmax.f32 %v1438, 0.0
        %v1731 = vmax.f32 %v1477, 0.0
        %v1732 = vmax.f32 %v1479, 0.0
        %v1733 = vmax.f32 %v1518, 0.0
        %v1734 = vmax.f32 %v1520, 0.0
        %v1735 = vmax.f32 %v1559, 0.0
        %v1736 = vmax.f32 %v1561, 0.0
        %v1737 = vmax.f32 %v1600, 0.0
        %v1738 = vmax.f32 %v1602, 0.0
        %v1739 = vmax.f32 %v1641, 0.0
        %v1740 = vmax.f32 %v1643, 0.0
        %v1741 = vmax.f32 %v1682, 0.0
        %v1742 = vmax.f32 %v1684, 0.0
        %v1743 = vmax.f32 %v1723, 0.0
        %v1744 = vmax.f32 %v1725, 0.0
        %v1745 = vpack.c.bf16 %v1729, %v1729
        %v1746 = vpack.c.bf16 %v1730, %v1730
        %v1747 = vpack.c.bf16 %v1731, %v1731
        %v1748 = vpack.c.bf16 %v1732, %v1732
        %v1749 = vpack.c.bf16 %v1733, %v1733
        %v1750 = vpack.c.bf16 %v1734, %v1734
        %v1751 = vpack.c.bf16 %v1735, %v1735
        %v1752 = vpack.c.bf16 %v1736, %v1736
        %v1753 = vpack.c.bf16 %v1737, %v1737
        %v1754 = vpack.c.bf16 %v1738, %v1738
        %v1755 = vpack.c.bf16 %v1739, %v1739
        %v1756 = vpack.c.bf16 %v1740, %v1740
        %v1757 = vpack.c.bf16 %v1741, %v1741
        %v1758 = vpack.c.bf16 %v1742, %v1742
        %v1759 = vpack.c.bf16 %v1743, %v1743
        %v1760 = vpack.c.bf16 %v1744, %v1744
        %v1761 = vld [vmem:[%s9] sm:$0xf]
        %v1762 = vld [vmem:[%s9 + $0x4] sm:$0xf]
        %v1763 = vld [vmem:[%s9 + $0x8] sm:$0xf]
        %v1764 = vld [vmem:[%s9 + $0xc] sm:$0xf]
        %v1765 = vld [vmem:[%s9 + $0x10] sm:$0xf]
        %v1766 = vld [vmem:[%s9 + $0x14] sm:$0xf]
        %v1767 = vld [vmem:[%s9 + $0x18] sm:$0xf]
        %v1768 = vld [vmem:[%s9 + $0x1c] sm:$0xf]
        %v1769 = vld [vmem:[%s9 + $0x20] sm:$0xf]
        %v1770 = vld [vmem:[%s9 + $0x24] sm:$0xf]
        %v1771 = vld [vmem:[%s9 + $0x28] sm:$0xf]
        %v1772 = vld [vmem:[%s9 + $0x2c] sm:$0xf]
        %v1773 = vld [vmem:[%s9 + $0x30] sm:$0xf]
        %v1774 = vld [vmem:[%s9 + $0x34] sm:$0xf]
        %v1775 = vld [vmem:[%s9 + $0x38] sm:$0xf]
        %v1776 = vld [vmem:[%s9 + $0x3c] sm:$0xf]
        %v1777 = vld [vmem:[%s9 + $0x40] sm:$0xf]
        %v1778 = vld [vmem:[%s9 + $0x44] sm:$0xf]
        %v1779 = vld [vmem:[%s9 + $0x48] sm:$0xf]
        %v1780 = vld [vmem:[%s9 + $0x4c] sm:$0xf]
        %v1781 = vld [vmem:[%s9 + $0x50] sm:$0xf]
        %v1782 = vld [vmem:[%s9 + $0x54] sm:$0xf]
        %v1783 = vld [vmem:[%s9 + $0x58] sm:$0xf]
        %v1784 = vld [vmem:[%s9 + $0x5c] sm:$0xf]
        %v1785 = vld [vmem:[%s9 + $0x60] sm:$0xf]
        %v1786 = vld [vmem:[%s9 + $0x64] sm:$0xf]
        %v1787 = vld [vmem:[%s9 + $0x68] sm:$0xf]
        %v1788 = vld [vmem:[%s9 + $0x6c] sm:$0xf]
        %v1789 = vld [vmem:[%s9 + $0x70] sm:$0xf]
        %v1790 = vld [vmem:[%s9 + $0x74] sm:$0xf]
        %v1791 = vld [vmem:[%s9 + $0x78] sm:$0xf]
        %v1792 = vld [vmem:[%s9 + $0x7c] sm:$0xf]
        %v1793 = vld [vmem:[%s9 + $0x80] sm:$0xf]
        %v1794 = vld [vmem:[%s9 + $0x84] sm:$0xf]
        %v1795 = vld [vmem:[%s9 + $0x88] sm:$0xf]
        %v1796 = vld [vmem:[%s9 + $0x8c] sm:$0xf]
        %v1797 = vld [vmem:[%s9 + $0x90] sm:$0xf]
        %v1798 = vld [vmem:[%s9 + $0x94] sm:$0xf]
        %v1799 = vld [vmem:[%s9 + $0x98] sm:$0xf]
        %v1800 = vld [vmem:[%s9 + $0x9c] sm:$0xf]
        %v1801 = vld [vmem:[%s9 + $0xa0] sm:$0xf]
        %v1802 = vld [vmem:[%s9 + $0xa4] sm:$0xf]
        %v1803 = vld [vmem:[%s9 + $0xa8] sm:$0xf]
        %v1804 = vld [vmem:[%s9 + $0xac] sm:$0xf]
        %v1805 = vld [vmem:[%s9 + $0xb0] sm:$0xf]
        %v1806 = vld [vmem:[%s9 + $0xb4] sm:$0xf]
        %v1807 = vld [vmem:[%s9 + $0xb8] sm:$0xf]
        %v1808 = vld [vmem:[%s9 + $0xbc] sm:$0xf]
        %v1809 = vld [vmem:[%s9 + $0xc0] sm:$0xf]
        %v1810 = vld [vmem:[%s9 + $0xc4] sm:$0xf]
        %v1811 = vld [vmem:[%s9 + $0xc8] sm:$0xf]
        %v1812 = vld [vmem:[%s9 + $0xcc] sm:$0xf]
        %v1813 = vld [vmem:[%s9 + $0xd0] sm:$0xf]
        %v1814 = vld [vmem:[%s9 + $0xd4] sm:$0xf]
        %v1815 = vld [vmem:[%s9 + $0xd8] sm:$0xf]
        %v1816 = vld [vmem:[%s9 + $0xdc] sm:$0xf]
        %v1817 = vld [vmem:[%s9 + $0xe0] sm:$0xf]
        %v1818 = vld [vmem:[%s9 + $0xe4] sm:$0xf]
        %v1819 = vld [vmem:[%s9 + $0xe8] sm:$0xf]
        %v1820 = vld [vmem:[%s9 + $0xec] sm:$0xf]
        %v1821 = vld [vmem:[%s9 + $0xf0] sm:$0xf]
        %v1822 = vld [vmem:[%s9 + $0xf4] sm:$0xf]
        %v1823 = vld [vmem:[%s9 + $0xf8] sm:$0xf]
        %v1824 = vld [vmem:[%s9 + $0xfc] sm:$0xf]
        %v1825 = vld [vmem:[%s9 + $0x100] sm:$0xf]
        %v1826 = vld [vmem:[%s9 + $0x104] sm:$0xf]
        %v1827 = vld [vmem:[%s9 + $0x108] sm:$0xf]
        %v1828 = vld [vmem:[%s9 + $0x10c] sm:$0xf]
        %v1829 = vld [vmem:[%s9 + $0x110] sm:$0xf]
        %v1830 = vld [vmem:[%s9 + $0x114] sm:$0xf]
        %v1831 = vld [vmem:[%s9 + $0x118] sm:$0xf]
        %v1832 = vld [vmem:[%s9 + $0x11c] sm:$0xf]
        %v1833 = vld [vmem:[%s9 + $0x120] sm:$0xf]
        %v1834 = vld [vmem:[%s9 + $0x124] sm:$0xf]
        %v1835 = vld [vmem:[%s9 + $0x128] sm:$0xf]
        %v1836 = vld [vmem:[%s9 + $0x12c] sm:$0xf]
        %v1837 = vld [vmem:[%s9 + $0x130] sm:$0xf]
        %v1838 = vld [vmem:[%s9 + $0x134] sm:$0xf]
        %v1839 = vld [vmem:[%s9 + $0x138] sm:$0xf]
        %v1840 = vld [vmem:[%s9 + $0x13c] sm:$0xf]
        %v1841 = vld [vmem:[%s9 + $0x140] sm:$0xf]
        %v1842 = vld [vmem:[%s9 + $0x144] sm:$0xf]
        %v1843 = vld [vmem:[%s9 + $0x148] sm:$0xf]
        %v1844 = vld [vmem:[%s9 + $0x14c] sm:$0xf]
        %v1845 = vld [vmem:[%s9 + $0x150] sm:$0xf]
        %v1846 = vld [vmem:[%s9 + $0x154] sm:$0xf]
        %v1847 = vld [vmem:[%s9 + $0x158] sm:$0xf]
        %v1848 = vld [vmem:[%s9 + $0x15c] sm:$0xf]
        %v1849 = vld [vmem:[%s9 + $0x160] sm:$0xf]
        %v1850 = vld [vmem:[%s9 + $0x164] sm:$0xf]
        %v1851 = vld [vmem:[%s9 + $0x168] sm:$0xf]
        %v1852 = vld [vmem:[%s9 + $0x16c] sm:$0xf]
        %v1853 = vld [vmem:[%s9 + $0x170] sm:$0xf]
        %v1854 = vld [vmem:[%s9 + $0x174] sm:$0xf]
        %v1855 = vld [vmem:[%s9 + $0x178] sm:$0xf]
        %v1856 = vld [vmem:[%s9 + $0x17c] sm:$0xf]
        %v1857 = vld [vmem:[%s9 + $0x180] sm:$0xf]
        %v1858 = vld [vmem:[%s9 + $0x184] sm:$0xf]
        %v1859 = vld [vmem:[%s9 + $0x188] sm:$0xf]
        %v1860 = vld [vmem:[%s9 + $0x18c] sm:$0xf]
        %v1861 = vld [vmem:[%s9 + $0x190] sm:$0xf]
        %v1862 = vld [vmem:[%s9 + $0x194] sm:$0xf]
        %v1863 = vld [vmem:[%s9 + $0x198] sm:$0xf]
        %v1864 = vld [vmem:[%s9 + $0x19c] sm:$0xf]
        %v1865 = vld [vmem:[%s9 + $0x1a0] sm:$0xf]
        %v1866 = vld [vmem:[%s9 + $0x1a4] sm:$0xf]
        %v1867 = vld [vmem:[%s9 + $0x1a8] sm:$0xf]
        %v1868 = vld [vmem:[%s9 + $0x1ac] sm:$0xf]
        %v1869 = vld [vmem:[%s9 + $0x1b0] sm:$0xf]
        %v1870 = vld [vmem:[%s9 + $0x1b4] sm:$0xf]
        %v1871 = vld [vmem:[%s9 + $0x1b8] sm:$0xf]
        %v1872 = vld [vmem:[%s9 + $0x1bc] sm:$0xf]
        %v1873 = vld [vmem:[%s9 + $0x1c0] sm:$0xf]
        %v1874 = vld [vmem:[%s9 + $0x1c4] sm:$0xf]
        %v1875 = vld [vmem:[%s9 + $0x1c8] sm:$0xf]
        %v1876 = vld [vmem:[%s9 + $0x1cc] sm:$0xf]
        %v1877 = vld [vmem:[%s9 + $0x1d0] sm:$0xf]
        %v1878 = vld [vmem:[%s9 + $0x1d4] sm:$0xf]
        %v1879 = vld [vmem:[%s9 + $0x1d8] sm:$0xf]
        %v1880 = vld [vmem:[%s9 + $0x1dc] sm:$0xf]
        %v1881 = vld [vmem:[%s9 + $0x1e0] sm:$0xf]
        %v1882 = vld [vmem:[%s9 + $0x1e4] sm:$0xf]
        %v1883 = vld [vmem:[%s9 + $0x1e8] sm:$0xf]
        %v1884 = vld [vmem:[%s9 + $0x1ec] sm:$0xf]
        %v1885 = vld [vmem:[%s9 + $0x1f0] sm:$0xf]
        %v1886 = vld [vmem:[%s9 + $0x1f4] sm:$0xf]
        %v1887 = vld [vmem:[%s9 + $0x1f8] sm:$0xf]
        %v1888 = vld [vmem:[%s9 + $0x1fc] sm:$0xf]
        %v1889 = vld [vmem:[%s9 + $0x200] sm:$0xf]
        %v1890 = vld [vmem:[%s9 + $0x204] sm:$0xf]
        %v1891 = vld [vmem:[%s9 + $0x208] sm:$0xf]
        %v1892 = vld [vmem:[%s9 + $0x20c] sm:$0xf]
        %v1893 = vld [vmem:[%s9 + $0x210] sm:$0xf]
        %v1894 = vld [vmem:[%s9 + $0x214] sm:$0xf]
        %v1895 = vld [vmem:[%s9 + $0x218] sm:$0xf]
        %v1896 = vld [vmem:[%s9 + $0x21c] sm:$0xf]
        %v1897 = vld [vmem:[%s9 + $0x220] sm:$0xf]
        %v1898 = vld [vmem:[%s9 + $0x224] sm:$0xf]
        %v1899 = vld [vmem:[%s9 + $0x228] sm:$0xf]
        %v1900 = vld [vmem:[%s9 + $0x22c] sm:$0xf]
        %v1901 = vld [vmem:[%s9 + $0x230] sm:$0xf]
        %v1902 = vld [vmem:[%s9 + $0x234] sm:$0xf]
        %v1903 = vld [vmem:[%s9 + $0x238] sm:$0xf]
        %v1904 = vld [vmem:[%s9 + $0x23c] sm:$0xf]
        %v1905 = vld [vmem:[%s9 + $0x240] sm:$0xf]
        %v1906 = vld [vmem:[%s9 + $0x244] sm:$0xf]
        %v1907 = vld [vmem:[%s9 + $0x248] sm:$0xf]
        %v1908 = vld [vmem:[%s9 + $0x24c] sm:$0xf]
        %v1909 = vld [vmem:[%s9 + $0x250] sm:$0xf]
        %v1910 = vld [vmem:[%s9 + $0x254] sm:$0xf]
        %v1911 = vld [vmem:[%s9 + $0x258] sm:$0xf]
        %v1912 = vld [vmem:[%s9 + $0x25c] sm:$0xf]
        %v1913 = vld [vmem:[%s9 + $0x260] sm:$0xf]
        %v1914 = vld [vmem:[%s9 + $0x264] sm:$0xf]
        %v1915 = vld [vmem:[%s9 + $0x268] sm:$0xf]
        %v1916 = vld [vmem:[%s9 + $0x26c] sm:$0xf]
        %v1917 = vld [vmem:[%s9 + $0x270] sm:$0xf]
        %v1918 = vld [vmem:[%s9 + $0x274] sm:$0xf]
        %v1919 = vld [vmem:[%s9 + $0x278] sm:$0xf]
        %v1920 = vld [vmem:[%s9 + $0x27c] sm:$0xf]
        %v1921 = vld [vmem:[%s9 + $0x280] sm:$0xf]
        %v1922 = vld [vmem:[%s9 + $0x284] sm:$0xf]
        %v1923 = vld [vmem:[%s9 + $0x288] sm:$0xf]
        %v1924 = vld [vmem:[%s9 + $0x28c] sm:$0xf]
        %v1925 = vld [vmem:[%s9 + $0x290] sm:$0xf]
        %v1926 = vld [vmem:[%s9 + $0x294] sm:$0xf]
        %v1927 = vld [vmem:[%s9 + $0x298] sm:$0xf]
        %v1928 = vld [vmem:[%s9 + $0x29c] sm:$0xf]
        %v1929 = vld [vmem:[%s9 + $0x2a0] sm:$0xf]
        %v1930 = vld [vmem:[%s9 + $0x2a4] sm:$0xf]
        %v1931 = vld [vmem:[%s9 + $0x2a8] sm:$0xf]
        %v1932 = vld [vmem:[%s9 + $0x2ac] sm:$0xf]
        %v1933 = vld [vmem:[%s9 + $0x2b0] sm:$0xf]
        %v1934 = vld [vmem:[%s9 + $0x2b4] sm:$0xf]
        %v1935 = vld [vmem:[%s9 + $0x2b8] sm:$0xf]
        %v1936 = vld [vmem:[%s9 + $0x2bc] sm:$0xf]
        %v1937 = vld [vmem:[%s9 + $0x2c0] sm:$0xf]
        %v1938 = vld [vmem:[%s9 + $0x2c4] sm:$0xf]
        %v1939 = vld [vmem:[%s9 + $0x2c8] sm:$0xf]
        %v1940 = vld [vmem:[%s9 + $0x2cc] sm:$0xf]
        %v1941 = vld [vmem:[%s9 + $0x2d0] sm:$0xf]
        %v1942 = vld [vmem:[%s9 + $0x2d4] sm:$0xf]
        %v1943 = vld [vmem:[%s9 + $0x2d8] sm:$0xf]
        %v1944 = vld [vmem:[%s9 + $0x2dc] sm:$0xf]
        %v1945 = vld [vmem:[%s9 + $0x2e0] sm:$0xf]
        %v1946 = vld [vmem:[%s9 + $0x2e4] sm:$0xf]
        %v1947 = vld [vmem:[%s9 + $0x2e8] sm:$0xf]
        %v1948 = vld [vmem:[%s9 + $0x2ec] sm:$0xf]
        %v1949 = vld [vmem:[%s9 + $0x2f0] sm:$0xf]
        %v1950 = vld [vmem:[%s9 + $0x2f4] sm:$0xf]
        %v1951 = vld [vmem:[%s9 + $0x2f8] sm:$0xf]
        %v1952 = vld [vmem:[%s9 + $0x2fc] sm:$0xf]
        %v1953 = vld [vmem:[%s9 + $0x300] sm:$0xf]
        %v1954 = vld [vmem:[%s9 + $0x304] sm:$0xf]
        %v1955 = vld [vmem:[%s9 + $0x308] sm:$0xf]
        %v1956 = vld [vmem:[%s9 + $0x30c] sm:$0xf]
        %v1957 = vld [vmem:[%s9 + $0x310] sm:$0xf]
        %v1958 = vld [vmem:[%s9 + $0x314] sm:$0xf]
        %v1959 = vld [vmem:[%s9 + $0x318] sm:$0xf]
        %v1960 = vld [vmem:[%s9 + $0x31c] sm:$0xf]
        %v1961 = vld [vmem:[%s9 + $0x320] sm:$0xf]
        %v1962 = vld [vmem:[%s9 + $0x324] sm:$0xf]
        %v1963 = vld [vmem:[%s9 + $0x328] sm:$0xf]
        %v1964 = vld [vmem:[%s9 + $0x32c] sm:$0xf]
        %v1965 = vld [vmem:[%s9 + $0x330] sm:$0xf]
        %v1966 = vld [vmem:[%s9 + $0x334] sm:$0xf]
        %v1967 = vld [vmem:[%s9 + $0x338] sm:$0xf]
        %v1968 = vld [vmem:[%s9 + $0x33c] sm:$0xf]
        %v1969 = vld [vmem:[%s9 + $0x340] sm:$0xf]
        %v1970 = vld [vmem:[%s9 + $0x344] sm:$0xf]
        %v1971 = vld [vmem:[%s9 + $0x348] sm:$0xf]
        %v1972 = vld [vmem:[%s9 + $0x34c] sm:$0xf]
        %v1973 = vld [vmem:[%s9 + $0x350] sm:$0xf]
        %v1974 = vld [vmem:[%s9 + $0x354] sm:$0xf]
        %v1975 = vld [vmem:[%s9 + $0x358] sm:$0xf]
        %v1976 = vld [vmem:[%s9 + $0x35c] sm:$0xf]
        %v1977 = vld [vmem:[%s9 + $0x360] sm:$0xf]
        %v1978 = vld [vmem:[%s9 + $0x364] sm:$0xf]
        %v1979 = vld [vmem:[%s9 + $0x368] sm:$0xf]
        %v1980 = vld [vmem:[%s9 + $0x36c] sm:$0xf]
        %v1981 = vld [vmem:[%s9 + $0x370] sm:$0xf]
        %v1982 = vld [vmem:[%s9 + $0x374] sm:$0xf]
        %v1983 = vld [vmem:[%s9 + $0x378] sm:$0xf]
        %v1984 = vld [vmem:[%s9 + $0x37c] sm:$0xf]
        %v1985 = vld [vmem:[%s9 + $0x380] sm:$0xf]
        %v1986 = vld [vmem:[%s9 + $0x384] sm:$0xf]
        %v1987 = vld [vmem:[%s9 + $0x388] sm:$0xf]
        %v1988 = vld [vmem:[%s9 + $0x38c] sm:$0xf]
        %v1989 = vld [vmem:[%s9 + $0x390] sm:$0xf]
        %v1990 = vld [vmem:[%s9 + $0x394] sm:$0xf]
        %v1991 = vld [vmem:[%s9 + $0x398] sm:$0xf]
        %v1992 = vld [vmem:[%s9 + $0x39c] sm:$0xf]
        %v1993 = vld [vmem:[%s9 + $0x3a0] sm:$0xf]
        %v1994 = vld [vmem:[%s9 + $0x3a4] sm:$0xf]
        %v1995 = vld [vmem:[%s9 + $0x3a8] sm:$0xf]
        %v1996 = vld [vmem:[%s9 + $0x3ac] sm:$0xf]
        %v1997 = vld [vmem:[%s9 + $0x3b0] sm:$0xf]
        %v1998 = vld [vmem:[%s9 + $0x3b4] sm:$0xf]
        %v1999 = vld [vmem:[%s9 + $0x3b8] sm:$0xf]
        %v2000 = vld [vmem:[%s9 + $0x3bc] sm:$0xf]
        %v2001 = vld [vmem:[%s9 + $0x3c0] sm:$0xf]
        %v2002 = vld [vmem:[%s9 + $0x3c4] sm:$0xf]
        %v2003 = vld [vmem:[%s9 + $0x3c8] sm:$0xf]
        %v2004 = vld [vmem:[%s9 + $0x3cc] sm:$0xf]
        %v2005 = vld [vmem:[%s9 + $0x3d0] sm:$0xf]
        %v2006 = vld [vmem:[%s9 + $0x3d4] sm:$0xf]
        %v2007 = vld [vmem:[%s9 + $0x3d8] sm:$0xf]
        %v2008 = vld [vmem:[%s9 + $0x3dc] sm:$0xf]
        %v2009 = vld [vmem:[%s9 + $0x3e0] sm:$0xf]
        %v2010 = vld [vmem:[%s9 + $0x3e4] sm:$0xf]
        %v2011 = vld [vmem:[%s9 + $0x3e8] sm:$0xf]
        %v2012 = vld [vmem:[%s9 + $0x3ec] sm:$0xf]
        %v2013 = vld [vmem:[%s9 + $0x3f0] sm:$0xf]
        %v2014 = vld [vmem:[%s9 + $0x3f4] sm:$0xf]
        %v2015 = vld [vmem:[%s9 + $0x3f8] sm:$0xf]
        %v2016 = vld [vmem:[%s9 + $0x3fc] sm:$0xf]
        %v2017 = vld [vmem:[%s10] sm:$0x1]
        %v2019 = vlaneseq
        %v2020 = vshrl.u32 %v2019, 7
        %v2021 = vsub.s32 0, %v2020
        %v2022 = vrot.slane %v2017, %v2021
        %v2280 = vunpack.c.l.b16 %v1761
        %v2281 = vunpack.c.l.b16 %v1762
        %v2282 = vunpack.c.l.b16 %v1763
        %v2283 = vunpack.c.l.b16 %v1764
        %v2284 = vunpack.c.l.b16 %v1765
        %v2285 = vunpack.c.l.b16 %v1766
        %v2286 = vunpack.c.l.b16 %v1767
        %v2287 = vunpack.c.l.b16 %v1768
        %v2288 = vunpack.c.l.b16 %v1769
        %v2289 = vunpack.c.l.b16 %v1770
        %v2290 = vunpack.c.l.b16 %v1771
        %v2291 = vunpack.c.l.b16 %v1772
        %v2292 = vunpack.c.l.b16 %v1773
        %v2293 = vunpack.c.l.b16 %v1774
        %v2294 = vunpack.c.l.b16 %v1775
        %v2295 = vunpack.c.l.b16 %v1776
        %v2296 = vunpack.c.l.b16 %v1777
        %v2297 = vunpack.c.l.b16 %v1778
        %v2298 = vunpack.c.l.b16 %v1779
        %v2299 = vunpack.c.l.b16 %v1780
        %v2300 = vunpack.c.l.b16 %v1781
        %v2301 = vunpack.c.l.b16 %v1782
        %v2302 = vunpack.c.l.b16 %v1783
        %v2303 = vunpack.c.l.b16 %v1784
        %v2304 = vunpack.c.l.b16 %v1785
        %v2305 = vunpack.c.l.b16 %v1786
        %v2306 = vunpack.c.l.b16 %v1787
        %v2307 = vunpack.c.l.b16 %v1788
        %v2308 = vunpack.c.l.b16 %v1789
        %v2309 = vunpack.c.l.b16 %v1790
        %v2310 = vunpack.c.l.b16 %v1791
        %v2311 = vunpack.c.l.b16 %v1792
        %v2312 = vunpack.c.l.b16 %v1793
        %v2313 = vunpack.c.l.b16 %v1794
        %v2314 = vunpack.c.l.b16 %v1795
        %v2315 = vunpack.c.l.b16 %v1796
        %v2316 = vunpack.c.l.b16 %v1797
        %v2317 = vunpack.c.l.b16 %v1798
        %v2318 = vunpack.c.l.b16 %v1799
        %v2319 = vunpack.c.l.b16 %v1800
        %v2320 = vunpack.c.l.b16 %v1801
        %v2321 = vunpack.c.l.b16 %v1802
        %v2322 = vunpack.c.l.b16 %v1803
        %v2323 = vunpack.c.l.b16 %v1804
        %v2324 = vunpack.c.l.b16 %v1805
        %v2325 = vunpack.c.l.b16 %v1806
        %v2326 = vunpack.c.l.b16 %v1807
        %v2327 = vunpack.c.l.b16 %v1808
        %v2328 = vunpack.c.l.b16 %v1809
        %v2329 = vunpack.c.l.b16 %v1810
        %v2330 = vunpack.c.l.b16 %v1811
        %v2331 = vunpack.c.l.b16 %v1812
        %v2332 = vunpack.c.l.b16 %v1813
        %v2333 = vunpack.c.l.b16 %v1814
        %v2334 = vunpack.c.l.b16 %v1815
        %v2335 = vunpack.c.l.b16 %v1816
        %v2336 = vunpack.c.l.b16 %v1817
        %v2337 = vunpack.c.l.b16 %v1818
        %v2338 = vunpack.c.l.b16 %v1819
        %v2339 = vunpack.c.l.b16 %v1820
        %v2340 = vunpack.c.l.b16 %v1821
        %v2341 = vunpack.c.l.b16 %v1822
        %v2342 = vunpack.c.l.b16 %v1823
        %v2343 = vunpack.c.l.b16 %v1824
        %v2344 = vunpack.c.l.b16 %v1825
        %v2345 = vunpack.c.l.b16 %v1826
        %v2346 = vunpack.c.l.b16 %v1827
        %v2347 = vunpack.c.l.b16 %v1828
        %v2348 = vunpack.c.l.b16 %v1829
        %v2349 = vunpack.c.l.b16 %v1830
        %v2350 = vunpack.c.l.b16 %v1831
        %v2351 = vunpack.c.l.b16 %v1832
        %v2352 = vunpack.c.l.b16 %v1833
        %v2353 = vunpack.c.l.b16 %v1834
        %v2354 = vunpack.c.l.b16 %v1835
        %v2355 = vunpack.c.l.b16 %v1836
        %v2356 = vunpack.c.l.b16 %v1837
        %v2357 = vunpack.c.l.b16 %v1838
        %v2358 = vunpack.c.l.b16 %v1839
        %v2359 = vunpack.c.l.b16 %v1840
        %v2360 = vunpack.c.l.b16 %v1841
        %v2361 = vunpack.c.l.b16 %v1842
        %v2362 = vunpack.c.l.b16 %v1843
        %v2363 = vunpack.c.l.b16 %v1844
        %v2364 = vunpack.c.l.b16 %v1845
        %v2365 = vunpack.c.l.b16 %v1846
        %v2366 = vunpack.c.l.b16 %v1847
        %v2367 = vunpack.c.l.b16 %v1848
        %v2368 = vunpack.c.l.b16 %v1849
        %v2369 = vunpack.c.l.b16 %v1850
        %v2370 = vunpack.c.l.b16 %v1851
        %v2371 = vunpack.c.l.b16 %v1852
        %v2372 = vunpack.c.l.b16 %v1853
        %v2373 = vunpack.c.l.b16 %v1854
        %v2374 = vunpack.c.l.b16 %v1855
        %v2375 = vunpack.c.l.b16 %v1856
        %v2376 = vunpack.c.l.b16 %v1857
        %v2377 = vunpack.c.l.b16 %v1858
        %v2378 = vunpack.c.l.b16 %v1859
        %v2379 = vunpack.c.l.b16 %v1860
        %v2380 = vunpack.c.l.b16 %v1861
        %v2381 = vunpack.c.l.b16 %v1862
        %v2382 = vunpack.c.l.b16 %v1863
        %v2383 = vunpack.c.l.b16 %v1864
        %v2384 = vunpack.c.l.b16 %v1865
        %v2385 = vunpack.c.l.b16 %v1866
        %v2386 = vunpack.c.l.b16 %v1867
        %v2387 = vunpack.c.l.b16 %v1868
        %v2388 = vunpack.c.l.b16 %v1869
        %v2389 = vunpack.c.l.b16 %v1870
        %v2390 = vunpack.c.l.b16 %v1871
        %v2391 = vunpack.c.l.b16 %v1872
        %v2392 = vunpack.c.l.b16 %v1873
        %v2393 = vunpack.c.l.b16 %v1874
        %v2394 = vunpack.c.l.b16 %v1875
        %v2395 = vunpack.c.l.b16 %v1876
        %v2396 = vunpack.c.l.b16 %v1877
        %v2397 = vunpack.c.l.b16 %v1878
        %v2398 = vunpack.c.l.b16 %v1879
        %v2399 = vunpack.c.l.b16 %v1880
        %v2400 = vunpack.c.l.b16 %v1881
        %v2401 = vunpack.c.l.b16 %v1882
        %v2402 = vunpack.c.l.b16 %v1883
        %v2403 = vunpack.c.l.b16 %v1884
        %v2404 = vunpack.c.l.b16 %v1885
        %v2405 = vunpack.c.l.b16 %v1886
        %v2406 = vunpack.c.l.b16 %v1887
        %v2407 = vunpack.c.l.b16 %v1888
        %v2408 = vunpack.c.l.b16 %v1889
        %v2409 = vunpack.c.l.b16 %v1890
        %v2410 = vunpack.c.l.b16 %v1891
        %v2411 = vunpack.c.l.b16 %v1892
        %v2412 = vunpack.c.l.b16 %v1893
        %v2413 = vunpack.c.l.b16 %v1894
        %v2414 = vunpack.c.l.b16 %v1895
        %v2415 = vunpack.c.l.b16 %v1896
        %v2416 = vunpack.c.l.b16 %v1897
        %v2417 = vunpack.c.l.b16 %v1898
        %v2418 = vunpack.c.l.b16 %v1899
        %v2419 = vunpack.c.l.b16 %v1900
        %v2420 = vunpack.c.l.b16 %v1901
        %v2421 = vunpack.c.l.b16 %v1902
        %v2422 = vunpack.c.l.b16 %v1903
        %v2423 = vunpack.c.l.b16 %v1904
        %v2424 = vunpack.c.l.b16 %v1905
        %v2425 = vunpack.c.l.b16 %v1906
        %v2426 = vunpack.c.l.b16 %v1907
        %v2427 = vunpack.c.l.b16 %v1908
        %v2428 = vunpack.c.l.b16 %v1909
        %v2429 = vunpack.c.l.b16 %v1910
        %v2430 = vunpack.c.l.b16 %v1911
        %v2431 = vunpack.c.l.b16 %v1912
        %v2432 = vunpack.c.l.b16 %v1913
        %v2433 = vunpack.c.l.b16 %v1914
        %v2434 = vunpack.c.l.b16 %v1915
        %v2435 = vunpack.c.l.b16 %v1916
        %v2436 = vunpack.c.l.b16 %v1917
        %v2437 = vunpack.c.l.b16 %v1918
        %v2438 = vunpack.c.l.b16 %v1919
        %v2439 = vunpack.c.l.b16 %v1920
        %v2440 = vunpack.c.l.b16 %v1921
        %v2441 = vunpack.c.l.b16 %v1922
        %v2442 = vunpack.c.l.b16 %v1923
        %v2443 = vunpack.c.l.b16 %v1924
        %v2444 = vunpack.c.l.b16 %v1925
        %v2445 = vunpack.c.l.b16 %v1926
        %v2446 = vunpack.c.l.b16 %v1927
        %v2447 = vunpack.c.l.b16 %v1928
        %v2448 = vunpack.c.l.b16 %v1929
        %v2449 = vunpack.c.l.b16 %v1930
        %v2450 = vunpack.c.l.b16 %v1931
        %v2451 = vunpack.c.l.b16 %v1932
        %v2452 = vunpack.c.l.b16 %v1933
        %v2453 = vunpack.c.l.b16 %v1934
        %v2454 = vunpack.c.l.b16 %v1935
        %v2455 = vunpack.c.l.b16 %v1936
        %v2456 = vunpack.c.l.b16 %v1937
        %v2457 = vunpack.c.l.b16 %v1938
        %v2458 = vunpack.c.l.b16 %v1939
        %v2459 = vunpack.c.l.b16 %v1940
        %v2460 = vunpack.c.l.b16 %v1941
        %v2461 = vunpack.c.l.b16 %v1942
        %v2462 = vunpack.c.l.b16 %v1943
        %v2463 = vunpack.c.l.b16 %v1944
        %v2464 = vunpack.c.l.b16 %v1945
        %v2465 = vunpack.c.l.b16 %v1946
        %v2466 = vunpack.c.l.b16 %v1947
        %v2467 = vunpack.c.l.b16 %v1948
        %v2468 = vunpack.c.l.b16 %v1949
        %v2469 = vunpack.c.l.b16 %v1950
        %v2470 = vunpack.c.l.b16 %v1951
        %v2471 = vunpack.c.l.b16 %v1952
        %v2472 = vunpack.c.l.b16 %v1953
        %v2473 = vunpack.c.l.b16 %v1954
        %v2474 = vunpack.c.l.b16 %v1955
        %v2475 = vunpack.c.l.b16 %v1956
        %v2476 = vunpack.c.l.b16 %v1957
        %v2477 = vunpack.c.l.b16 %v1958
        %v2478 = vunpack.c.l.b16 %v1959
        %v2479 = vunpack.c.l.b16 %v1960
        %v2480 = vunpack.c.l.b16 %v1961
        %v2481 = vunpack.c.l.b16 %v1962
        %v2482 = vunpack.c.l.b16 %v1963
        %v2483 = vunpack.c.l.b16 %v1964
        %v2484 = vunpack.c.l.b16 %v1965
        %v2485 = vunpack.c.l.b16 %v1966
        %v2486 = vunpack.c.l.b16 %v1967
        %v2487 = vunpack.c.l.b16 %v1968
        %v2488 = vunpack.c.l.b16 %v1969
        %v2489 = vunpack.c.l.b16 %v1970
        %v2490 = vunpack.c.l.b16 %v1971
        %v2491 = vunpack.c.l.b16 %v1972
        %v2492 = vunpack.c.l.b16 %v1973
        %v2493 = vunpack.c.l.b16 %v1974
        %v2494 = vunpack.c.l.b16 %v1975
        %v2495 = vunpack.c.l.b16 %v1976
        %v2496 = vunpack.c.l.b16 %v1977
        %v2497 = vunpack.c.l.b16 %v1978
        %v2498 = vunpack.c.l.b16 %v1979
        %v2499 = vunpack.c.l.b16 %v1980
        %v2500 = vunpack.c.l.b16 %v1981
        %v2501 = vunpack.c.l.b16 %v1982
        %v2502 = vunpack.c.l.b16 %v1983
        %v2503 = vunpack.c.l.b16 %v1984
        %v2504 = vunpack.c.l.b16 %v1985
        %v2505 = vunpack.c.l.b16 %v1986
        %v2506 = vunpack.c.l.b16 %v1987
        %v2507 = vunpack.c.l.b16 %v1988
        %v2508 = vunpack.c.l.b16 %v1989
        %v2509 = vunpack.c.l.b16 %v1990
        %v2510 = vunpack.c.l.b16 %v1991
        %v2511 = vunpack.c.l.b16 %v1992
        %v2512 = vunpack.c.l.b16 %v1993
        %v2513 = vunpack.c.l.b16 %v1994
        %v2514 = vunpack.c.l.b16 %v1995
        %v2515 = vunpack.c.l.b16 %v1996
        %v2516 = vunpack.c.l.b16 %v1997
        %v2517 = vunpack.c.l.b16 %v1998
        %v2518 = vunpack.c.l.b16 %v1999
        %v2519 = vunpack.c.l.b16 %v2000
        %v2520 = vunpack.c.l.b16 %v2001
        %v2521 = vunpack.c.l.b16 %v2002
        %v2522 = vunpack.c.l.b16 %v2003
        %v2523 = vunpack.c.l.b16 %v2004
        %v2524 = vunpack.c.l.b16 %v2005
        %v2525 = vunpack.c.l.b16 %v2006
        %v2526 = vunpack.c.l.b16 %v2007
        %v2527 = vunpack.c.l.b16 %v2008
        %v2528 = vunpack.c.l.b16 %v2009
        %v2529 = vunpack.c.l.b16 %v2010
        %v2530 = vunpack.c.l.b16 %v2011
        %v2531 = vunpack.c.l.b16 %v2012
        %v2532 = vunpack.c.l.b16 %v2013
        %v2533 = vunpack.c.l.b16 %v2014
        %v2534 = vunpack.c.l.b16 %v2015
        %v2535 = vunpack.c.l.b16 %v2016
        %v2536 = vpack.c.b16 %v2281, %v2280
        %v2537 = vpack.c.b16 %v2283, %v2282
        %v2538 = vpack.c.b16 %v2285, %v2284
        %v2539 = vpack.c.b16 %v2287, %v2286
        %v2540 = vpack.c.b16 %v2289, %v2288
        %v2541 = vpack.c.b16 %v2291, %v2290
        %v2542 = vpack.c.b16 %v2293, %v2292
        %v2543 = vpack.c.b16 %v2295, %v2294
        %v2544 = vpack.c.b16 %v2297, %v2296
        %v2545 = vpack.c.b16 %v2299, %v2298
        %v2546 = vpack.c.b16 %v2301, %v2300
        %v2547 = vpack.c.b16 %v2303, %v2302
        %v2548 = vpack.c.b16 %v2305, %v2304
        %v2549 = vpack.c.b16 %v2307, %v2306
        %v2550 = vpack.c.b16 %v2309, %v2308
        %v2551 = vpack.c.b16 %v2311, %v2310
        %v2552 = vpack.c.b16 %v2313, %v2312
        %v2553 = vpack.c.b16 %v2315, %v2314
        %v2554 = vpack.c.b16 %v2317, %v2316
        %v2555 = vpack.c.b16 %v2319, %v2318
        %v2556 = vpack.c.b16 %v2321, %v2320
        %v2557 = vpack.c.b16 %v2323, %v2322
        %v2558 = vpack.c.b16 %v2325, %v2324
        %v2559 = vpack.c.b16 %v2327, %v2326
        %v2560 = vpack.c.b16 %v2329, %v2328
        %v2561 = vpack.c.b16 %v2331, %v2330
        %v2562 = vpack.c.b16 %v2333, %v2332
        %v2563 = vpack.c.b16 %v2335, %v2334
        %v2564 = vpack.c.b16 %v2337, %v2336
        %v2565 = vpack.c.b16 %v2339, %v2338
        %v2566 = vpack.c.b16 %v2341, %v2340
        %v2567 = vpack.c.b16 %v2343, %v2342
        %v2568 = vpack.c.b16 %v2345, %v2344
        %v2569 = vpack.c.b16 %v2347, %v2346
        %v2570 = vpack.c.b16 %v2349, %v2348
        %v2571 = vpack.c.b16 %v2351, %v2350
        %v2572 = vpack.c.b16 %v2353, %v2352
        %v2573 = vpack.c.b16 %v2355, %v2354
        %v2574 = vpack.c.b16 %v2357, %v2356
        %v2575 = vpack.c.b16 %v2359, %v2358
        %v2576 = vpack.c.b16 %v2361, %v2360
        %v2577 = vpack.c.b16 %v2363, %v2362
        %v2578 = vpack.c.b16 %v2365, %v2364
        %v2579 = vpack.c.b16 %v2367, %v2366
        %v2580 = vpack.c.b16 %v2369, %v2368
        %v2581 = vpack.c.b16 %v2371, %v2370
        %v2582 = vpack.c.b16 %v2373, %v2372
        %v2583 = vpack.c.b16 %v2375, %v2374
        %v2584 = vpack.c.b16 %v2377, %v2376
        %v2585 = vpack.c.b16 %v2379, %v2378
        %v2586 = vpack.c.b16 %v2381, %v2380
        %v2587 = vpack.c.b16 %v2383, %v2382
        %v2588 = vpack.c.b16 %v2385, %v2384
        %v2589 = vpack.c.b16 %v2387, %v2386
        %v2590 = vpack.c.b16 %v2389, %v2388
        %v2591 = vpack.c.b16 %v2391, %v2390
        %v2592 = vpack.c.b16 %v2393, %v2392
        %v2593 = vpack.c.b16 %v2395, %v2394
        %v2594 = vpack.c.b16 %v2397, %v2396
        %v2595 = vpack.c.b16 %v2399, %v2398
        %v2596 = vpack.c.b16 %v2401, %v2400
        %v2597 = vpack.c.b16 %v2403, %v2402
        %v2598 = vpack.c.b16 %v2405, %v2404
        %v2599 = vpack.c.b16 %v2407, %v2406
        %v2600 = vpack.c.b16 %v2409, %v2408
        %v2601 = vpack.c.b16 %v2411, %v2410
        %v2602 = vpack.c.b16 %v2413, %v2412
        %v2603 = vpack.c.b16 %v2415, %v2414
        %v2604 = vpack.c.b16 %v2417, %v2416
        %v2605 = vpack.c.b16 %v2419, %v2418
        %v2606 = vpack.c.b16 %v2421, %v2420
        %v2607 = vpack.c.b16 %v2423, %v2422
        %v2608 = vpack.c.b16 %v2425, %v2424
        %v2609 = vpack.c.b16 %v2427, %v2426
        %v2610 = vpack.c.b16 %v2429, %v2428
        %v2611 = vpack.c.b16 %v2431, %v2430
        %v2612 = vpack.c.b16 %v2433, %v2432
        %v2613 = vpack.c.b16 %v2435, %v2434
        %v2614 = vpack.c.b16 %v2437, %v2436
        %v2615 = vpack.c.b16 %v2439, %v2438
        %v2616 = vpack.c.b16 %v2441, %v2440
        %v2617 = vpack.c.b16 %v2443, %v2442
        %v2618 = vpack.c.b16 %v2445, %v2444
        %v2619 = vpack.c.b16 %v2447, %v2446
        %v2620 = vpack.c.b16 %v2449, %v2448
        %v2621 = vpack.c.b16 %v2451, %v2450
        %v2622 = vpack.c.b16 %v2453, %v2452
        %v2623 = vpack.c.b16 %v2455, %v2454
        %v2624 = vpack.c.b16 %v2457, %v2456
        %v2625 = vpack.c.b16 %v2459, %v2458
        %v2626 = vpack.c.b16 %v2461, %v2460
        %v2627 = vpack.c.b16 %v2463, %v2462
        %v2628 = vpack.c.b16 %v2465, %v2464
        %v2629 = vpack.c.b16 %v2467, %v2466
        %v2630 = vpack.c.b16 %v2469, %v2468
        %v2631 = vpack.c.b16 %v2471, %v2470
        %v2632 = vpack.c.b16 %v2473, %v2472
        %v2633 = vpack.c.b16 %v2475, %v2474
        %v2634 = vpack.c.b16 %v2477, %v2476
        %v2635 = vpack.c.b16 %v2479, %v2478
        %v2636 = vpack.c.b16 %v2481, %v2480
        %v2637 = vpack.c.b16 %v2483, %v2482
        %v2638 = vpack.c.b16 %v2485, %v2484
        %v2639 = vpack.c.b16 %v2487, %v2486
        %v2640 = vpack.c.b16 %v2489, %v2488
        %v2641 = vpack.c.b16 %v2491, %v2490
        %v2642 = vpack.c.b16 %v2493, %v2492
        %v2643 = vpack.c.b16 %v2495, %v2494
        %v2644 = vpack.c.b16 %v2497, %v2496
        %v2645 = vpack.c.b16 %v2499, %v2498
        %v2646 = vpack.c.b16 %v2501, %v2500
        %v2647 = vpack.c.b16 %v2503, %v2502
        %v2648 = vpack.c.b16 %v2505, %v2504
        %v2649 = vpack.c.b16 %v2507, %v2506
        %v2650 = vpack.c.b16 %v2509, %v2508
        %v2651 = vpack.c.b16 %v2511, %v2510
        %v2652 = vpack.c.b16 %v2513, %v2512
        %v2653 = vpack.c.b16 %v2515, %v2514
        %v2654 = vpack.c.b16 %v2517, %v2516
        %v2655 = vpack.c.b16 %v2519, %v2518
        %v2656 = vpack.c.b16 %v2521, %v2520
        %v2657 = vpack.c.b16 %v2523, %v2522
        %v2658 = vpack.c.b16 %v2525, %v2524
        %v2659 = vpack.c.b16 %v2527, %v2526
        %v2660 = vpack.c.b16 %v2529, %v2528
        %v2661 = vpack.c.b16 %v2531, %v2530
        %v2662 = vpack.c.b16 %v2533, %v2532
        %v2663 = vpack.c.b16 %v2535, %v2534
        %2792 = vmatprep.subr.bf16.mxu0 0
        %2793 = vmatpush1.bf16.msra.mxu0 %v2536
        %2794 = vmatprep.subr.bf16.mxu0 0
        %2795 = vmatpush1.bf16.msra.mxu0 %v2537
        %2796 = vmatprep.subr.bf16.mxu0 0
        %2797 = vmatpush1.bf16.msra.mxu0 %v2538
        %2798 = vmatprep.subr.bf16.mxu0 0
        %2799 = vmatpush1.bf16.msra.mxu0 %v2539
        %2800 = vmatprep.subr.bf16.mxu0 0
        %2801 = vmatpush1.bf16.msra.mxu0 %v2540
        %2802 = vmatprep.subr.bf16.mxu0 0
        %2803 = vmatpush1.bf16.msra.mxu0 %v2541
        %2804 = vmatprep.subr.bf16.mxu0 0
        %2805 = vmatpush1.bf16.msra.mxu0 %v2542
        %2806 = vmatprep.subr.bf16.mxu0 0
        %2807 = vmatpush1.bf16.msra.mxu0 %v2543
        %2808 = vmatprep.subr.bf16.mxu0 0
        %2809 = vmatpush1.bf16.msra.mxu0 %v2544
        %2810 = vmatprep.subr.bf16.mxu0 0
        %2811 = vmatpush1.bf16.msra.mxu0 %v2545
        %2812 = vmatprep.subr.bf16.mxu0 0
        %2813 = vmatpush1.bf16.msra.mxu0 %v2546
        %2814 = vmatprep.subr.bf16.mxu0 0
        %2815 = vmatpush1.bf16.msra.mxu0 %v2547
        %2816 = vmatprep.subr.bf16.mxu0 0
        %2817 = vmatpush1.bf16.msra.mxu0 %v2548
        %2818 = vmatprep.subr.bf16.mxu0 0
        %2819 = vmatpush1.bf16.msra.mxu0 %v2549
        %2820 = vmatprep.subr.bf16.mxu0 0
        %2821 = vmatpush1.bf16.msra.mxu0 %v2550
        %2822 = vmatprep.subr.bf16.mxu0 0
        %2823 = vmatpush1.bf16.msra.mxu0 %v2551
        %2824 = vmatprep.mubr.bf16.mxu0 %v1746
        %2825 = vmatmul.mubr.bf16.gmra.mrb[0].mxu0 %v1745
        %v2826 = vpop.f32.mrb[0].mxu0
        %v2827 = vadd.f32 %v2022, %v2826
        %v2828 = vpop.f32.mrb[0].mxu0
        %v2829 = vpop.f32.mrb[0].mxu0
        %v2830 = vpop.f32.mrb[0].mxu0
        %2831 = vdwg.mxu0
        %2832 = vmatprep.subr.bf16.mxu0 0
        %2833 = vmatpush1.bf16.msra.mxu0 %v2552
        %2834 = vmatprep.subr.bf16.mxu0 0
        %2835 = vmatpush1.bf16.msra.mxu0 %v2553
        %2836 = vmatprep.subr.bf16.mxu0 0
        %2837 = vmatpush1.bf16.msra.mxu0 %v2554
        %2838 = vmatprep.subr.bf16.mxu0 0
        %2839 = vmatpush1.bf16.msra.mxu0 %v2555
        %2840 = vmatprep.subr.bf16.mxu0 0
        %2841 = vmatpush1.bf16.msra.mxu0 %v2556
        %2842 = vmatprep.subr.bf16.mxu0 0
        %2843 = vmatpush1.bf16.msra.mxu0 %v2557
        %2844 = vmatprep.subr.bf16.mxu0 0
        %2845 = vmatpush1.bf16.msra.mxu0 %v2558
        %2846 = vmatprep.subr.bf16.mxu0 0
        %2847 = vmatpush1.bf16.msra.mxu0 %v2559
        %2848 = vmatprep.subr.bf16.mxu0 0
        %2849 = vmatpush1.bf16.msra.mxu0 %v2560
        %2850 = vmatprep.subr.bf16.mxu0 0
        %2851 = vmatpush1.bf16.msra.mxu0 %v2561
        %2852 = vmatprep.subr.bf16.mxu0 0
        %2853 = vmatpush1.bf16.msra.mxu0 %v2562
        %2854 = vmatprep.subr.bf16.mxu0 0
        %2855 = vmatpush1.bf16.msra.mxu0 %v2563
        %2856 = vmatprep.subr.bf16.mxu0 0
        %2857 = vmatpush1.bf16.msra.mxu0 %v2564
        %2858 = vmatprep.subr.bf16.mxu0 0
        %2859 = vmatpush1.bf16.msra.mxu0 %v2565
        %2860 = vmatprep.subr.bf16.mxu0 0
        %2861 = vmatpush1.bf16.msra.mxu0 %v2566
        %2862 = vmatprep.subr.bf16.mxu0 0
        %2863 = vmatpush1.bf16.msra.mxu0 %v2567
        %2864 = vmatprep.mubr.bf16.mxu0 %v1748
        %2865 = vmatmul.mubr.bf16.gmra.mrb[0].mxu0 %v1747
        %v2866 = vpop.f32.mrb[0].mxu0
        %v2867 = vadd.f32 %v2827, %v2866
        %v2868 = vpop.f32.mrb[0].mxu0
        %v2869 = vpop.f32.mrb[0].mxu0
        %v2870 = vpop.f32.mrb[0].mxu0
        %2871 = vdwg.mxu0
        %2872 = vmatprep.subr.bf16.mxu0 0
        %2873 = vmatpush1.bf16.msra.mxu0 %v2568
        %2874 = vmatprep.subr.bf16.mxu0 0
        %2875 = vmatpush1.bf16.msra.mxu0 %v2569
        %2876 = vmatprep.subr.bf16.mxu0 0
        %2877 = vmatpush1.bf16.msra.mxu0 %v2570
        %2878 = vmatprep.subr.bf16.mxu0 0
        %2879 = vmatpush1.bf16.msra.mxu0 %v2571
        %2880 = vmatprep.subr.bf16.mxu0 0
        %2881 = vmatpush1.bf16.msra.mxu0 %v2572
        %2882 = vmatprep.subr.bf16.mxu0 0
        %2883 = vmatpush1.bf16.msra.mxu0 %v2573
        %2884 = vmatprep.subr.bf16.mxu0 0
        %2885 = vmatpush1.bf16.msra.mxu0 %v2574
        %2886 = vmatprep.subr.bf16.mxu0 0
        %2887 = vmatpush1.bf16.msra.mxu0 %v2575
        %2888 = vmatprep.subr.bf16.mxu0 0
        %2889 = vmatpush1.bf16.msra.mxu0 %v2576
        %2890 = vmatprep.subr.bf16.mxu0 0
        %2891 = vmatpush1.bf16.msra.mxu0 %v2577
        %2892 = vmatprep.subr.bf16.mxu0 0
        %2893 = vmatpush1.bf16.msra.mxu0 %v2578
        %2894 = vmatprep.subr.bf16.mxu0 0
        %2895 = vmatpush1.bf16.msra.mxu0 %v2579
        %2896 = vmatprep.subr.bf16.mxu0 0
        %2897 = vmatpush1.bf16.msra.mxu0 %v2580
        %2898 = vmatprep.subr.bf16.mxu0 0
        %2899 = vmatpush1.bf16.msra.mxu0 %v2581
        %2900 = vmatprep.subr.bf16.mxu0 0
        %2901 = vmatpush1.bf16.msra.mxu0 %v2582
        %2902 = vmatprep.subr.bf16.mxu0 0
        %2903 = vmatpush1.bf16.msra.mxu0 %v2583
        %2904 = vmatprep.mubr.bf16.mxu0 %v1750
        %2905 = vmatmul.mubr.bf16.gmra.mrb[0].mxu0 %v1749
        %v2906 = vpop.f32.mrb[0].mxu0
        %v2907 = vadd.f32 %v2867, %v2906
        %v2908 = vpop.f32.mrb[0].mxu0
        %v2909 = vpop.f32.mrb[0].mxu0
        %v2910 = vpop.f32.mrb[0].mxu0
        %2911 = vdwg.mxu0
        %2912 = vmatprep.subr.bf16.mxu0 0
        %2913 = vmatpush1.bf16.msra.mxu0 %v2584
        %2914 = vmatprep.subr.bf16.mxu0 0
        %2915 = vmatpush1.bf16.msra.mxu0 %v2585
        %2916 = vmatprep.subr.bf16.mxu0 0
        %2917 = vmatpush1.bf16.msra.mxu0 %v2586
        %2918 = vmatprep.subr.bf16.mxu0 0
        %2919 = vmatpush1.bf16.msra.mxu0 %v2587
        %2920 = vmatprep.subr.bf16.mxu0 0
        %2921 = vmatpush1.bf16.msra.mxu0 %v2588
        %2922 = vmatprep.subr.bf16.mxu0 0
        %2923 = vmatpush1.bf16.msra.mxu0 %v2589
        %2924 = vmatprep.subr.bf16.mxu0 0
        %2925 = vmatpush1.bf16.msra.mxu0 %v2590
        %2926 = vmatprep.subr.bf16.mxu0 0
        %2927 = vmatpush1.bf16.msra.mxu0 %v2591
        %2928 = vmatprep.subr.bf16.mxu0 0
        %2929 = vmatpush1.bf16.msra.mxu0 %v2592
        %2930 = vmatprep.subr.bf16.mxu0 0
        %2931 = vmatpush1.bf16.msra.mxu0 %v2593
        %2932 = vmatprep.subr.bf16.mxu0 0
        %2933 = vmatpush1.bf16.msra.mxu0 %v2594
        %2934 = vmatprep.subr.bf16.mxu0 0
        %2935 = vmatpush1.bf16.msra.mxu0 %v2595
        %2936 = vmatprep.subr.bf16.mxu0 0
        %2937 = vmatpush1.bf16.msra.mxu0 %v2596
        %2938 = vmatprep.subr.bf16.mxu0 0
        %2939 = vmatpush1.bf16.msra.mxu0 %v2597
        %2940 = vmatprep.subr.bf16.mxu0 0
        %2941 = vmatpush1.bf16.msra.mxu0 %v2598
        %2942 = vmatprep.subr.bf16.mxu0 0
        %2943 = vmatpush1.bf16.msra.mxu0 %v2599
        %2944 = vmatprep.mubr.bf16.mxu0 %v1752
        %2945 = vmatmul.mubr.bf16.gmra.mrb[0].mxu0 %v1751
        %v2946 = vpop.f32.mrb[0].mxu0
        %v2947 = vadd.f32 %v2907, %v2946
        %v2948 = vpop.f32.mrb[0].mxu0
        %v2949 = vpop.f32.mrb[0].mxu0
        %v2950 = vpop.f32.mrb[0].mxu0
        %2951 = vdwg.mxu0
        %2952 = vmatprep.subr.bf16.mxu0 0
        %2953 = vmatpush1.bf16.msra.mxu0 %v2600
        %2954 = vmatprep.subr.bf16.mxu0 0
        %2955 = vmatpush1.bf16.msra.mxu0 %v2601
        %2956 = vmatprep.subr.bf16.mxu0 0
        %2957 = vmatpush1.bf16.msra.mxu0 %v2602
        %2958 = vmatprep.subr.bf16.mxu0 0
        %2959 = vmatpush1.bf16.msra.mxu0 %v2603
        %2960 = vmatprep.subr.bf16.mxu0 0
        %2961 = vmatpush1.bf16.msra.mxu0 %v2604
        %2962 = vmatprep.subr.bf16.mxu0 0
        %2963 = vmatpush1.bf16.msra.mxu0 %v2605
        %2964 = vmatprep.subr.bf16.mxu0 0
        %2965 = vmatpush1.bf16.msra.mxu0 %v2606
        %2966 = vmatprep.subr.bf16.mxu0 0
        %2967 = vmatpush1.bf16.msra.mxu0 %v2607
        %2968 = vmatprep.subr.bf16.mxu0 0
        %2969 = vmatpush1.bf16.msra.mxu0 %v2608
        %2970 = vmatprep.subr.bf16.mxu0 0
        %2971 = vmatpush1.bf16.msra.mxu0 %v2609
        %2972 = vmatprep.subr.bf16.mxu0 0
        %2973 = vmatpush1.bf16.msra.mxu0 %v2610
        %2974 = vmatprep.subr.bf16.mxu0 0
        %2975 = vmatpush1.bf16.msra.mxu0 %v2611
        %2976 = vmatprep.subr.bf16.mxu0 0
        %2977 = vmatpush1.bf16.msra.mxu0 %v2612
        %2978 = vmatprep.subr.bf16.mxu0 0
        %2979 = vmatpush1.bf16.msra.mxu0 %v2613
        %2980 = vmatprep.subr.bf16.mxu0 0
        %2981 = vmatpush1.bf16.msra.mxu0 %v2614
        %2982 = vmatprep.subr.bf16.mxu0 0
        %2983 = vmatpush1.bf16.msra.mxu0 %v2615
        %2984 = vmatprep.mubr.bf16.mxu0 %v1754
        %2985 = vmatmul.mubr.bf16.gmra.mrb[0].mxu0 %v1753
        %v2986 = vpop.f32.mrb[0].mxu0
        %v2987 = vadd.f32 %v2947, %v2986
        %v2988 = vpop.f32.mrb[0].mxu0
        %v2989 = vpop.f32.mrb[0].mxu0
        %v2990 = vpop.f32.mrb[0].mxu0
        %2991 = vdwg.mxu0
        %2992 = vmatprep.subr.bf16.mxu0 0
        %2993 = vmatpush1.bf16.msra.mxu0 %v2616
        %2994 = vmatprep.subr.bf16.mxu0 0
        %2995 = vmatpush1.bf16.msra.mxu0 %v2617
        %2996 = vmatprep.subr.bf16.mxu0 0
        %2997 = vmatpush1.bf16.msra.mxu0 %v2618
        %2998 = vmatprep.subr.bf16.mxu0 0
        %2999 = vmatpush1.bf16.msra.mxu0 %v2619
        %3000 = vmatprep.subr.bf16.mxu0 0
        %3001 = vmatpush1.bf16.msra.mxu0 %v2620
        %3002 = vmatprep.subr.bf16.mxu0 0
        %3003 = vmatpush1.bf16.msra.mxu0 %v2621
        %3004 = vmatprep.subr.bf16.mxu0 0
        %3005 = vmatpush1.bf16.msra.mxu0 %v2622
        %3006 = vmatprep.subr.bf16.mxu0 0
        %3007 = vmatpush1.bf16.msra.mxu0 %v2623
        %3008 = vmatprep.subr.bf16.mxu0 0
        %3009 = vmatpush1.bf16.msra.mxu0 %v2624
        %3010 = vmatprep.subr.bf16.mxu0 0
        %3011 = vmatpush1.bf16.msra.mxu0 %v2625
        %3012 = vmatprep.subr.bf16.mxu0 0
        %3013 = vmatpush1.bf16.msra.mxu0 %v2626
        %3014 = vmatprep.subr.bf16.mxu0 0
        %3015 = vmatpush1.bf16.msra.mxu0 %v2627
        %3016 = vmatprep.subr.bf16.mxu0 0
        %3017 = vmatpush1.bf16.msra.mxu0 %v2628
        %3018 = vmatprep.subr.bf16.mxu0 0
        %3019 = vmatpush1.bf16.msra.mxu0 %v2629
        %3020 = vmatprep.subr.bf16.mxu0 0
        %3021 = vmatpush1.bf16.msra.mxu0 %v2630
        %3022 = vmatprep.subr.bf16.mxu0 0
        %3023 = vmatpush1.bf16.msra.mxu0 %v2631
        %3024 = vmatprep.mubr.bf16.mxu0 %v1756
        %3025 = vmatmul.mubr.bf16.gmra.mrb[0].mxu0 %v1755
        %v3026 = vpop.f32.mrb[0].mxu0
        %v3027 = vadd.f32 %v2987, %v3026
        %v3028 = vpop.f32.mrb[0].mxu0
        %v3029 = vpop.f32.mrb[0].mxu0
        %v3030 = vpop.f32.mrb[0].mxu0
        %3031 = vdwg.mxu0
        %3032 = vmatprep.subr.bf16.mxu0 0
        %3033 = vmatpush1.bf16.msra.mxu0 %v2632
        %3034 = vmatprep.subr.bf16.mxu0 0
        %3035 = vmatpush1.bf16.msra.mxu0 %v2633
        %3036 = vmatprep.subr.bf16.mxu0 0
        %3037 = vmatpush1.bf16.msra.mxu0 %v2634
        %3038 = vmatprep.subr.bf16.mxu0 0
        %3039 = vmatpush1.bf16.msra.mxu0 %v2635
        %3040 = vmatprep.subr.bf16.mxu0 0
        %3041 = vmatpush1.bf16.msra.mxu0 %v2636
        %3042 = vmatprep.subr.bf16.mxu0 0
        %3043 = vmatpush1.bf16.msra.mxu0 %v2637
        %3044 = vmatprep.subr.bf16.mxu0 0
        %3045 = vmatpush1.bf16.msra.mxu0 %v2638
        %3046 = vmatprep.subr.bf16.mxu0 0
        %3047 = vmatpush1.bf16.msra.mxu0 %v2639
        %3048 = vmatprep.subr.bf16.mxu0 0
        %3049 = vmatpush1.bf16.msra.mxu0 %v2640
        %3050 = vmatprep.subr.bf16.mxu0 0
        %3051 = vmatpush1.bf16.msra.mxu0 %v2641
        %3052 = vmatprep.subr.bf16.mxu0 0
        %3053 = vmatpush1.bf16.msra.mxu0 %v2642
        %3054 = vmatprep.subr.bf16.mxu0 0
        %3055 = vmatpush1.bf16.msra.mxu0 %v2643
        %3056 = vmatprep.subr.bf16.mxu0 0
        %3057 = vmatpush1.bf16.msra.mxu0 %v2644
        %3058 = vmatprep.subr.bf16.mxu0 0
        %3059 = vmatpush1.bf16.msra.mxu0 %v2645
        %3060 = vmatprep.subr.bf16.mxu0 0
        %3061 = vmatpush1.bf16.msra.mxu0 %v2646
        %3062 = vmatprep.subr.bf16.mxu0 0
        %3063 = vmatpush1.bf16.msra.mxu0 %v2647
        %3064 = vmatprep.mubr.bf16.mxu0 %v1758
        %3065 = vmatmul.mubr.bf16.gmra.mrb[0].mxu0 %v1757
        %v3066 = vpop.f32.mrb[0].mxu0
        %v3067 = vadd.f32 %v3027, %v3066
        %v3068 = vpop.f32.mrb[0].mxu0
        %v3069 = vpop.f32.mrb[0].mxu0
        %v3070 = vpop.f32.mrb[0].mxu0
        %3071 = vdwg.mxu0
        %3072 = vmatprep.subr.bf16.mxu0 0
        %3073 = vmatpush1.bf16.msra.mxu0 %v2648
        %3074 = vmatprep.subr.bf16.mxu0 0
        %3075 = vmatpush1.bf16.msra.mxu0 %v2649
        %3076 = vmatprep.subr.bf16.mxu0 0
        %3077 = vmatpush1.bf16.msra.mxu0 %v2650
        %3078 = vmatprep.subr.bf16.mxu0 0
        %3079 = vmatpush1.bf16.msra.mxu0 %v2651
        %3080 = vmatprep.subr.bf16.mxu0 0
        %3081 = vmatpush1.bf16.msra.mxu0 %v2652
        %3082 = vmatprep.subr.bf16.mxu0 0
        %3083 = vmatpush1.bf16.msra.mxu0 %v2653
        %3084 = vmatprep.subr.bf16.mxu0 0
        %3085 = vmatpush1.bf16.msra.mxu0 %v2654
        %3086 = vmatprep.subr.bf16.mxu0 0
        %3087 = vmatpush1.bf16.msra.mxu0 %v2655
        %3088 = vmatprep.subr.bf16.mxu0 0
        %3089 = vmatpush1.bf16.msra.mxu0 %v2656
        %3090 = vmatprep.subr.bf16.mxu0 0
        %3091 = vmatpush1.bf16.msra.mxu0 %v2657
        %3092 = vmatprep.subr.bf16.mxu0 0
        %3093 = vmatpush1.bf16.msra.mxu0 %v2658
        %3094 = vmatprep.subr.bf16.mxu0 0
        %3095 = vmatpush1.bf16.msra.mxu0 %v2659
        %3096 = vmatprep.subr.bf16.mxu0 0
        %3097 = vmatpush1.bf16.msra.mxu0 %v2660
        %3098 = vmatprep.subr.bf16.mxu0 0
        %3099 = vmatpush1.bf16.msra.mxu0 %v2661
        %3100 = vmatprep.subr.bf16.mxu0 0
        %3101 = vmatpush1.bf16.msra.mxu0 %v2662
        %3102 = vmatprep.subr.bf16.mxu0 0
        %3103 = vmatpush1.bf16.msra.mxu0 %v2663
        %3104 = vmatprep.mubr.bf16.mxu0 %v1760
        %3105 = vmatmul.mubr.bf16.gmra.mrb[0].mxu0 %v1759
        %v3106 = vpop.f32.mrb[0].mxu0
        %v3107 = vadd.f32 %v3067, %v3106
        %v3108 = vpop.f32.mrb[0].mxu0
        %v3109 = vpop.f32.mrb[0].mxu0
        %v3110 = vpop.f32.mrb[0].mxu0
        %3111 = vdwg.mxu0
        %v3112 = vadd.f32 %v3107, %v1120
        %v3113 = vld [vmem:[%s11] sm:$0x1]
        %v3114 = vld [vmem:[%s12] sm:$0x1]
        %v3115 = vsel %vm516, %v3112, 0.0
        %3116 = vadd.xlane.f32.xlu0 %v3115
        %v3117 = vpop.xlane.xlu0 %3116
        %v3118 = vmul.f32 %v3117, %v1096
        %v3119 = vsub.f32 %v3112, %v3118
        %v3120 = vmul.f32 %v3119, %v3119
        %v3121 = vsel %vm516, %v3120, 0.0
        %3122 = vadd.xlane.f32.xlu0 %v3121
        %v3123 = vpop.xlane.xlu0 %3122
        %v3124 = vmul.f32 %v3123, %v1096
        %v3125 = vadd.f32 %v3124, 1e-05
        %v3126 = vrsqrt.pop %v3125
        %v3127 = vmul.f32 %v3119, %v3126
        %v3129 = vlaneseq
        %v3130 = vshrl.u32 %v3129, 7
        %v3131 = vsub.s32 0, %v3130
        %v3132 = vrot.slane %v3113, %v3131
        %v3134 = vmul.f32 %v3127, %v3132
        %v3136 = vlaneseq
        %v3137 = vshrl.u32 %v3136, 7
        %v3138 = vsub.s32 0, %v3137
        %v3139 = vrot.slane %v3114, %v3138
        %v3141 = vadd.f32 %v3134, %v3139
        %v3142 = vpack.c.bf16 %v3141, %v3141
        %v3143 = vld [vmem:[%s13] sm:$0xf]
        %v3144 = vld [vmem:[%s13 + $0x4] sm:$0xf]
        %v3145 = vld [vmem:[%s13 + $0x8] sm:$0xf]
        %v3146 = vld [vmem:[%s13 + $0xc] sm:$0xf]
        %v3147 = vld [vmem:[%s14] sm:$0x1]
        %v3149 = vlaneseq
        %v3150 = vshrl.u32 %v3149, 7
        %v3151 = vsub.s32 0, %v3150
        %v3152 = vrot.slane %v3147, %v3151
        %v3158 = vunpack.c.l.b16 %v3143
        %v3159 = vunpack.c.l.b16 %v3144
        %v3160 = vunpack.c.l.b16 %v3145
        %v3161 = vunpack.c.l.b16 %v3146
        %v3162 = vpack.c.b16 %v3159, %v3158
        %v3163 = vpack.c.b16 %v3161, %v3160
        %v3167 = vsel %vm516, %v3142, 0
        %3169 = vmatprep.subr.bf16.mxu0 0
        %3170 = vmatpush1.bf16.msra.mxu0 %v3162
        %3171 = vmatprep.subr.bf16.mxu0 0
        %3172 = vmatpush1.bf16.msra.mxu0 %v3163
        %3173 = vmatprep.subr.bf16.mxu0 0
        %3174 = vmatpush1.bf16.msra.mxu0 0
        %3175 = vmatprep.subr.bf16.mxu0 0
        %3176 = vmatpush1.bf16.msra.mxu0 0
        %3177 = vmatprep.subr.bf16.mxu0 0
        %3178 = vmatpush1.bf16.msra.mxu0 0
        %3179 = vmatprep.subr.bf16.mxu0 0
        %3180 = vmatpush1.bf16.msra.mxu0 0
        %3181 = vmatprep.subr.bf16.mxu0 0
        %3182 = vmatpush1.bf16.msra.mxu0 0
        %3183 = vmatprep.subr.bf16.mxu0 0
        %3184 = vmatpush1.bf16.msra.mxu0 0
        %3185 = vmatprep.subr.bf16.mxu0 0
        %3186 = vmatpush1.bf16.msra.mxu0 0
        %3187 = vmatprep.subr.bf16.mxu0 0
        %3188 = vmatpush1.bf16.msra.mxu0 0
        %3189 = vmatprep.subr.bf16.mxu0 0
        %3190 = vmatpush1.bf16.msra.mxu0 0
        %3191 = vmatprep.subr.bf16.mxu0 0
        %3192 = vmatpush1.bf16.msra.mxu0 0
        %3193 = vmatprep.subr.bf16.mxu0 0
        %3194 = vmatpush1.bf16.msra.mxu0 0
        %3195 = vmatprep.subr.bf16.mxu0 0
        %3196 = vmatpush1.bf16.msra.mxu0 0
        %3197 = vmatprep.subr.bf16.mxu0 0
        %3198 = vmatpush1.bf16.msra.mxu0 0
        %3199 = vmatprep.subr.bf16.mxu0 0
        %3200 = vmatpush1.bf16.msra.mxu0 0
        %3201 = vmatprep.mubr.bf16.mxu0 0
        %3202 = vmatmul.mubr.bf16.gmra.mrb[0].mxu0 %v3167
        %v3203 = vpop.f32.mrb[0].mxu0
        %v3204 = vadd.f32 %v3152, %v3203
        %v3205 = vpop.f32.mrb[0].mxu0
        %v3206 = vpop.f32.mrb[0].mxu0
        %v3207 = vpop.f32.mrb[0].mxu0
        %3208 = vdwg.mxu0
        %3209 = vst [vmem:[%s485] sm:$0xff] %v3204
        %s3210 = sand.u32 %s357, 1
        %s3211 = scalar_lea.sflag [#allocation3], %s3210
        %s3212 = sand.u32 %s357, 1
        %s3213 = smul.addr %s3212, 8
        %s3214 = scalar_lea.vmem [#allocation2], %s3213
        // Predicated region
        $region81: #{tpu_custom_call.1} parent=79 // pred_check
          %p3215 = pneg %p367
        $region82: #{tpu_custom_call.1} parent=79 // pred_check_branch
          %3217 = sbr.rel (%p3215) target = $region84
        $region83: #{tpu_custom_call.1} parent=79 // pred_region
          %s3219 = ssub.s32 128, 128
          %3220 = vsyncadd %s3211, %s3219
          %s3221 = smul.addr %s29, 128
          %s3222 = scalar_lea.hbm %s15, %s3221
          %s3224 = sshll.u32 %s3214, 4
          %s3225 = int_to_ptr.vmem [resolvable:$true] %s3224
          %3227 = dma.vmem_to_hbm [thread:$0]  %s3225, 128, %s3222, %s3211
        $region84: #{tpu_custom_call.1} parent=79 // pred_fallthru
          _
      $region80: #{tpu_custom_call.1} parent=5 // pred_fallthru
        _
      %p3228 = scmp.le.s32.totalorder 2, %s24
      // Predicated region
      $region85: #{tpu_custom_call.1} parent=5 // pred_check
        %p3229 = pneg %p3228
      $region86: #{tpu_custom_call.1} parent=5 // pred_check_branch
        %3231 = sbr.rel (%p3229) target = $region88
      $region87: #{tpu_custom_call.1} parent=5 // pred_region
        %s3232 = ssub.s32 %s24, 2
        // Predicated region
        $region89: #{tpu_custom_call.1} parent=87 // pred_check
          %p3233 = pneg %p373
        $region90: #{tpu_custom_call.1} parent=87 // pred_check_branch
          %3235 = sbr.rel (%p3233) target = $region92
        $region91: #{tpu_custom_call.1} parent=87 // pred_region
          %s3236 = sand.u32 %s358, 1
          %s3237 = scalar_lea.sflag [#allocation3], %s3236
          %s3238 = sand.u32 %s358, 1
          %s3239 = smul.addr %s3238, 8
          %s3240 = scalar_lea.vmem [#allocation2], %s3239
          %3241 = dma.done %s3237, 128
        $region92: #{tpu_custom_call.1} parent=87 // pred_fallthru
          _
      $region88: #{tpu_custom_call.1} parent=5 // pred_fallthru
        _
    $region6: #{tpu_custom_call.1} parent=1 // loop_footer
      %s28 = sadd.s32 1, %s24
    $region7: #{tpu_custom_call.1} parent=1 // loop_footer_branch
      %23 = sbr.rel target = $region3
    $region8: #{tpu_custom_call.1} parent=1 // loop_exit
      _
    %3242 = vsyncpa [#allocation3], 1
    %s3243 = scalar_lea.sflag [#allocation3], 1
    %3244 = vsyncpa %s3243, 1

</llo_original>
